<compile_context>
chip_gen: v7x
topology: tpu7x:2x2x1
jax: 0.10.0
libtpu: 0.0.40
codegen_flags: <defaults>
</compile_context>

<pallas_src>
import jax
import jax.numpy as jnp
from jax.experimental import pallas as pl
from jax.experimental.pallas import tpu as pltpu

EPS = 1e-5          # torch.nn.InstanceNorm2d default eps
NEG_SLOPE = 0.01    # torch.nn.LeakyReLU default negative_slope


def _round_up(x, m):
    return (x + m - 1) // m * m


def _prep_weight(w_oihw, cp_in, cp_out):
    """PyTorch (Cout, Cin, 3, 3) -> (Cp_out, 9*Cp_in) matmul matrix.

    Column order is dx-major / dy / channel-minor, matching the in-kernel tap
    concatenation: column = (dx*3 + dy)*Cp_in + cin.
    """
    cout, cin, kh, kw = w_oihw.shape
    wt = jnp.transpose(w_oihw, (0, 3, 2, 1))            # (Cout, kx, ky, Cin)
    wt = jnp.pad(wt, ((0, cp_out - cout), (0, 0), (0, 0), (0, cp_in - cin)))
    return wt.reshape(cp_out, kh * kw * cp_in)


def _make_kernel(h, w, hw, spb, gap, span, cin, cp_in, cp_out, cdt):
    stride = hw + gap            # per-sample stride inside the flat slab

    def kernel(x_ref, w1_ref, w2_ref, o_ref, xs_ref, ys_ref):
        # ---- hoisted row-wrap masks (shared by both conv stages) ------------
        j = jax.lax.broadcasted_iota(jnp.int32, (1, span), 1)
        col = (j % stride) % w                   # image column (gap lanes: don't-care)
        mask_l = (col > 0).astype(cdt)           # valid for taps reading column c-1
        mask_r = (col < w - 1).astype(cdt)       # valid for taps reading column c+1

        def conv3x3(src_ref, w_mat):
            # src_ref: (C, slab) zero-bordered scratch; w_mat: (Cp_out, 9*C).
            groups = []
            for dx in range(3):                  # dx-major: one mask multiply per group
                parts = []
                for dy in range(3):
                    off = gap + (dy - 1) * w + (dx - 1)
                    parts.append(src_ref[:, off:off + span])
                grp = jnp.concatenate(parts, axis=0)        # (3*C, span)
                if dx == 0:
                    grp = grp * mask_l
                elif dx == 2:
                    grp = grp * mask_r
                groups.append(grp)
            xcol = jnp.concatenate(groups, axis=0)          # (9*C, span)
            # One MXU matmul for the whole batch block, f32 accumulation.
            return jnp.dot(w_mat, xcol, preferred_element_type=jnp.float32)

        def inorm_lrelu(a):
            # InstanceNorm2d (affine=False, biased var, eps=1e-5) + LeakyReLU, f32.
            mu = jnp.mean(a, axis=-1, keepdims=True)
            d = a - mu
            var = jnp.mean(d * d, axis=-1, keepdims=True)
            y = d * jax.lax.rsqrt(var + EPS)
            return jnp.maximum(y, NEG_SLOPE * y)

        # ---- stage 1: build zero-bordered input slab, conv, per-sample IN+act
        xs_ref[...] = jnp.zeros_like(xs_ref)     # zero channel pad + gap strips
        for s in range(spb):
            p0 = gap + s * stride
            xs_ref[:cin, p0:p0 + hw] = x_ref[s]
        y1 = conv3x3(xs_ref, w1_ref[...])        # (Cp_out, span) f32

        ys_ref[...] = jnp.zeros_like(ys_ref)
        for s in range(spb):
            a1 = inorm_lrelu(y1[:, s * stride:s * stride + hw])
            ys_ref[:, gap + s * stride:gap + s * stride + hw] = a1.astype(cdt)

        # ---- stage 2 ---------------------------------------------------------
        y2 = conv3x3(ys_ref, w2_ref[...])        # (Cp_out, span) f32
        for s in range(spb):
            a2 = inorm_lrelu(y2[:, s * stride:s * stride + hw])
            o_ref[s] = a2.astype(o_ref.dtype)

    return kernel


def double_conv(x_nchw, w1, b1, w2, b2, *, samples_per_block=None,
                compute_dtype=jnp.bfloat16):
    """Forward pass of DoubleConv (InstanceNorm path). NCHW in / NCHW out.

    Biases are accepted for nn.Conv2d API parity but unused: InstanceNorm2d
    (affine=False) subtracts the per-channel mean, cancelling them exactly.
    """
    del b1, b2
    n, cin, h, w = x_nchw.shape
    cout = w1.shape[0]
    hw = h * w

    # Channel padding multiple: full bf16 sublane tile (16) or f32 tile (8).
    mult = 16 if compute_dtype == jnp.bfloat16 else 8
    cp_in, cp_out = _round_up(cin, mult), _round_up(cout, mult)

    # Batch folding: spb samples per grid step (whole batch for small N).
    # On v7x pass samples_per_block = cdiv(n, 2) so the "parallel" axis feeds both TCs.
    spb = samples_per_block if samples_per_block else min(n, 8)
    nb = pl.cdiv(n, spb)
    npad = nb * spb

    gap = _round_up(w + 1, 128)          # zero strip before/between/after samples
    stride = hw + gap
    span = spb * hw + (spb - 1) * gap    # matmul RHS lane width (payload + inner gaps)
    slab = gap + spb * stride            # zero-bordered scratch slab length

    xf = x_nchw.reshape(n, cin, hw).astype(compute_dtype)
    if npad != n:
        xf = jnp.pad(xf, ((0, npad - n), (0, 0), (0, 0)))
    w1m = _prep_weight(w1, cp_in, cp_out).astype(compute_dtype)   # (Cp_out, 9*Cp_in)
    w2m = _prep_weight(w2, cp_out, cp_out).astype(compute_dtype)  # (Cp_out, 9*Cp_out)

    kernel = _make_kernel(h, w, hw, spb, gap, span, cin, cp_in, cp_out, compute_dtype)

    def build(single_buffer_weights):
        wmode = {"pipeline_mode": pl.Buffered(1)} if single_buffer_weights else {}
        return pl.pallas_call(
            kernel,
            out_shape=jax.ShapeDtypeStruct((npad, cp_out, hw), jnp.float32),
            grid=(nb,),
            in_specs=[
                pl.BlockSpec((spb, cin, hw), lambda i: (i, 0, 0)),
                pl.BlockSpec((cp_out, 9 * cp_in), lambda i: (0, 0), **wmode),
                pl.BlockSpec((cp_out, 9 * cp_out), lambda i: (0, 0), **wmode),
            ],
            out_specs=pl.BlockSpec((spb, cp_out, hw), lambda i: (i, 0, 0)),
            scratch_shapes=[
                pltpu.VMEM((cp_in, slab), compute_dtype),    # stage-1 input slab
                pltpu.VMEM((cp_out, slab), compute_dtype),   # stage-2 input slab
            ],
            compiler_params=pltpu.CompilerParams(
                dimension_semantics=("parallel",)),
        )

    try:
        out = build(True)(xf, w1m, w2m)      # single-buffered constant weights
    except Exception:                        # fallback if pipeline_mode is rejected
        out = build(False)(xf, w1m, w2m)

    # Output is already channel-major: drop padding and unflatten.
    return out[:n, :cout, :].reshape(n, cout, h, w)


# --------------------------- plain-JAX references ---------------------------
def _ref_stage(x, w, b, cast_dtype=None):
    if cast_dtype is not None:               # mimic kernel's bf16 MXU inputs
        x = x.astype(cast_dtype).astype(jnp.float32)
        w = w.astype(cast_dtype).astype(jnp.float32)
    y = jax.lax.conv_general_dilated(
        x, w, window_strides=(1, 1), padding=((1, 1), (1, 1)),
        dimension_numbers=("NCHW", "OIHW", "NCHW"))
    y = y + b[None, :, None, None]
    mean = jnp.mean(y, axis=(2, 3), keepdims=True)
    var = jnp.var(y, axis=(2, 3), keepdims=True)
    y = (y - mean) * jax.lax.rsqrt(var + EPS)
    return jnp.maximum(y, NEG_SLOPE * y)


def _ref_double_conv(x, w1, b1, w2, b2, cast_dtype=None):
    return _ref_stage(_ref_stage(x, w1, b1, cast_dtype), w2, b2, cast_dtype)


if __name__ == "__main__":
    N, CIN, COUT, H, W = 2, 4, 8, 16, 16

    key = jax.random.PRNGKey(0)
    kx, kw1, kb1, kw2, kb2 = jax.random.split(key, 5)

    x = jax.random.normal(kx, (N, CIN, H, W), dtype=jnp.float32)

    # Deterministic Conv2d-style init (uniform in +/- 1/sqrt(fan_in)).
    fan1 = CIN * 9
    lim1 = 1.0 / fan1 ** 0.5
    w1 = jax.random.uniform(kw1, (COUT, CIN, 3, 3), jnp.float32, -lim1, lim1)
    b1 = jax.random.uniform(kb1, (COUT,), jnp.float32, -lim1, lim1)
    fan2 = COUT * 9
    lim2 = 1.0 / fan2 ** 0.5
    w2 = jax.random.uniform(kw2, (COUT, COUT, 3, 3), jnp.float32, -lim2, lim2)
    b2 = jax.random.uniform(kb2, (COUT,), jnp.float32, -lim2, lim2)

    out = jax.block_until_ready(double_conv(x, w1, b1, w2, b2))
    assert out.shape == (N, COUT, H, W)

    # Tight structural check against a reference that rounds MXU inputs to bf16
    # exactly like the kernel does (differences are f32 accumulation order only).
    ref_bf16 = _ref_double_conv(x, w1, b1, w2, b2, cast_dtype=jnp.bfloat16)
    err_b = float(jnp.max(jnp.abs(out - ref_bf16)))
    assert jnp.allclose(out, ref_bf16, rtol=1e-2, atol=1e-2), \
        f"max abs diff vs bf16-aware reference = {err_b}"

    # Loose sanity check against the exact f32 PyTorch-equivalent math
    # (bf16 MXU inputs are standard but not bit-equivalent to f32).
    ref_f32 = _ref_double_conv(x, w1, b1, w2, b2)
    err_f = float(jnp.max(jnp.abs(out - ref_f32)))
    assert jnp.allclose(out, ref_f32, rtol=1e-1, atol=1e-1), \
        f"max abs diff vs f32 reference = {err_f}"

    print("KERNEL_OK")
</pallas_src>

<mosaic_0001>
module attributes {stable_mosaic.version = 11 : i64} {
  func.func @kernel(%arg0: i32, %arg1: memref<2x4x256xbf16, #tpu.memory_space<vmem>>, %arg2: memref<16x144xbf16, #tpu.memory_space<vmem>>, %arg3: memref<16x144xbf16, #tpu.memory_space<vmem>>, %arg4: memref<2x16x256xf32, #tpu.memory_space<vmem>>, %arg5: memref<16x896xbf16, #tpu.memory_space<vmem>>, %arg6: memref<16x896xbf16, #tpu.memory_space<vmem>>) attributes {dimension_semantics = [#tpu.dimension_semantics<parallel>], iteration_bounds = array<i64: 1>, scalar_prefetch = 0 : i64, scratch_operands = 2 : i64, tpu.core_type = #tpu.core_type<tc>, window_params = [{transform_indices = @transform_0, window_bounds = array<i64: 2, 4, 256>}, {pipeline_mode = #tpu.pipeline_mode<synchronous>, transform_indices = @transform_1, window_bounds = array<i64: 16, 144>}, {pipeline_mode = #tpu.pipeline_mode<synchronous>, transform_indices = @transform_2, window_bounds = array<i64: 16, 144>}, {transform_indices = @transform_3, window_bounds = array<i64: 2, 16, 256>}]} {
    %0 = tpu.iota {dimensions = array<i32: 1>} : vector<1x640xi32>
    %c384_i32 = arith.constant 384 : i32
    %c0_i32 = arith.constant 0 : i32
    %1 = arith.cmpi eq, %c384_i32, %c0_i32 : i32
    %c1_i32 = arith.constant 1 : i32
    %2 = arith.select %1, %c1_i32, %c384_i32 : i32
    %3 = vector.broadcast %2 : i32 to vector<1x640xi32>
    %4 = arith.remsi %0, %3 : vector<1x640xi32>
    %c0_i32_0 = arith.constant 0 : i32
    %5 = vector.broadcast %c0_i32_0 : i32 to vector<1x640xi32>
    %6 = arith.cmpi ne, %4, %5 : vector<1x640xi32>
    %c0_i32_1 = arith.constant 0 : i32
    %7 = vector.broadcast %c0_i32_1 : i32 to vector<1x640xi32>
    %8 = arith.cmpi slt, %4, %7 : vector<1x640xi32>
    %c0_i32_2 = arith.constant 0 : i32
    %9 = arith.cmpi slt, %2, %c0_i32_2 : i32
    %10 = vector.broadcast %9 : i1 to vector<1x640xi1>
    %11 = vector.broadcast %10 : vector<1x640xi1> to vector<1x640xi1>
    %12 = arith.xori %8, %11 : vector<1x640xi1>
    %13 = arith.andi %12, %6 : vector<1x640xi1>
    %14 = vector.broadcast %2 : i32 to vector<1x640xi32>
    %15 = arith.addi %4, %14 : vector<1x640xi32>
    %16 = arith.select %13, %15, %4 : vector<1x640xi1>, vector<1x640xi32>
    %c16_i32 = arith.constant 16 : i32
    %c0_i32_3 = arith.constant 0 : i32
    %17 = arith.cmpi eq, %c16_i32, %c0_i32_3 : i32
    %c1_i32_4 = arith.constant 1 : i32
    %18 = arith.select %17, %c1_i32_4, %c16_i32 : i32
    %19 = vector.broadcast %18 : i32 to vector<1x640xi32>
    %20 = arith.remsi %16, %19 : vector<1x640xi32>
    %c0_i32_5 = arith.constant 0 : i32
    %21 = vector.broadcast %c0_i32_5 : i32 to vector<1x640xi32>
    %22 = arith.cmpi ne, %20, %21 : vector<1x640xi32>
    %c0_i32_6 = arith.constant 0 : i32
    %23 = vector.broadcast %c0_i32_6 : i32 to vector<1x640xi32>
    %24 = arith.cmpi slt, %20, %23 : vector<1x640xi32>
    %c0_i32_7 = arith.constant 0 : i32
    %25 = arith.cmpi slt, %18, %c0_i32_7 : i32
    %26 = vector.broadcast %25 : i1 to vector<1x640xi1>
    %27 = vector.broadcast %26 : vector<1x640xi1> to vector<1x640xi1>
    %28 = arith.xori %24, %27 : vector<1x640xi1>
    %29 = arith.andi %28, %22 : vector<1x640xi1>
    %30 = vector.broadcast %18 : i32 to vector<1x640xi32>
    %31 = arith.addi %20, %30 : vector<1x640xi32>
    %32 = arith.select %29, %31, %20 : vector<1x640xi1>, vector<1x640xi32>
    %c0_i32_8 = arith.constant 0 : i32
    %33 = vector.broadcast %c0_i32_8 : i32 to vector<1x640xi32>
    %34 = arith.cmpi sgt, %32, %33 : vector<1x640xi32>
    %35 = arith.extui %34 : vector<1x640xi1> to vector<1x640xi32>
    %36 = arith.sitofp %35 : vector<1x640xi32> to vector<1x640xf32>
    %37 = arith.truncf %36 : vector<1x640xf32> to vector<1x640xbf16>
    %c15_i32 = arith.constant 15 : i32
    %38 = vector.broadcast %c15_i32 : i32 to vector<1x640xi32>
    %39 = arith.cmpi slt, %32, %38 : vector<1x640xi32>
    %40 = arith.extui %39 : vector<1x640xi1> to vector<1x640xi32>
    %41 = arith.sitofp %40 : vector<1x640xi32> to vector<1x640xf32>
    %42 = arith.truncf %41 : vector<1x640xf32> to vector<1x640xbf16>
    %cst = arith.constant 0.000000e+00 : bf16
    %43 = vector.broadcast %cst : bf16 to vector<16x896xbf16>
    %c0 = arith.constant 0 : index
    %c0_9 = arith.constant 0 : index
    %44 = vector.load %arg5[%c0, %c0_9] : memref<16x896xbf16, #tpu.memory_space<vmem>>, vector<16x896xbf16>
    tpu.vector_store %arg5[%c0, %c0_9], %43 {strides = array<i32>} : memref<16x896xbf16, #tpu.memory_space<vmem>>, vector<16x896xbf16>,
    %c0_10 = arith.constant 0 : index
    %c0_11 = arith.constant 0 : index
    %c0_12 = arith.constant 0 : index
    %45 = vector.load %arg1[%c0_10, %c0_11, %c0_12] : memref<2x4x256xbf16, #tpu.memory_space<vmem>>, vector<1x4x256xbf16>
    %46 = vector.shape_cast %45 : vector<1x4x256xbf16> to vector<4x256xbf16>
    %c0_13 = arith.constant 0 : index
    %c128 = arith.constant 128 : index
    %47 = vector.load %arg5[%c0_13, %c128] : memref<16x896xbf16, #tpu.memory_space<vmem>>, vector<4x256xbf16>
    tpu.vector_store %arg5[%c0_13, %c128], %46 {strides = array<i32>} : memref<16x896xbf16, #tpu.memory_space<vmem>>, vector<4x256xbf16>,
    %c1 = arith.constant 1 : index
    %c0_14 = arith.constant 0 : index
    %c0_15 = arith.constant 0 : index
    %48 = vector.load %arg1[%c1, %c0_14, %c0_15] : memref<2x4x256xbf16, #tpu.memory_space<vmem>>, vector<1x4x256xbf16>
    %49 = vector.shape_cast %48 : vector<1x4x256xbf16> to vector<4x256xbf16>
    %c0_16 = arith.constant 0 : index
    %c512 = arith.constant 512 : index
    %50 = vector.load %arg5[%c0_16, %c512] : memref<16x896xbf16, #tpu.memory_space<vmem>>, vector<4x256xbf16>
    tpu.vector_store %arg5[%c0_16, %c512], %49 {strides = array<i32>} : memref<16x896xbf16, #tpu.memory_space<vmem>>, vector<4x256xbf16>,
    %c0_17 = arith.constant 0 : index
    %c0_18 = arith.constant 0 : index
    %51 = vector.load %arg2[%c0_17, %c0_18] : memref<16x144xbf16, #tpu.memory_space<vmem>>, vector<16x144xbf16>
    %c0_19 = arith.constant 0 : index
    %c111 = arith.constant 111 : index
    %52 = vector.load %arg5[%c0_19, %c111] : memref<16x896xbf16, #tpu.memory_space<vmem>>, vector<16x640xbf16>
    %c0_20 = arith.constant 0 : index
    %c127 = arith.constant 127 : index
    %53 = vector.load %arg5[%c0_20, %c127] : memref<16x896xbf16, #tpu.memory_space<vmem>>, vector<16x640xbf16>
    %c0_21 = arith.constant 0 : index
    %c143 = arith.constant 143 : index
    %54 = vector.load %arg5[%c0_21, %c143] : memref<16x896xbf16, #tpu.memory_space<vmem>>, vector<16x640xbf16>
    %55 = tpu.concatenate %52, %53, %54 in 0 : vector<16x640xbf16>, vector<16x640xbf16>, vector<16x640xbf16> -> vector<48x640xbf16>
    %56 = vector.broadcast %37 : vector<1x640xbf16> to vector<48x640xbf16>
    %57 = arith.mulf %55, %56 : vector<48x640xbf16>
    %c0_22 = arith.constant 0 : index
    %c112 = arith.constant 112 : index
    %58 = vector.load %arg5[%c0_22, %c112] : memref<16x896xbf16, #tpu.memory_space<vmem>>, vector<16x640xbf16>
    %c0_23 = arith.constant 0 : index
    %c128_24 = arith.constant 128 : index
    %59 = vector.load %arg5[%c0_23, %c128_24] : memref<16x896xbf16, #tpu.memory_space<vmem>>, vector<16x640xbf16>
    %c0_25 = arith.constant 0 : index
    %c144 = arith.constant 144 : index
    %60 = vector.load %arg5[%c0_25, %c144] : memref<16x896xbf16, #tpu.memory_space<vmem>>, vector<16x640xbf16>
    %61 = tpu.concatenate %58, %59, %60 in 0 : vector<16x640xbf16>, vector<16x640xbf16>, vector<16x640xbf16> -> vector<48x640xbf16>
    %c0_26 = arith.constant 0 : index
    %c113 = arith.constant 113 : index
    %62 = vector.load %arg5[%c0_26, %c113] : memref<16x896xbf16, #tpu.memory_space<vmem>>, vector<16x640xbf16>
    %c0_27 = arith.constant 0 : index
    %c129 = arith.constant 129 : index
    %63 = vector.load %arg5[%c0_27, %c129] : memref<16x896xbf16, #tpu.memory_space<vmem>>, vector<16x640xbf16>
    %c0_28 = arith.constant 0 : index
    %c145 = arith.constant 145 : index
    %64 = vector.load %arg5[%c0_28, %c145] : memref<16x896xbf16, #tpu.memory_space<vmem>>, vector<16x640xbf16>
    %65 = tpu.concatenate %62, %63, %64 in 0 : vector<16x640xbf16>, vector<16x640xbf16>, vector<16x640xbf16> -> vector<48x640xbf16>
    %66 = vector.broadcast %42 : vector<1x640xbf16> to vector<48x640xbf16>
    %67 = arith.mulf %65, %66 : vector<48x640xbf16>
    %68 = tpu.concatenate %57, %61, %67 in 0 : vector<48x640xbf16>, vector<48x640xbf16>, vector<48x640xbf16> -> vector<144x640xbf16>
    %cst_29 = arith.constant dense<0.000000e+00> : vector<16x640xf32>
    %69 = tpu.matmul %51, %68, %cst_29 {dimension_numbers = #tpu.dot_dimension_numbers<[1], [0], [0], [1], [0, 0, 1, 1], [], []>} : vector<16x144xbf16>, vector<144x640xbf16>, vector<16x640xf32> -> vector<16x640xf32>
    %cst_30 = arith.constant 0.000000e+00 : bf16
    %70 = vector.broadcast %cst_30 : bf16 to vector<16x896xbf16>
    %c0_31 = arith.constant 0 : index
    %c0_32 = arith.constant 0 : index
    %71 = vector.load %arg6[%c0_31, %c0_32] : memref<16x896xbf16, #tpu.memory_space<vmem>>, vector<16x896xbf16>
    tpu.vector_store %arg6[%c0_31, %c0_32], %70 {strides = array<i32>} : memref<16x896xbf16, #tpu.memory_space<vmem>>, vector<16x896xbf16>,
    %72 = vector.extract_strided_slice %69 {offsets = [0, 0], sizes = [16, 256], strides = [1, 1]} : vector<16x640xf32> to vector<16x256xf32>
    %cst_33 = arith.constant dense<0.000000e+00> : vector<16xf32>
    %73 = vector.multi_reduction <add>, %72, %cst_33 [1] : vector<16x256xf32> to vector<16xf32>
    %74 = vector.shape_cast %73 : vector<16xf32> to vector<16x1xf32>
    %cst_34 = arith.constant 2.560000e+02 : f32
    %75 = vector.broadcast %cst_34 : f32 to vector<16x1xf32>
    %76 = arith.divf %74, %75 : vector<16x1xf32>
    %77 = vector.broadcast %76 : vector<16x1xf32> to vector<16x256xf32>
    %78 = arith.subf %72, %77 : vector<16x256xf32>
    %79 = arith.mulf %78, %78 : vector<16x256xf32>
    %cst_35 = arith.constant dense<0.000000e+00> : vector<16xf32>
    %80 = vector.multi_reduction <add>, %79, %cst_35 [1] : vector<16x256xf32> to vector<16xf32>
    %81 = vector.shape_cast %80 : vector<16xf32> to vector<16x1xf32>
    %cst_36 = arith.constant 2.560000e+02 : f32
    %82 = vector.broadcast %cst_36 : f32 to vector<16x1xf32>
    %83 = arith.divf %81, %82 : vector<16x1xf32>
    %cst_37 = arith.constant 9.99999974E-6 : f32
    %84 = vector.broadcast %cst_37 : f32 to vector<16x1xf32>
    %85 = arith.addf %83, %84 : vector<16x1xf32>
    %86 = math.rsqrt %85 : vector<16x1xf32>
    %87 = vector.broadcast %86 : vector<16x1xf32> to vector<16x256xf32>
    %88 = arith.mulf %78, %87 : vector<16x256xf32>
    %cst_38 = arith.constant 0.00999999977 : f32
    %89 = vector.broadcast %cst_38 : f32 to vector<16x256xf32>
    %90 = arith.mulf %89, %88 : vector<16x256xf32>
    %91 = arith.maximumf %88, %90 : vector<16x256xf32>
    %92 = arith.truncf %91 : vector<16x256xf32> to vector<16x256xbf16>
    %c0_39 = arith.constant 0 : index
    %c128_40 = arith.constant 128 : index
    %93 = vector.load %arg6[%c0_39, %c128_40] : memref<16x896xbf16, #tpu.memory_space<vmem>>, vector<16x256xbf16>
    tpu.vector_store %arg6[%c0_39, %c128_40], %92 {strides = array<i32>} : memref<16x896xbf16, #tpu.memory_space<vmem>>, vector<16x256xbf16>,
    %94 = vector.extract_strided_slice %69 {offsets = [0, 384], sizes = [16, 256], strides = [1, 1]} : vector<16x640xf32> to vector<16x256xf32>
    %cst_41 = arith.constant dense<0.000000e+00> : vector<16xf32>
    %95 = vector.multi_reduction <add>, %94, %cst_41 [1] : vector<16x256xf32> to vector<16xf32>
    %96 = vector.shape_cast %95 : vector<16xf32> to vector<16x1xf32>
    %cst_42 = arith.constant 2.560000e+02 : f32
    %97 = vector.broadcast %cst_42 : f32 to vector<16x1xf32>
    %98 = arith.divf %96, %97 : vector<16x1xf32>
    %99 = vector.broadcast %98 : vector<16x1xf32> to vector<16x256xf32>
    %100 = arith.subf %94, %99 : vector<16x256xf32>
    %101 = arith.mulf %100, %100 : vector<16x256xf32>
    %cst_43 = arith.constant dense<0.000000e+00> : vector<16xf32>
    %102 = vector.multi_reduction <add>, %101, %cst_43 [1] : vector<16x256xf32> to vector<16xf32>
    %103 = vector.shape_cast %102 : vector<16xf32> to vector<16x1xf32>
    %cst_44 = arith.constant 2.560000e+02 : f32
    %104 = vector.broadcast %cst_44 : f32 to vector<16x1xf32>
    %105 = arith.divf %103, %104 : vector<16x1xf32>
    %cst_45 = arith.constant 9.99999974E-6 : f32
    %106 = vector.broadcast %cst_45 : f32 to vector<16x1xf32>
    %107 = arith.addf %105, %106 : vector<16x1xf32>
    %108 = math.rsqrt %107 : vector<16x1xf32>
    %109 = vector.broadcast %108 : vector<16x1xf32> to vector<16x256xf32>
    %110 = arith.mulf %100, %109 : vector<16x256xf32>
    %cst_46 = arith.constant 0.00999999977 : f32
    %111 = vector.broadcast %cst_46 : f32 to vector<16x256xf32>
    %112 = arith.mulf %111, %110 : vector<16x256xf32>
    %113 = arith.maximumf %110, %112 : vector<16x256xf32>
    %114 = arith.truncf %113 : vector<16x256xf32> to vector<16x256xbf16>
    %c0_47 = arith.constant 0 : index
    %c512_48 = arith.constant 512 : index
    %115 = vector.load %arg6[%c0_47, %c512_48] : memref<16x896xbf16, #tpu.memory_space<vmem>>, vector<16x256xbf16>
    tpu.vector_store %arg6[%c0_47, %c512_48], %114 {strides = array<i32>} : memref<16x896xbf16, #tpu.memory_space<vmem>>, vector<16x256xbf16>,
    %c0_49 = arith.constant 0 : index
    %c0_50 = arith.constant 0 : index
    %116 = vector.load %arg3[%c0_49, %c0_50] : memref<16x144xbf16, #tpu.memory_space<vmem>>, vector<16x144xbf16>
    %c0_51 = arith.constant 0 : index
    %c111_52 = arith.constant 111 : index
    %117 = vector.load %arg6[%c0_51, %c111_52] : memref<16x896xbf16, #tpu.memory_space<vmem>>, vector<16x640xbf16>
    %c0_53 = arith.constant 0 : index
    %c127_54 = arith.constant 127 : index
    %118 = vector.load %arg6[%c0_53, %c127_54] : memref<16x896xbf16, #tpu.memory_space<vmem>>, vector<16x640xbf16>
    %c0_55 = arith.constant 0 : index
    %c143_56 = arith.constant 143 : index
    %119 = vector.load %arg6[%c0_55, %c143_56] : memref<16x896xbf16, #tpu.memory_space<vmem>>, vector<16x640xbf16>
    %120 = tpu.concatenate %117, %118, %119 in 0 : vector<16x640xbf16>, vector<16x640xbf16>, vector<16x640xbf16> -> vector<48x640xbf16>
    %121 = vector.broadcast %37 : vector<1x640xbf16> to vector<48x640xbf16>
    %122 = arith.mulf %120, %121 : vector<48x640xbf16>
    %c0_57 = arith.constant 0 : index
    %c112_58 = arith.constant 112 : index
    %123 = vector.load %arg6[%c0_57, %c112_58] : memref<16x896xbf16, #tpu.memory_space<vmem>>, vector<16x640xbf16>
    %c0_59 = arith.constant 0 : index
    %c128_60 = arith.constant 128 : index
    %124 = vector.load %arg6[%c0_59, %c128_60] : memref<16x896xbf16, #tpu.memory_space<vmem>>, vector<16x640xbf16>
    %c0_61 = arith.constant 0 : index
    %c144_62 = arith.constant 144 : index
    %125 = vector.load %arg6[%c0_61, %c144_62] : memref<16x896xbf16, #tpu.memory_space<vmem>>, vector<16x640xbf16>
    %126 = tpu.concatenate %123, %124, %125 in 0 : vector<16x640xbf16>, vector<16x640xbf16>, vector<16x640xbf16> -> vector<48x640xbf16>
    %c0_63 = arith.constant 0 : index
    %c113_64 = arith.constant 113 : index
    %127 = vector.load %arg6[%c0_63, %c113_64] : memref<16x896xbf16, #tpu.memory_space<vmem>>, vector<16x640xbf16>
    %c0_65 = arith.constant 0 : index
    %c129_66 = arith.constant 129 : index
    %128 = vector.load %arg6[%c0_65, %c129_66] : memref<16x896xbf16, #tpu.memory_space<vmem>>, vector<16x640xbf16>
    %c0_67 = arith.constant 0 : index
    %c145_68 = arith.constant 145 : index
    %129 = vector.load %arg6[%c0_67, %c145_68] : memref<16x896xbf16, #tpu.memory_space<vmem>>, vector<16x640xbf16>
    %130 = tpu.concatenate %127, %128, %129 in 0 : vector<16x640xbf16>, vector<16x640xbf16>, vector<16x640xbf16> -> vector<48x640xbf16>
    %131 = vector.broadcast %42 : vector<1x640xbf16> to vector<48x640xbf16>
    %132 = arith.mulf %130, %131 : vector<48x640xbf16>
    %133 = tpu.concatenate %122, %126, %132 in 0 : vector<48x640xbf16>, vector<48x640xbf16>, vector<48x640xbf16> -> vector<144x640xbf16>
    %cst_69 = arith.constant dense<0.000000e+00> : vector<16x640xf32>
    %134 = tpu.matmul %116, %133, %cst_69 {dimension_numbers = #tpu.dot_dimension_numbers<[1], [0], [0], [1], [0, 0, 1, 1], [], []>} : vector<16x144xbf16>, vector<144x640xbf16>, vector<16x640xf32> -> vector<16x640xf32>
    %135 = vector.extract_strided_slice %134 {offsets = [0, 0], sizes = [16, 256], strides = [1, 1]} : vector<16x640xf32> to vector<16x256xf32>
    %cst_70 = arith.constant dense<0.000000e+00> : vector<16xf32>
    %136 = vector.multi_reduction <add>, %135, %cst_70 [1] : vector<16x256xf32> to vector<16xf32>
    %137 = vector.shape_cast %136 : vector<16xf32> to vector<16x1xf32>
    %cst_71 = arith.constant 2.560000e+02 : f32
    %138 = vector.broadcast %cst_71 : f32 to vector<16x1xf32>
    %139 = arith.divf %137, %138 : vector<16x1xf32>
    %140 = vector.broadcast %139 : vector<16x1xf32> to vector<16x256xf32>
    %141 = arith.subf %135, %140 : vector<16x256xf32>
    %142 = arith.mulf %141, %141 : vector<16x256xf32>
    %cst_72 = arith.constant dense<0.000000e+00> : vector<16xf32>
    %143 = vector.multi_reduction <add>, %142, %cst_72 [1] : vector<16x256xf32> to vector<16xf32>
    %144 = vector.shape_cast %143 : vector<16xf32> to vector<16x1xf32>
    %cst_73 = arith.constant 2.560000e+02 : f32
    %145 = vector.broadcast %cst_73 : f32 to vector<16x1xf32>
    %146 = arith.divf %144, %145 : vector<16x1xf32>
    %cst_74 = arith.constant 9.99999974E-6 : f32
    %147 = vector.broadcast %cst_74 : f32 to vector<16x1xf32>
    %148 = arith.addf %146, %147 : vector<16x1xf32>
    %149 = math.rsqrt %148 : vector<16x1xf32>
    %150 = vector.broadcast %149 : vector<16x1xf32> to vector<16x256xf32>
    %151 = arith.mulf %141, %150 : vector<16x256xf32>
    %cst_75 = arith.constant 0.00999999977 : f32
    %152 = vector.broadcast %cst_75 : f32 to vector<16x256xf32>
    %153 = arith.mulf %152, %151 : vector<16x256xf32>
    %154 = arith.maximumf %151, %153 : vector<16x256xf32>
    %c0_76 = arith.constant 0 : index
    %c0_77 = arith.constant 0 : index
    %c0_78 = arith.constant 0 : index
    %155 = vector.load %arg4[%c0_76, %c0_77, %c0_78] : memref<2x16x256xf32, #tpu.memory_space<vmem>>, vector<1x16x256xf32>
    %156 = vector.shape_cast %155 : vector<1x16x256xf32> to vector<16x256xf32>
    %157 = vector.shape_cast %154 : vector<16x256xf32> to vector<1x16x256xf32>
    tpu.vector_store %arg4[%c0_76, %c0_77, %c0_78], %157 {strides = array<i32>} : memref<2x16x256xf32, #tpu.memory_space<vmem>>, vector<1x16x256xf32>,
    %158 = vector.extract_strided_slice %134 {offsets = [0, 384], sizes = [16, 256], strides = [1, 1]} : vector<16x640xf32> to vector<16x256xf32>
    %cst_79 = arith.constant dense<0.000000e+00> : vector<16xf32>
    %159 = vector.multi_reduction <add>, %158, %cst_79 [1] : vector<16x256xf32> to vector<16xf32>
    %160 = vector.shape_cast %159 : vector<16xf32> to vector<16x1xf32>
    %cst_80 = arith.constant 2.560000e+02 : f32
    %161 = vector.broadcast %cst_80 : f32 to vector<16x1xf32>
    %162 = arith.divf %160, %161 : vector<16x1xf32>
    %163 = vector.broadcast %162 : vector<16x1xf32> to vector<16x256xf32>
    %164 = arith.subf %158, %163 : vector<16x256xf32>
    %165 = arith.mulf %164, %164 : vector<16x256xf32>
    %cst_81 = arith.constant dense<0.000000e+00> : vector<16xf32>
    %166 = vector.multi_reduction <add>, %165, %cst_81 [1] : vector<16x256xf32> to vector<16xf32>
    %167 = vector.shape_cast %166 : vector<16xf32> to vector<16x1xf32>
    %cst_82 = arith.constant 2.560000e+02 : f32
    %168 = vector.broadcast %cst_82 : f32 to vector<16x1xf32>
    %169 = arith.divf %167, %168 : vector<16x1xf32>
    %cst_83 = arith.constant 9.99999974E-6 : f32
    %170 = vector.broadcast %cst_83 : f32 to vector<16x1xf32>
    %171 = arith.addf %169, %170 : vector<16x1xf32>
    %172 = math.rsqrt %171 : vector<16x1xf32>
    %173 = vector.broadcast %172 : vector<16x1xf32> to vector<16x256xf32>
    %174 = arith.mulf %164, %173 : vector<16x256xf32>
    %cst_84 = arith.constant 0.00999999977 : f32
    %175 = vector.broadcast %cst_84 : f32 to vector<16x256xf32>
    %176 = arith.mulf %175, %174 : vector<16x256xf32>
    %177 = arith.maximumf %174, %176 : vector<16x256xf32>
    %c1_85 = arith.constant 1 : index
    %c0_86 = arith.constant 0 : index
    %c0_87 = arith.constant 0 : index
    %178 = vector.load %arg4[%c1_85, %c0_86, %c0_87] : memref<2x16x256xf32, #tpu.memory_space<vmem>>, vector<1x16x256xf32>
    %179 = vector.shape_cast %178 : vector<1x16x256xf32> to vector<16x256xf32>
    %180 = vector.shape_cast %177 : vector<16x256xf32> to vector<1x16x256xf32>
    tpu.vector_store %arg4[%c1_85, %c0_86, %c0_87], %180 {strides = array<i32>} : memref<2x16x256xf32, #tpu.memory_space<vmem>>, vector<1x16x256xf32>,
    return
  }
  func.func @transform_0(%arg0: i32) -> (i32, i32, i32) {
    %c0_i32 = arith.constant 0 : i32
    %c0_i32_0 = arith.constant 0 : i32
    %c0_i32_1 = arith.constant 0 : i32
    return %arg0, %c0_i32, %c0_i32_0 : i32, i32, i32
  }
  func.func @transform_1(%arg0: i32) -> (i32, i32) {
    %c0_i32 = arith.constant 0 : i32
    %c0_i32_0 = arith.constant 0 : i32
    %c0_i32_1 = arith.constant 0 : i32
    return %c0_i32, %c0_i32_0 : i32, i32
  }
  func.func @transform_2(%arg0: i32) -> (i32, i32) {
    %c0_i32 = arith.constant 0 : i32
    %c0_i32_0 = arith.constant 0 : i32
    %c0_i32_1 = arith.constant 0 : i32
    return %c0_i32, %c0_i32_0 : i32, i32
  }
  func.func @transform_3(%arg0: i32) -> (i32, i32, i32) {
    %c0_i32 = arith.constant 0 : i32
    %c0_i32_0 = arith.constant 0 : i32
    %c0_i32_1 = arith.constant 0 : i32
    return %arg0, %c0_i32, %c0_i32_0 : i32, i32, i32
  }
}

module attributes {stable_mosaic.version = 11 : i64} {
  func.func @kernel(%arg0: i32, %arg1: memref<2x4x256xbf16, #tpu.memory_space<vmem>>, %arg2: memref<16x144xbf16, #tpu.memory_space<vmem>>, %arg3: memref<16x144xbf16, #tpu.memory_space<vmem>>, %arg4: memref<2x16x256xf32, #tpu.memory_space<vmem>>, %arg5: memref<16x896xbf16, #tpu.memory_space<vmem>>, %arg6: memref<16x896xbf16, #tpu.memory_space<vmem>>) attributes {dimension_semantics = [#tpu.dimension_semantics<parallel>], iteration_bounds = array<i64: 1>, scalar_prefetch = 0 : i64, scratch_operands = 2 : i64, tpu.core_type = #tpu.core_type<tc>, window_params = [{transform_indices = @transform_0, window_bounds = array<i64: 2, 4, 256>}, {pipeline_mode = #tpu.pipeline_mode<synchronous>, transform_indices = @transform_1, window_bounds = array<i64: 16, 144>}, {pipeline_mode = #tpu.pipeline_mode<synchronous>, transform_indices = @transform_2, window_bounds = array<i64: 16, 144>}, {transform_indices = @transform_3, window_bounds = array<i64: 2, 16, 256>}]} {
    %0 = tpu.iota {dimensions = array<i32: 1>} : vector<1x640xi32>
    %c384_i32 = arith.constant 384 : i32
    %c0_i32 = arith.constant 0 : i32
    %1 = arith.cmpi eq, %c384_i32, %c0_i32 : i32
    %c1_i32 = arith.constant 1 : i32
    %2 = arith.select %1, %c1_i32, %c384_i32 : i32
    %3 = vector.broadcast %2 : i32 to vector<1x640xi32>
    %4 = arith.remsi %0, %3 : vector<1x640xi32>
    %c0_i32_0 = arith.constant 0 : i32
    %5 = vector.broadcast %c0_i32_0 : i32 to vector<1x640xi32>
    %6 = arith.cmpi ne, %4, %5 : vector<1x640xi32>
    %c0_i32_1 = arith.constant 0 : i32
    %7 = vector.broadcast %c0_i32_1 : i32 to vector<1x640xi32>
    %8 = arith.cmpi slt, %4, %7 : vector<1x640xi32>
    %c0_i32_2 = arith.constant 0 : i32
    %9 = arith.cmpi slt, %2, %c0_i32_2 : i32
    %10 = vector.broadcast %9 : i1 to vector<1x640xi1>
    %11 = vector.broadcast %10 : vector<1x640xi1> to vector<1x640xi1>
    %12 = arith.xori %8, %11 : vector<1x640xi1>
    %13 = arith.andi %12, %6 : vector<1x640xi1>
    %14 = vector.broadcast %2 : i32 to vector<1x640xi32>
    %15 = arith.addi %4, %14 : vector<1x640xi32>
    %16 = arith.select %13, %15, %4 : vector<1x640xi1>, vector<1x640xi32>
    %c16_i32 = arith.constant 16 : i32
    %c0_i32_3 = arith.constant 0 : i32
    %17 = arith.cmpi eq, %c16_i32, %c0_i32_3 : i32
    %c1_i32_4 = arith.constant 1 : i32
    %18 = arith.select %17, %c1_i32_4, %c16_i32 : i32
    %19 = vector.broadcast %18 : i32 to vector<1x640xi32>
    %20 = arith.remsi %16, %19 : vector<1x640xi32>
    %c0_i32_5 = arith.constant 0 : i32
    %21 = vector.broadcast %c0_i32_5 : i32 to vector<1x640xi32>
    %22 = arith.cmpi ne, %20, %21 : vector<1x640xi32>
    %c0_i32_6 = arith.constant 0 : i32
    %23 = vector.broadcast %c0_i32_6 : i32 to vector<1x640xi32>
    %24 = arith.cmpi slt, %20, %23 : vector<1x640xi32>
    %c0_i32_7 = arith.constant 0 : i32
    %25 = arith.cmpi slt, %18, %c0_i32_7 : i32
    %26 = vector.broadcast %25 : i1 to vector<1x640xi1>
    %27 = vector.broadcast %26 : vector<1x640xi1> to vector<1x640xi1>
    %28 = arith.xori %24, %27 : vector<1x640xi1>
    %29 = arith.andi %28, %22 : vector<1x640xi1>
    %30 = vector.broadcast %18 : i32 to vector<1x640xi32>
    %31 = arith.addi %20, %30 : vector<1x640xi32>
    %32 = arith.select %29, %31, %20 : vector<1x640xi1>, vector<1x640xi32>
    %c0_i32_8 = arith.constant 0 : i32
    %33 = vector.broadcast %c0_i32_8 : i32 to vector<1x640xi32>
    %34 = arith.cmpi sgt, %32, %33 : vector<1x640xi32>
    %35 = arith.extui %34 : vector<1x640xi1> to vector<1x640xi32>
    %36 = arith.sitofp %35 : vector<1x640xi32> to vector<1x640xf32>
    %37 = arith.truncf %36 : vector<1x640xf32> to vector<1x640xbf16>
    %c15_i32 = arith.constant 15 : i32
    %38 = vector.broadcast %c15_i32 : i32 to vector<1x640xi32>
    %39 = arith.cmpi slt, %32, %38 : vector<1x640xi32>
    %40 = arith.extui %39 : vector<1x640xi1> to vector<1x640xi32>
    %41 = arith.sitofp %40 : vector<1x640xi32> to vector<1x640xf32>
    %42 = arith.truncf %41 : vector<1x640xf32> to vector<1x640xbf16>
    %cst = arith.constant 0.000000e+00 : bf16
    %43 = vector.broadcast %cst : bf16 to vector<16x896xbf16>
    %c0 = arith.constant 0 : index
    %c0_9 = arith.constant 0 : index
    %44 = vector.load %arg5[%c0, %c0_9] : memref<16x896xbf16, #tpu.memory_space<vmem>>, vector<16x896xbf16>
    tpu.vector_store %arg5[%c0, %c0_9], %43 {strides = array<i32>} : memref<16x896xbf16, #tpu.memory_space<vmem>>, vector<16x896xbf16>,
    %c0_10 = arith.constant 0 : index
    %c0_11 = arith.constant 0 : index
    %c0_12 = arith.constant 0 : index
    %45 = vector.load %arg1[%c0_10, %c0_11, %c0_12] : memref<2x4x256xbf16, #tpu.memory_space<vmem>>, vector<1x4x256xbf16>
    %46 = vector.shape_cast %45 : vector<1x4x256xbf16> to vector<4x256xbf16>
    %c0_13 = arith.constant 0 : index
    %c128 = arith.constant 128 : index
    %47 = vector.load %arg5[%c0_13, %c128] : memref<16x896xbf16, #tpu.memory_space<vmem>>, vector<4x256xbf16>
    tpu.vector_store %arg5[%c0_13, %c128], %46 {strides = array<i32>} : memref<16x896xbf16, #tpu.memory_space<vmem>>, vector<4x256xbf16>,
    %c1 = arith.constant 1 : index
    %c0_14 = arith.constant 0 : index
    %c0_15 = arith.constant 0 : index
    %48 = vector.load %arg1[%c1, %c0_14, %c0_15] : memref<2x4x256xbf16, #tpu.memory_space<vmem>>, vector<1x4x256xbf16>
    %49 = vector.shape_cast %48 : vector<1x4x256xbf16> to vector<4x256xbf16>
    %c0_16 = arith.constant 0 : index
    %c512 = arith.constant 512 : index
    %50 = vector.load %arg5[%c0_16, %c512] : memref<16x896xbf16, #tpu.memory_space<vmem>>, vector<4x256xbf16>
    tpu.vector_store %arg5[%c0_16, %c512], %49 {strides = array<i32>} : memref<16x896xbf16, #tpu.memory_space<vmem>>, vector<4x256xbf16>,
    %c0_17 = arith.constant 0 : index
    %c0_18 = arith.constant 0 : index
    %51 = vector.load %arg2[%c0_17, %c0_18] : memref<16x144xbf16, #tpu.memory_space<vmem>>, vector<16x144xbf16>
    %c0_19 = arith.constant 0 : index
    %c111 = arith.constant 111 : index
    %52 = vector.load %arg5[%c0_19, %c111] : memref<16x896xbf16, #tpu.memory_space<vmem>>, vector<16x640xbf16>
    %c0_20 = arith.constant 0 : index
    %c127 = arith.constant 127 : index
    %53 = vector.load %arg5[%c0_20, %c127] : memref<16x896xbf16, #tpu.memory_space<vmem>>, vector<16x640xbf16>
    %c0_21 = arith.constant 0 : index
    %c143 = arith.constant 143 : index
    %54 = vector.load %arg5[%c0_21, %c143] : memref<16x896xbf16, #tpu.memory_space<vmem>>, vector<16x640xbf16>
    %55 = tpu.concatenate %52, %53, %54 in 0 : vector<16x640xbf16>, vector<16x640xbf16>, vector<16x640xbf16> -> vector<48x640xbf16>
    %56 = vector.broadcast %37 : vector<1x640xbf16> to vector<48x640xbf16>
    %57 = arith.mulf %55, %56 : vector<48x640xbf16>
    %c0_22 = arith.constant 0 : index
    %c112 = arith.constant 112 : index
    %58 = vector.load %arg5[%c0_22, %c112] : memref<16x896xbf16, #tpu.memory_space<vmem>>, vector<16x640xbf16>
    %c0_23 = arith.constant 0 : index
    %c128_24 = arith.constant 128 : index
    %59 = vector.load %arg5[%c0_23, %c128_24] : memref<16x896xbf16, #tpu.memory_space<vmem>>, vector<16x640xbf16>
    %c0_25 = arith.constant 0 : index
    %c144 = arith.constant 144 : index
    %60 = vector.load %arg5[%c0_25, %c144] : memref<16x896xbf16, #tpu.memory_space<vmem>>, vector<16x640xbf16>
    %61 = tpu.concatenate %58, %59, %60 in 0 : vector<16x640xbf16>, vector<16x640xbf16>, vector<16x640xbf16> -> vector<48x640xbf16>
    %c0_26 = arith.constant 0 : index
    %c113 = arith.constant 113 : index
    %62 = vector.load %arg5[%c0_26, %c113] : memref<16x896xbf16, #tpu.memory_space<vmem>>, vector<16x640xbf16>
    %c0_27 = arith.constant 0 : index
    %c129 = arith.constant 129 : index
    %63 = vector.load %arg5[%c0_27, %c129] : memref<16x896xbf16, #tpu.memory_space<vmem>>, vector<16x640xbf16>
    %c0_28 = arith.constant 0 : index
    %c145 = arith.constant 145 : index
    %64 = vector.load %arg5[%c0_28, %c145] : memref<16x896xbf16, #tpu.memory_space<vmem>>, vector<16x640xbf16>
    %65 = tpu.concatenate %62, %63, %64 in 0 : vector<16x640xbf16>, vector<16x640xbf16>, vector<16x640xbf16> -> vector<48x640xbf16>
    %66 = vector.broadcast %42 : vector<1x640xbf16> to vector<48x640xbf16>
    %67 = arith.mulf %65, %66 : vector<48x640xbf16>
    %68 = tpu.concatenate %57, %61, %67 in 0 : vector<48x640xbf16>, vector<48x640xbf16>, vector<48x640xbf16> -> vector<144x640xbf16>
    %cst_29 = arith.constant dense<0.000000e+00> : vector<16x640xf32>
    %69 = tpu.matmul %51, %68, %cst_29 {dimension_numbers = #tpu.dot_dimension_numbers<[1], [0], [0], [1], [0, 0, 1, 1], [], []>} : vector<16x144xbf16>, vector<144x640xbf16>, vector<16x640xf32> -> vector<16x640xf32>
    %cst_30 = arith.constant 0.000000e+00 : bf16
    %70 = vector.broadcast %cst_30 : bf16 to vector<16x896xbf16>
    %c0_31 = arith.constant 0 : index
    %c0_32 = arith.constant 0 : index
    %71 = vector.load %arg6[%c0_31, %c0_32] : memref<16x896xbf16, #tpu.memory_space<vmem>>, vector<16x896xbf16>
    tpu.vector_store %arg6[%c0_31, %c0_32], %70 {strides = array<i32>} : memref<16x896xbf16, #tpu.memory_space<vmem>>, vector<16x896xbf16>,
    %72 = vector.extract_strided_slice %69 {offsets = [0, 0], sizes = [16, 256], strides = [1, 1]} : vector<16x640xf32> to vector<16x256xf32>
    %cst_33 = arith.constant dense<0.000000e+00> : vector<16xf32>
    %73 = vector.multi_reduction <add>, %72, %cst_33 [1] : vector<16x256xf32> to vector<16xf32>
    %74 = vector.shape_cast %73 : vector<16xf32> to vector<16x1xf32>
    %cst_34 = arith.constant 2.560000e+02 : f32
    %75 = vector.broadcast %cst_34 : f32 to vector<16x1xf32>
    %76 = arith.divf %74, %75 : vector<16x1xf32>
    %77 = vector.broadcast %76 : vector<16x1xf32> to vector<16x256xf32>
    %78 = arith.subf %72, %77 : vector<16x256xf32>
    %79 = arith.mulf %78, %78 : vector<16x256xf32>
    %cst_35 = arith.constant dense<0.000000e+00> : vector<16xf32>
    %80 = vector.multi_reduction <add>, %79, %cst_35 [1] : vector<16x256xf32> to vector<16xf32>
    %81 = vector.shape_cast %80 : vector<16xf32> to vector<16x1xf32>
    %cst_36 = arith.constant 2.560000e+02 : f32
    %82 = vector.broadcast %cst_36 : f32 to vector<16x1xf32>
    %83 = arith.divf %81, %82 : vector<16x1xf32>
    %cst_37 = arith.constant 9.99999974E-6 : f32
    %84 = vector.broadcast %cst_37 : f32 to vector<16x1xf32>
    %85 = arith.addf %83, %84 : vector<16x1xf32>
    %86 = math.rsqrt %85 : vector<16x1xf32>
    %87 = vector.broadcast %86 : vector<16x1xf32> to vector<16x256xf32>
    %88 = arith.mulf %78, %87 : vector<16x256xf32>
    %cst_38 = arith.constant 0.00999999977 : f32
    %89 = vector.broadcast %cst_38 : f32 to vector<16x256xf32>
    %90 = arith.mulf %89, %88 : vector<16x256xf32>
    %91 = arith.maximumf %88, %90 : vector<16x256xf32>
    %92 = arith.truncf %91 : vector<16x256xf32> to vector<16x256xbf16>
    %c0_39 = arith.constant 0 : index
    %c128_40 = arith.constant 128 : index
    %93 = vector.load %arg6[%c0_39, %c128_40] : memref<16x896xbf16, #tpu.memory_space<vmem>>, vector<16x256xbf16>
    tpu.vector_store %arg6[%c0_39, %c128_40], %92 {strides = array<i32>} : memref<16x896xbf16, #tpu.memory_space<vmem>>, vector<16x256xbf16>,
    %94 = vector.extract_strided_slice %69 {offsets = [0, 384], sizes = [16, 256], strides = [1, 1]} : vector<16x640xf32> to vector<16x256xf32>
    %cst_41 = arith.constant dense<0.000000e+00> : vector<16xf32>
    %95 = vector.multi_reduction <add>, %94, %cst_41 [1] : vector<16x256xf32> to vector<16xf32>
    %96 = vector.shape_cast %95 : vector<16xf32> to vector<16x1xf32>
    %cst_42 = arith.constant 2.560000e+02 : f32
    %97 = vector.broadcast %cst_42 : f32 to vector<16x1xf32>
    %98 = arith.divf %96, %97 : vector<16x1xf32>
    %99 = vector.broadcast %98 : vector<16x1xf32> to vector<16x256xf32>
    %100 = arith.subf %94, %99 : vector<16x256xf32>
    %101 = arith.mulf %100, %100 : vector<16x256xf32>
    %cst_43 = arith.constant dense<0.000000e+00> : vector<16xf32>
    %102 = vector.multi_reduction <add>, %101, %cst_43 [1] : vector<16x256xf32> to vector<16xf32>
    %103 = vector.shape_cast %102 : vector<16xf32> to vector<16x1xf32>
    %cst_44 = arith.constant 2.560000e+02 : f32
    %104 = vector.broadcast %cst_44 : f32 to vector<16x1xf32>
    %105 = arith.divf %103, %104 : vector<16x1xf32>
    %cst_45 = arith.constant 9.99999974E-6 : f32
    %106 = vector.broadcast %cst_45 : f32 to vector<16x1xf32>
    %107 = arith.addf %105, %106 : vector<16x1xf32>
    %108 = math.rsqrt %107 : vector<16x1xf32>
    %109 = vector.broadcast %108 : vector<16x1xf32> to vector<16x256xf32>
    %110 = arith.mulf %100, %109 : vector<16x256xf32>
    %cst_46 = arith.constant 0.00999999977 : f32
    %111 = vector.broadcast %cst_46 : f32 to vector<16x256xf32>
    %112 = arith.mulf %111, %110 : vector<16x256xf32>
    %113 = arith.maximumf %110, %112 : vector<16x256xf32>
    %114 = arith.truncf %113 : vector<16x256xf32> to vector<16x256xbf16>
    %c0_47 = arith.constant 0 : index
    %c512_48 = arith.constant 512 : index
    %115 = vector.load %arg6[%c0_47, %c512_48] : memref<16x896xbf16, #tpu.memory_space<vmem>>, vector<16x256xbf16>
    tpu.vector_store %arg6[%c0_47, %c512_48], %114 {strides = array<i32>} : memref<16x896xbf16, #tpu.memory_space<vmem>>, vector<16x256xbf16>,
    %c0_49 = arith.constant 0 : index
    %c0_50 = arith.constant 0 : index
    %116 = vector.load %arg3[%c0_49, %c0_50] : memref<16x144xbf16, #tpu.memory_space<vmem>>, vector<16x144xbf16>
    %c0_51 = arith.constant 0 : index
    %c111_52 = arith.constant 111 : index
    %117 = vector.load %arg6[%c0_51, %c111_52] : memref<16x896xbf16, #tpu.memory_space<vmem>>, vector<16x640xbf16>
    %c0_53 = arith.constant 0 : index
    %c127_54 = arith.constant 127 : index
    %118 = vector.load %arg6[%c0_53, %c127_54] : memref<16x896xbf16, #tpu.memory_space<vmem>>, vector<16x640xbf16>
    %c0_55 = arith.constant 0 : index
    %c143_56 = arith.constant 143 : index
    %119 = vector.load %arg6[%c0_55, %c143_56] : memref<16x896xbf16, #tpu.memory_space<vmem>>, vector<16x640xbf16>
    %120 = tpu.concatenate %117, %118, %119 in 0 : vector<16x640xbf16>, vector<16x640xbf16>, vector<16x640xbf16> -> vector<48x640xbf16>
    %121 = vector.broadcast %37 : vector<1x640xbf16> to vector<48x640xbf16>
    %122 = arith.mulf %120, %121 : vector<48x640xbf16>
    %c0_57 = arith.constant 0 : index
    %c112_58 = arith.constant 112 : index
    %123 = vector.load %arg6[%c0_57, %c112_58] : memref<16x896xbf16, #tpu.memory_space<vmem>>, vector<16x640xbf16>
    %c0_59 = arith.constant 0 : index
    %c128_60 = arith.constant 128 : index
    %124 = vector.load %arg6[%c0_59, %c128_60] : memref<16x896xbf16, #tpu.memory_space<vmem>>, vector<16x640xbf16>
    %c0_61 = arith.constant 0 : index
    %c144_62 = arith.constant 144 : index
    %125 = vector.load %arg6[%c0_61, %c144_62] : memref<16x896xbf16, #tpu.memory_space<vmem>>, vector<16x640xbf16>
    %126 = tpu.concatenate %123, %124, %125 in 0 : vector<16x640xbf16>, vector<16x640xbf16>, vector<16x640xbf16> -> vector<48x640xbf16>
    %c0_63 = arith.constant 0 : index
    %c113_64 = arith.constant 113 : index
    %127 = vector.load %arg6[%c0_63, %c113_64] : memref<16x896xbf16, #tpu.memory_space<vmem>>, vector<16x640xbf16>
    %c0_65 = arith.constant 0 : index
    %c129_66 = arith.constant 129 : index
    %128 = vector.load %arg6[%c0_65, %c129_66] : memref<16x896xbf16, #tpu.memory_space<vmem>>, vector<16x640xbf16>
    %c0_67 = arith.constant 0 : index
    %c145_68 = arith.constant 145 : index
    %129 = vector.load %arg6[%c0_67, %c145_68] : memref<16x896xbf16, #tpu.memory_space<vmem>>, vector<16x640xbf16>
    %130 = tpu.concatenate %127, %128, %129 in 0 : vector<16x640xbf16>, vector<16x640xbf16>, vector<16x640xbf16> -> vector<48x640xbf16>
    %131 = vector.broadcast %42 : vector<1x640xbf16> to vector<48x640xbf16>
    %132 = arith.mulf %130, %131 : vector<48x640xbf16>
    %133 = tpu.concatenate %122, %126, %132 in 0 : vector<48x640xbf16>, vector<48x640xbf16>, vector<48x640xbf16> -> vector<144x640xbf16>
    %cst_69 = arith.constant dense<0.000000e+00> : vector<16x640xf32>
    %134 = tpu.matmul %116, %133, %cst_69 {dimension_numbers = #tpu.dot_dimension_numbers<[1], [0], [0], [1], [0, 0, 1, 1], [], []>} : vector<16x144xbf16>, vector<144x640xbf16>, vector<16x640xf32> -> vector<16x640xf32>
    %135 = vector.extract_strided_slice %134 {offsets = [0, 0], sizes = [16, 256], strides = [1, 1]} : vector<16x640xf32> to vector<16x256xf32>
    %cst_70 = arith.constant dense<0.000000e+00> : vector<16xf32>
    %136 = vector.multi_reduction <add>, %135, %cst_70 [1] : vector<16x256xf32> to vector<16xf32>
    %137 = vector.shape_cast %136 : vector<16xf32> to vector<16x1xf32>
    %cst_71 = arith.constant 2.560000e+02 : f32
    %138 = vector.broadcast %cst_71 : f32 to vector<16x1xf32>
    %139 = arith.divf %137, %138 : vector<16x1xf32>
    %140 = vector.broadcast %139 : vector<16x1xf32> to vector<16x256xf32>
    %141 = arith.subf %135, %140 : vector<16x256xf32>
    %142 = arith.mulf %141, %141 : vector<16x256xf32>
    %cst_72 = arith.constant dense<0.000000e+00> : vector<16xf32>
    %143 = vector.multi_reduction <add>, %142, %cst_72 [1] : vector<16x256xf32> to vector<16xf32>
    %144 = vector.shape_cast %143 : vector<16xf32> to vector<16x1xf32>
    %cst_73 = arith.constant 2.560000e+02 : f32
    %145 = vector.broadcast %cst_73 : f32 to vector<16x1xf32>
    %146 = arith.divf %144, %145 : vector<16x1xf32>
    %cst_74 = arith.constant 9.99999974E-6 : f32
    %147 = vector.broadcast %cst_74 : f32 to vector<16x1xf32>
    %148 = arith.addf %146, %147 : vector<16x1xf32>
    %149 = math.rsqrt %148 : vector<16x1xf32>
    %150 = vector.broadcast %149 : vector<16x1xf32> to vector<16x256xf32>
    %151 = arith.mulf %141, %150 : vector<16x256xf32>
    %cst_75 = arith.constant 0.00999999977 : f32
    %152 = vector.broadcast %cst_75 : f32 to vector<16x256xf32>
    %153 = arith.mulf %152, %151 : vector<16x256xf32>
    %154 = arith.maximumf %151, %153 : vector<16x256xf32>
    %c0_76 = arith.constant 0 : index
    %c0_77 = arith.constant 0 : index
    %c0_78 = arith.constant 0 : index
    %155 = vector.load %arg4[%c0_76, %c0_77, %c0_78] : memref<2x16x256xf32, #tpu.memory_space<vmem>>, vector<1x16x256xf32>
    %156 = vector.shape_cast %155 : vector<1x16x256xf32> to vector<16x256xf32>
    %157 = vector.shape_cast %154 : vector<16x256xf32> to vector<1x16x256xf32>
    tpu.vector_store %arg4[%c0_76, %c0_77, %c0_78], %157 {strides = array<i32>} : memref<2x16x256xf32, #tpu.memory_space<vmem>>, vector<1x16x256xf32>,
    %158 = vector.extract_strided_slice %134 {offsets = [0, 384], sizes = [16, 256], strides = [1, 1]} : vector<16x640xf32> to vector<16x256xf32>
    %cst_79 = arith.constant dense<0.000000e+00> : vector<16xf32>
    %159 = vector.multi_reduction <add>, %158, %cst_79 [1] : vector<16x256xf32> to vector<16xf32>
    %160 = vector.shape_cast %159 : vector<16xf32> to vector<16x1xf32>
    %cst_80 = arith.constant 2.560000e+02 : f32
    %161 = vector.broadcast %cst_80 : f32 to vector<16x1xf32>
    %162 = arith.divf %160, %161 : vector<16x1xf32>
    %163 = vector.broadcast %162 : vector<16x1xf32> to vector<16x256xf32>
    %164 = arith.subf %158, %163 : vector<16x256xf32>
    %165 = arith.mulf %164, %164 : vector<16x256xf32>
    %cst_81 = arith.constant dense<0.000000e+00> : vector<16xf32>
    %166 = vector.multi_reduction <add>, %165, %cst_81 [1] : vector<16x256xf32> to vector<16xf32>
    %167 = vector.shape_cast %166 : vector<16xf32> to vector<16x1xf32>
    %cst_82 = arith.constant 2.560000e+02 : f32
    %168 = vector.broadcast %cst_82 : f32 to vector<16x1xf32>
    %169 = arith.divf %167, %168 : vector<16x1xf32>
    %cst_83 = arith.constant 9.99999974E-6 : f32
    %170 = vector.broadcast %cst_83 : f32 to vector<16x1xf32>
    %171 = arith.addf %169, %170 : vector<16x1xf32>
    %172 = math.rsqrt %171 : vector<16x1xf32>
    %173 = vector.broadcast %172 : vector<16x1xf32> to vector<16x256xf32>
    %174 = arith.mulf %164, %173 : vector<16x256xf32>
    %cst_84 = arith.constant 0.00999999977 : f32
    %175 = vector.broadcast %cst_84 : f32 to vector<16x256xf32>
    %176 = arith.mulf %175, %174 : vector<16x256xf32>
    %177 = arith.maximumf %174, %176 : vector<16x256xf32>
    %c1_85 = arith.constant 1 : index
    %c0_86 = arith.constant 0 : index
    %c0_87 = arith.constant 0 : index
    %178 = vector.load %arg4[%c1_85, %c0_86, %c0_87] : memref<2x16x256xf32, #tpu.memory_space<vmem>>, vector<1x16x256xf32>
    %179 = vector.shape_cast %178 : vector<1x16x256xf32> to vector<16x256xf32>
    %180 = vector.shape_cast %177 : vector<16x256xf32> to vector<1x16x256xf32>
    tpu.vector_store %arg4[%c1_85, %c0_86, %c0_87], %180 {strides = array<i32>} : memref<2x16x256xf32, #tpu.memory_space<vmem>>, vector<1x16x256xf32>,
    return
  }
  func.func @transform_0(%arg0: i32) -> (i32, i32, i32) {
    %c0_i32 = arith.constant 0 : i32
    %c0_i32_0 = arith.constant 0 : i32
    %c0_i32_1 = arith.constant 0 : i32
    return %arg0, %c0_i32, %c0_i32_0 : i32, i32, i32
  }
  func.func @transform_1(%arg0: i32) -> (i32, i32) {
    %c0_i32 = arith.constant 0 : i32
    %c0_i32_0 = arith.constant 0 : i32
    %c0_i32_1 = arith.constant 0 : i32
    return %c0_i32, %c0_i32_0 : i32, i32
  }
  func.func @transform_2(%arg0: i32) -> (i32, i32) {
    %c0_i32 = arith.constant 0 : i32
    %c0_i32_0 = arith.constant 0 : i32
    %c0_i32_1 = arith.constant 0 : i32
    return %c0_i32, %c0_i32_0 : i32, i32
  }
  func.func @transform_3(%arg0: i32) -> (i32, i32, i32) {
    %c0_i32 = arith.constant 0 : i32
    %c0_i32_0 = arith.constant 0 : i32
    %c0_i32_1 = arith.constant 0 : i32
    return %arg0, %c0_i32, %c0_i32_0 : i32, i32, i32
  }
}

</mosaic_0001>

<llo_original>
// kernel: tpu_custom_call.1
$region0: #{tpu_custom_call.1}
  #allocation0 [shape = 'u32[]', space=smem, size = 0x4, offset = 0x4, fixed_abs, tag = 'smem constant byte address 0x4 - core index']
  #allocation1 [shape = 'u32[144,128]{1,0:T(1,128)}', space=vmem, size = 0x12000, scoped, tag = 'internal scratch']
  #allocation2 [shape = 'bf16[16,896]{1,0:T(16,128)(2,1)}', space=vmem, size = 0x7000, scoped, tag = 'scratch operand']
  #allocation3 [shape = 'bf16[16,896]{1,0:T(16,128)(2,1)}', space=vmem, size = 0x7000, scoped, tag = 'scratch operand']
  %s0 = inlined_call_operand.hbm [shape: bf16[2,4,256], index: 0, kind: input, shape index: {}]
  %s1 = inlined_call_operand.hbm [shape: bf16[16,144], index: 1, kind: input, shape index: {}]
  %s2 = inlined_call_operand.hbm [shape: bf16[16,144], index: 2, kind: input, shape index: {}]
  %s3 = inlined_call_operand.hbm [shape: f32[2,16,256], index: 3, kind: output, shape index: {}]
  %s4 = sld [smem:[#allocation0]]
  $region34: #{tpu_custom_call.1} parent=0
    _
  %s6 = ssub.s32 1, %s4
  %s7 = scalar_select 0, %s6, %s4
  $region1: #{tpu_custom_call.1} parent=0
    #allocation4 [shape = 'u8[4096]{0}', space=vmem, size = 0x1000, scoped, tag = 'input window, operand 0, single buffered']
    #allocation5 [shape = 's32[1]{0}', space=sflag, size = 0x4, scoped, tag = 'scoped memory for tpu_custom_call.1']
    #allocation6 [shape = 's32[1]{0}', space=sflag, size = 0x4, scoped, tag = 'scoped memory for tpu_custom_call.1']
    #allocation7 [shape = 'u8[8192]{0}', space=vmem, size = 0x2000, scoped, tag = 'input window, operand 1, single buffered']
    #allocation8 [shape = 's32[1]{0}', space=sflag, size = 0x4, scoped, tag = 'scoped memory for tpu_custom_call.1']
    #allocation9 [shape = 'u8[8192]{0}', space=vmem, size = 0x2000, scoped, tag = 'input window, operand 2, single buffered']
    #allocation10 [shape = 'u8[32768]{0}', space=vmem, size = 0x8000, scoped, tag = 'output window, operand 0, single buffered']
    %8 = vsyncpa [#allocation5], 0
    %9 = vsyncpa [#allocation8], 0
    %10 = vsyncpa [#allocation6], 0
    // Predicated region
    $region2: #{tpu_custom_call.1} parent=1 // pred_check
      _
    $region3: #{tpu_custom_call.1} parent=1 // pred_check_branch
      %12 = sbr.rel (0) target = $region5
    $region4: #{tpu_custom_call.1} parent=1 // pred_region
      %s14 = ssub.s32 128, 128
      %15 = vsyncadd [#allocation5], %s14
      %s16 = sshll.u32 [#allocation4], 4
      %s17 = int_to_ptr.vmem [resolvable:$true] %s16
      %22 = dma.hbm_to_vmem [thread:$0]  %s0, 128, %s17, [#allocation5], 64, 64, 4
    $region5: #{tpu_custom_call.1} parent=1 // pred_fallthru
      _
    // Predicated region
    $region6: #{tpu_custom_call.1} parent=1 // pred_check
      _
    $region7: #{tpu_custom_call.1} parent=1 // pred_check_branch
      %24 = sbr.rel (0) target = $region9
    $region8: #{tpu_custom_call.1} parent=1 // pred_region
      %s26 = ssub.s32 256, 256
      %27 = vsyncadd [#allocation8], %s26
      %s28 = sshll.u32 [#allocation7], 4
      %s29 = int_to_ptr.vmem [resolvable:$true] %s28
      %34 = dma.hbm_to_vmem [thread:$0]  %s1, 256, %s29, [#allocation8], 128, 128, 8
    $region9: #{tpu_custom_call.1} parent=1 // pred_fallthru
      _
    // Predicated region
    $region10: #{tpu_custom_call.1} parent=1 // pred_check
      _
    $region11: #{tpu_custom_call.1} parent=1 // pred_check_branch
      %36 = sbr.rel (0) target = $region13
    $region12: #{tpu_custom_call.1} parent=1 // pred_region
      %s38 = ssub.s32 256, 256
      %39 = vsyncadd [#allocation8], %s38
      %s40 = sshll.u32 [#allocation9], 4
      %s41 = int_to_ptr.vmem [resolvable:$true] %s40
      %46 = dma.hbm_to_vmem [thread:$0]  %s2, 256, %s41, [#allocation8], 128, 128, 8
    $region13: #{tpu_custom_call.1} parent=1 // pred_fallthru
      _
    // Predicated region
    $region14: #{tpu_custom_call.1} parent=1 // pred_check
      _
    $region15: #{tpu_custom_call.1} parent=1 // pred_check_branch
      %48 = sbr.rel (0) target = $region17
    $region16: #{tpu_custom_call.1} parent=1 // pred_region
      %49 = dma.done [#allocation5], 128
    $region17: #{tpu_custom_call.1} parent=1 // pred_fallthru
      _
    // Predicated region
    $region18: #{tpu_custom_call.1} parent=1 // pred_check
      _
    $region19: #{tpu_custom_call.1} parent=1 // pred_check_branch
      %51 = sbr.rel (0) target = $region21
    $region20: #{tpu_custom_call.1} parent=1 // pred_region
      %52 = dma.done [#allocation8], 256
    $region21: #{tpu_custom_call.1} parent=1 // pred_fallthru
      _
    // Predicated region
    $region22: #{tpu_custom_call.1} parent=1 // pred_check
      _
    $region23: #{tpu_custom_call.1} parent=1 // pred_check_branch
      %54 = sbr.rel (0) target = $region25
    $region24: #{tpu_custom_call.1} parent=1 // pred_region
      %55 = dma.done [#allocation8], 256
    $region25: #{tpu_custom_call.1} parent=1 // pred_fallthru
      _
    %v57 = vlaneseq
    %v58 = vand.u32 %v57, 127
    %v59 = vadd.s32 %v58, 128
    %v60 = vadd.s32 %v58, 256
    %v61 = vadd.s32 %v58, 384
    %v62 = vadd.s32 %v58, 512
    %vm63 = vcmp.lt.s32.totalorder %v58, 0
    %v64 = vsub.s32 0, %v58
    %v65 = vsel %vm63, %v64, %v58
    %v66 = vmul.u32.u64.compose %v65, 2863311531
    %v67 = vextract.low.u32 %v66
    %v68 = vextract.high.u32 %v66
    %v69 = vshrl.u32 %v68, 8
    %v70 = vmul.u32 %v69, 384
    %v71 = vsub.s32 %v65, %v70
    %v72 = vsub.s32 0, %v71
    %v73 = vsel %vm63, %v72, %v71
    %vm74 = vcmp.lt.s32.totalorder %v59, 0
    %v75 = vsub.s32 0, %v59
    %v76 = vsel %vm74, %v75, %v59
    %v77 = vmul.u32.u64.compose %v76, 2863311531
    %v78 = vextract.low.u32 %v77
    %v79 = vextract.high.u32 %v77
    %v80 = vshrl.u32 %v79, 8
    %v81 = vmul.u32 %v80, 384
    %v82 = vsub.s32 %v76, %v81
    %v83 = vsub.s32 0, %v82
    %v84 = vsel %vm74, %v83, %v82
    %vm85 = vcmp.lt.s32.totalorder %v60, 0
    %v86 = vsub.s32 0, %v60
    %v87 = vsel %vm85, %v86, %v60
    %v88 = vmul.u32.u64.compose %v87, 2863311531
    %v89 = vextract.low.u32 %v88
    %v90 = vextract.high.u32 %v88
    %v91 = vshrl.u32 %v90, 8
    %v92 = vmul.u32 %v91, 384
    %v93 = vsub.s32 %v87, %v92
    %v94 = vsub.s32 0, %v93
    %v95 = vsel %vm85, %v94, %v93
    %vm96 = vcmp.lt.s32.totalorder %v61, 0
    %v97 = vsub.s32 0, %v61
    %v98 = vsel %vm96, %v97, %v61
    %v99 = vmul.u32.u64.compose %v98, 2863311531
    %v100 = vextract.low.u32 %v99
    %v101 = vextract.high.u32 %v99
    %v102 = vshrl.u32 %v101, 8
    %v103 = vmul.u32 %v102, 384
    %v104 = vsub.s32 %v98, %v103
    %v105 = vsub.s32 0, %v104
    %v106 = vsel %vm96, %v105, %v104
    %vm107 = vcmp.lt.s32.totalorder %v62, 0
    %v108 = vsub.s32 0, %v62
    %v109 = vsel %vm107, %v108, %v62
    %v110 = vmul.u32.u64.compose %v109, 2863311531
    %v111 = vextract.low.u32 %v110
    %v112 = vextract.high.u32 %v110
    %v113 = vshrl.u32 %v112, 8
    %v114 = vmul.u32 %v113, 384
    %v115 = vsub.s32 %v109, %v114
    %v116 = vsub.s32 0, %v115
    %v117 = vsel %vm107, %v116, %v115
    %vm118 = vcmp.ne.s32.totalorder %v73, 0
    %vm119 = vcmp.ne.s32.totalorder %v84, 0
    %vm120 = vcmp.ne.s32.totalorder %v95, 0
    %vm121 = vcmp.ne.s32.totalorder %v106, 0
    %vm122 = vcmp.ne.s32.totalorder %v117, 0
    %vm123 = vcmp.lt.s32.totalorder %v73, 0
    %vm124 = vcmp.lt.s32.totalorder %v84, 0
    %vm125 = vcmp.lt.s32.totalorder %v95, 0
    %vm126 = vcmp.lt.s32.totalorder %v106, 0
    %vm127 = vcmp.lt.s32.totalorder %v117, 0
    %vm128 = vmand %vm123, %vm118
    %vm129 = vmand %vm124, %vm119
    %vm130 = vmand %vm125, %vm120
    %vm131 = vmand %vm126, %vm121
    %vm132 = vmand %vm127, %vm122
    %v133 = vadd.s32 %v73, 384
    %v134 = vadd.s32 %v84, 384
    %v135 = vadd.s32 %v95, 384
    %v136 = vadd.s32 %v106, 384
    %v137 = vadd.s32 %v117, 384
    %v138 = vsel %vm128, %v133, %v73
    %v139 = vsel %vm129, %v134, %v84
    %v140 = vsel %vm130, %v135, %v95
    %v141 = vsel %vm131, %v136, %v106
    %v142 = vsel %vm132, %v137, %v117
    %vm143 = vcmp.lt.s32.totalorder %v138, 0
    %v144 = vsub.s32 0, %v138
    %v145 = vsel %vm143, %v144, %v138
    %v146 = vshrl.u32 %v145, 4
    %v147 = vand.u32 %v145, 15
    %v148 = vsub.s32 0, %v147
    %v149 = vsel %vm143, %v148, %v147
    %vm150 = vcmp.lt.s32.totalorder %v139, 0
    %v151 = vsub.s32 0, %v139
    %v152 = vsel %vm150, %v151, %v139
    %v153 = vshrl.u32 %v152, 4
    %v154 = vand.u32 %v152, 15
    %v155 = vsub.s32 0, %v154
    %v156 = vsel %vm150, %v155, %v154
    %vm157 = vcmp.lt.s32.totalorder %v140, 0
    %v158 = vsub.s32 0, %v140
    %v159 = vsel %vm157, %v158, %v140
    %v160 = vshrl.u32 %v159, 4
    %v161 = vand.u32 %v159, 15
    %v162 = vsub.s32 0, %v161
    %v163 = vsel %vm157, %v162, %v161
    %vm164 = vcmp.lt.s32.totalorder %v141, 0
    %v165 = vsub.s32 0, %v141
    %v166 = vsel %vm164, %v165, %v141
    %v167 = vshrl.u32 %v166, 4
    %v168 = vand.u32 %v166, 15
    %v169 = vsub.s32 0, %v168
    %v170 = vsel %vm164, %v169, %v168
    %vm171 = vcmp.lt.s32.totalorder %v142, 0
    %v172 = vsub.s32 0, %v142
    %v173 = vsel %vm171, %v172, %v142
    %v174 = vshrl.u32 %v173, 4
    %v175 = vand.u32 %v173, 15
    %v176 = vsub.s32 0, %v175
    %v177 = vsel %vm171, %v176, %v175
    %vm178 = vcmp.ne.s32.totalorder %v149, 0
    %vm179 = vcmp.ne.s32.totalorder %v156, 0
    %vm180 = vcmp.ne.s32.totalorder %v163, 0
    %vm181 = vcmp.ne.s32.totalorder %v170, 0
    %vm182 = vcmp.ne.s32.totalorder %v177, 0
    %vm183 = vcmp.lt.s32.totalorder %v149, 0
    %vm184 = vcmp.lt.s32.totalorder %v156, 0
    %vm185 = vcmp.lt.s32.totalorder %v163, 0
    %vm186 = vcmp.lt.s32.totalorder %v170, 0
    %vm187 = vcmp.lt.s32.totalorder %v177, 0
    %vm188 = vmand %vm183, %vm178
    %vm189 = vmand %vm184, %vm179
    %vm190 = vmand %vm185, %vm180
    %vm191 = vmand %vm186, %vm181
    %vm192 = vmand %vm187, %vm182
    %v193 = vadd.s32 %v149, 16
    %v194 = vadd.s32 %v156, 16
    %v195 = vadd.s32 %v163, 16
    %v196 = vadd.s32 %v170, 16
    %v197 = vadd.s32 %v177, 16
    %v198 = vsel %vm188, %v193, %v149
    %v199 = vsel %vm189, %v194, %v156
    %v200 = vsel %vm190, %v195, %v163
    %v201 = vsel %vm191, %v196, %v170
    %v202 = vsel %vm192, %v197, %v177
    %vm203 = vcmp.gt.s32.totalorder %v198, 0
    %vm204 = vcmp.gt.s32.totalorder %v199, 0
    %vm205 = vcmp.gt.s32.totalorder %v200, 0
    %vm206 = vcmp.gt.s32.totalorder %v201, 0
    %vm207 = vcmp.gt.s32.totalorder %v202, 0
    %v208 = vsel %vm203, 1, 0
    %v209 = vsel %vm204, 1, 0
    %v210 = vsel %vm205, 1, 0
    %v211 = vsel %vm206, 1, 0
    %v212 = vsel %vm207, 1, 0
    %v213 = vcvt.s32.f32 %v208
    %v214 = vcvt.s32.f32 %v209
    %v215 = vcvt.s32.f32 %v210
    %v216 = vcvt.s32.f32 %v211
    %v217 = vcvt.s32.f32 %v212
    %v218 = vpack.c.bf16 %v213, %v213
    %v219 = vpack.c.bf16 %v214, %v214
    %v220 = vpack.c.bf16 %v215, %v215
    %v221 = vpack.c.bf16 %v216, %v216
    %v222 = vpack.c.bf16 %v217, %v217
    %vm223 = vcmp.lt.s32.totalorder %v198, 15
    %vm224 = vcmp.lt.s32.totalorder %v199, 15
    %vm225 = vcmp.lt.s32.totalorder %v200, 15
    %vm226 = vcmp.lt.s32.totalorder %v201, 15
    %vm227 = vcmp.lt.s32.totalorder %v202, 15
    %v228 = vsel %vm223, 1, 0
    %v229 = vsel %vm224, 1, 0
    %v230 = vsel %vm225, 1, 0
    %v231 = vsel %vm226, 1, 0
    %v232 = vsel %vm227, 1, 0
    %v233 = vcvt.s32.f32 %v228
    %v234 = vcvt.s32.f32 %v229
    %v235 = vcvt.s32.f32 %v230
    %v236 = vcvt.s32.f32 %v231
    %v237 = vcvt.s32.f32 %v232
    %v238 = vpack.c.bf16 %v233, %v233
    %v239 = vpack.c.bf16 %v234, %v234
    %v240 = vpack.c.bf16 %v235, %v235
    %v241 = vpack.c.bf16 %v236, %v236
    %v242 = vpack.c.bf16 %v237, %v237
    %243 = vst [vmem:[#allocation2] sm:$0xff] 0
    %244 = vst [vmem:[#allocation2 + $0x8] sm:$0xff] 0
    %245 = vst [vmem:[#allocation2 + $0x10] sm:$0xff] 0
    %246 = vst [vmem:[#allocation2 + $0x18] sm:$0xff] 0
    %247 = vst [vmem:[#allocation2 + $0x20] sm:$0xff] 0
    %248 = vst [vmem:[#allocation2 + $0x28] sm:$0xff] 0
    %249 = vst [vmem:[#allocation2 + $0x30] sm:$0xff] 0
    %v250 = vld [vmem:[#allocation4] sm:$0xf]
    %v253 = vunpack.c.l.s4 1983009808
    %v254 = vunpack.c.0.s8 %v253
    %v255 = vlaneseq
    %v256 = vshrl.u32 %v255, 7
    %v257 = vsub.s32 %v254, %v256
    %v258 = vrot.slane %v250, %v257
    %v259 = vcombine.high %v258, %v258
    %262 = vst [vmem:[#allocation2 + $0x8] sm:$0x3] %v258
    %263 = vst [vmem:[#allocation2 + $0x10] sm:$0x3] %v259
    %s264 = scalar_lea.vmem [#allocation4], 4
    %v265 = vld [vmem:[%s264] sm:$0xf]
    %v268 = vunpack.c.l.s4 1983009808
    %v269 = vunpack.c.0.s8 %v268
    %v270 = vlaneseq
    %v271 = vshrl.u32 %v270, 7
    %v272 = vsub.s32 %v269, %v271
    %v273 = vrot.slane %v265, %v272
    %v274 = vcombine.high %v273, %v273
    %277 = vst [vmem:[#allocation2 + $0x20] sm:$0x3] %v273
    %278 = vst [vmem:[#allocation2 + $0x28] sm:$0x3] %v274
    %v279 = vld [vmem:[#allocation7] sm:$0xff]
    %v280 = vld [vmem:[#allocation7 + $0x8] sm:$0xff]
    %v281 = vld [vmem:[#allocation2] sm:$0xff]
    %v282 = vld [vmem:[#allocation2 + $0x8] sm:$0xff]
    %v283 = vld [vmem:[#allocation2 + $0x10] sm:$0xff]
    %v284 = vld [vmem:[#allocation2 + $0x18] sm:$0xff]
    %v285 = vld [vmem:[#allocation2 + $0x20] sm:$0xff]
    %v286 = vld [vmem:[#allocation2 + $0x28] sm:$0xff]
    %v287 = vld [vmem:[#allocation2 + $0x8] sm:$0xff]
    %v288 = vld [vmem:[#allocation2 + $0x10] sm:$0xff]
    %v289 = vld [vmem:[#allocation2 + $0x18] sm:$0xff]
    %v290 = vld [vmem:[#allocation2 + $0x20] sm:$0xff]
    %v291 = vld [vmem:[#allocation2 + $0x28] sm:$0xff]
    %v292 = vld [vmem:[#allocation2 + $0x30] sm:$0xff]
    %299 = vrot.lane.b32.xlu0 %v281, 112
    %v300 = vpop.permute.xlu0 %299
    %301 = vrot.lane.b32.xlu0 %v282, 112
    %v302 = vpop.permute.xlu0 %301
    %303 = vrot.lane.b32.xlu0 %v283, 112
    %v304 = vpop.permute.xlu0 %303
    %305 = vrot.lane.b32.xlu0 %v284, 112
    %v306 = vpop.permute.xlu0 %305
    %307 = vrot.lane.b32.xlu0 %v285, 112
    %v308 = vpop.permute.xlu0 %307
    %309 = vrot.lane.b32.xlu0 %v286, 112
    %v310 = vpop.permute.xlu0 %309
    %vm311 = vcmask 916480
    %v312 = vsel %vm311, %v300, %v302
    %v313 = vsel %vm311, %v302, %v304
    %v314 = vsel %vm311, %v304, %v306
    %v315 = vsel %vm311, %v306, %v308
    %v316 = vsel %vm311, %v308, %v310
    %329 = vrot.lane.b32.xlu0 %v287, 96
    %v330 = vpop.permute.xlu0 %329
    %331 = vrot.lane.b32.xlu0 %v288, 96
    %v332 = vpop.permute.xlu0 %331
    %333 = vrot.lane.b32.xlu0 %v289, 96
    %v334 = vpop.permute.xlu0 %333
    %335 = vrot.lane.b32.xlu0 %v290, 96
    %v336 = vpop.permute.xlu0 %335
    %337 = vrot.lane.b32.xlu0 %v291, 96
    %v338 = vpop.permute.xlu0 %337
    %339 = vrot.lane.b32.xlu0 %v292, 96
    %v340 = vpop.permute.xlu0 %339
    %vm341 = vcmask 785408
    %v342 = vsel %vm341, %v330, %v332
    %v343 = vsel %vm341, %v332, %v334
    %v344 = vsel %vm341, %v334, %v336
    %v345 = vsel %vm341, %v336, %v338
    %v346 = vsel %vm341, %v338, %v340
    %358 = vrot.lane.b32.xlu0 %v218, 111
    %v359 = vpop.permute.xlu0 %358
    %360 = vrot.lane.b32.xlu0 %v219, 111
    %v361 = vpop.permute.xlu0 %360
    %362 = vrot.lane.b32.xlu0 %v220, 111
    %v363 = vpop.permute.xlu0 %362
    %364 = vrot.lane.b32.xlu0 %v221, 111
    %v365 = vpop.permute.xlu0 %364
    %366 = vrot.lane.b32.xlu0 %v222, 111
    %v367 = vpop.permute.xlu0 %366
    %vm368 = vcmask 908288
    %v369 = vsel %vm368, %v359, %v361
    %v370 = vsel %vm368, %v361, %v363
    %v371 = vsel %vm368, %v363, %v365
    %v372 = vsel %vm368, %v365, %v367
    %v379 = vmul.bf16 %v281, %v359
    %v380 = vmul.bf16 %v282, %v369
    %v381 = vmul.bf16 %v283, %v370
    %v382 = vmul.bf16 %v284, %v371
    %v383 = vmul.bf16 %v285, %v372
    %v384 = vmul.bf16 %v286, %v367
    %v385 = vmul.bf16 %v312, %v359
    %v386 = vmul.bf16 %v313, %v369
    %v387 = vmul.bf16 %v314, %v370
    %v388 = vmul.bf16 %v315, %v371
    %v389 = vmul.bf16 %v316, %v372
    %v390 = vmul.bf16 %v310, %v367
    %v391 = vmul.bf16 %v330, %v359
    %v392 = vmul.bf16 %v342, %v369
    %v393 = vmul.bf16 %v343, %v370
    %v394 = vmul.bf16 %v344, %v371
    %v395 = vmul.bf16 %v345, %v372
    %v396 = vmul.bf16 %v346, %v367
    %397 = vrot.lane.b32.xlu0 %v287, 112
    %v398 = vpop.permute.xlu0 %397
    %399 = vrot.lane.b32.xlu0 %v288, 112
    %v400 = vpop.permute.xlu0 %399
    %401 = vrot.lane.b32.xlu0 %v289, 112
    %v402 = vpop.permute.xlu0 %401
    %403 = vrot.lane.b32.xlu0 %v290, 112
    %v404 = vpop.permute.xlu0 %403
    %405 = vrot.lane.b32.xlu0 %v291, 112
    %v406 = vpop.permute.xlu0 %405
    %407 = vrot.lane.b32.xlu0 %v292, 112
    %v408 = vpop.permute.xlu0 %407
    %v409 = vsel %vm311, %v398, %v400
    %v410 = vsel %vm311, %v400, %v402
    %v411 = vsel %vm311, %v402, %v404
    %v412 = vsel %vm311, %v404, %v406
    %v413 = vsel %vm311, %v406, %v408
    %425 = vrot.lane.b32.xlu0 %v238, 113
    %v426 = vpop.permute.xlu0 %425
    %427 = vrot.lane.b32.xlu0 %v239, 113
    %v428 = vpop.permute.xlu0 %427
    %429 = vrot.lane.b32.xlu0 %v240, 113
    %v430 = vpop.permute.xlu0 %429
    %431 = vrot.lane.b32.xlu0 %v241, 113
    %v432 = vpop.permute.xlu0 %431
    %433 = vrot.lane.b32.xlu0 %v242, 113
    %v434 = vpop.permute.xlu0 %433
    %vm435 = vcmask 924672
    %v436 = vsel %vm435, %v426, %v428
    %v437 = vsel %vm435, %v428, %v430
    %v438 = vsel %vm435, %v430, %v432
    %v439 = vsel %vm435, %v432, %v434
    %v446 = vmul.bf16 %v281, %v426
    %v447 = vmul.bf16 %v282, %v436
    %v448 = vmul.bf16 %v283, %v437
    %v449 = vmul.bf16 %v284, %v438
    %v450 = vmul.bf16 %v285, %v439
    %v451 = vmul.bf16 %v286, %v434
    %v452 = vmul.bf16 %v398, %v426
    %v453 = vmul.bf16 %v409, %v436
    %v454 = vmul.bf16 %v410, %v437
    %v455 = vmul.bf16 %v411, %v438
    %v456 = vmul.bf16 %v412, %v439
    %v457 = vmul.bf16 %v413, %v434
    %v458 = vmul.bf16 %v330, %v426
    %v459 = vmul.bf16 %v342, %v436
    %v460 = vmul.bf16 %v343, %v437
    %v461 = vmul.bf16 %v344, %v438
    %v462 = vmul.bf16 %v345, %v439
    %v463 = vmul.bf16 %v346, %v434
    %464 = vrot.lane.b32.xlu0 %v281, 127
    %v465 = vpop.permute.xlu0 %464
    %466 = vrot.lane.b32.xlu0 %v282, 127
    %v467 = vpop.permute.xlu0 %466
    %468 = vrot.lane.b32.xlu0 %v283, 127
    %v469 = vpop.permute.xlu0 %468
    %470 = vrot.lane.b32.xlu0 %v284, 127
    %v471 = vpop.permute.xlu0 %470
    %472 = vrot.lane.b32.xlu0 %v285, 127
    %v473 = vpop.permute.xlu0 %472
    %474 = vrot.lane.b32.xlu0 %v286, 127
    %v475 = vpop.permute.xlu0 %474
    %476 = vrot.lane.b32.xlu0 %v302, 127
    %v477 = vpop.permute.xlu0 %476
    %478 = vrot.lane.b32.xlu0 %v313, 127
    %v479 = vpop.permute.xlu0 %478
    %480 = vrot.lane.b32.xlu0 %v314, 127
    %v481 = vpop.permute.xlu0 %480
    %482 = vrot.lane.b32.xlu0 %v315, 127
    %v483 = vpop.permute.xlu0 %482
    %484 = vrot.lane.b32.xlu0 %v316, 127
    %v485 = vpop.permute.xlu0 %484
    %486 = vrot.lane.b32.xlu0 %v310, 127
    %v487 = vpop.permute.xlu0 %486
    %488 = vrot.lane.b32.xlu0 %v330, 127
    %v489 = vpop.permute.xlu0 %488
    %490 = vrot.lane.b32.xlu0 %v342, 127
    %v491 = vpop.permute.xlu0 %490
    %492 = vrot.lane.b32.xlu0 %v343, 127
    %v493 = vpop.permute.xlu0 %492
    %494 = vrot.lane.b32.xlu0 %v344, 127
    %v495 = vpop.permute.xlu0 %494
    %496 = vrot.lane.b32.xlu0 %v345, 127
    %v497 = vpop.permute.xlu0 %496
    %498 = vrot.lane.b32.xlu0 %v346, 127
    %v499 = vpop.permute.xlu0 %498
    %vm500 = vcmask 1039360
    %v501 = vsel %vm500, %v465, %v467
    %v502 = vsel %vm500, %v467, %v469
    %v503 = vsel %vm500, %v469, %v471
    %v504 = vsel %vm500, %v471, %v473
    %v505 = vsel %vm500, %v473, %v475
    %v506 = vsel %vm500, %v477, %v479
    %v507 = vsel %vm500, %v479, %v481
    %v508 = vsel %vm500, %v481, %v483
    %v509 = vsel %vm500, %v483, %v485
    %v510 = vsel %vm500, %v485, %v487
    %v511 = vsel %vm500, %v489, %v491
    %v512 = vsel %vm500, %v491, %v493
    %v513 = vsel %vm500, %v493, %v495
    %v514 = vsel %vm500, %v495, %v497
    %v515 = vsel %vm500, %v497, %v499
    %534 = vrot.lane.b32.xlu0 %v446, 126
    %v535 = vpop.permute.xlu0 %534
    %536 = vrot.lane.b32.xlu0 %v447, 126
    %v537 = vpop.permute.xlu0 %536
    %538 = vrot.lane.b32.xlu0 %v448, 126
    %v539 = vpop.permute.xlu0 %538
    %540 = vrot.lane.b32.xlu0 %v449, 126
    %v541 = vpop.permute.xlu0 %540
    %542 = vrot.lane.b32.xlu0 %v450, 126
    %v543 = vpop.permute.xlu0 %542
    %544 = vrot.lane.b32.xlu0 %v451, 126
    %v545 = vpop.permute.xlu0 %544
    %546 = vrot.lane.b32.xlu0 %v452, 126
    %v547 = vpop.permute.xlu0 %546
    %548 = vrot.lane.b32.xlu0 %v453, 126
    %v549 = vpop.permute.xlu0 %548
    %550 = vrot.lane.b32.xlu0 %v454, 126
    %v551 = vpop.permute.xlu0 %550
    %552 = vrot.lane.b32.xlu0 %v455, 126
    %v553 = vpop.permute.xlu0 %552
    %554 = vrot.lane.b32.xlu0 %v456, 126
    %v555 = vpop.permute.xlu0 %554
    %556 = vrot.lane.b32.xlu0 %v457, 126
    %v557 = vpop.permute.xlu0 %556
    %558 = vrot.lane.b32.xlu0 %v458, 126
    %v559 = vpop.permute.xlu0 %558
    %560 = vrot.lane.b32.xlu0 %v459, 126
    %v561 = vpop.permute.xlu0 %560
    %562 = vrot.lane.b32.xlu0 %v460, 126
    %v563 = vpop.permute.xlu0 %562
    %564 = vrot.lane.b32.xlu0 %v461, 126
    %v565 = vpop.permute.xlu0 %564
    %566 = vrot.lane.b32.xlu0 %v462, 126
    %v567 = vpop.permute.xlu0 %566
    %568 = vrot.lane.b32.xlu0 %v463, 126
    %v569 = vpop.permute.xlu0 %568
    %vm570 = vcmask 1031168
    %v571 = vsel %vm570, %v535, %v537
    %v572 = vsel %vm570, %v537, %v539
    %v573 = vsel %vm570, %v539, %v541
    %v574 = vsel %vm570, %v541, %v543
    %v575 = vsel %vm570, %v543, %v545
    %v576 = vsel %vm570, %v547, %v549
    %v577 = vsel %vm570, %v549, %v551
    %v578 = vsel %vm570, %v551, %v553
    %v579 = vsel %vm570, %v553, %v555
    %v580 = vsel %vm570, %v555, %v557
    %v581 = vsel %vm570, %v559, %v561
    %v582 = vsel %vm570, %v561, %v563
    %v583 = vsel %vm570, %v563, %v565
    %v584 = vsel %vm570, %v565, %v567
    %v585 = vsel %vm570, %v567, %v569
    %v588 = vunpack.c.l.b16 %v279
    %v589 = vunpack.c.h.b16 %v279
    %v590 = vunpack.c.l.b16 %v280
    %v591 = vunpack.c.h.b16 %v280
    %v592 = vpack.c.b16 %v590, %v588
    %v593 = vpack.c.b16 %v591, %v589
    %613 = vrot.lane.b32.xlu0 %v379, 17
    %v614 = vpop.permute.xlu0 %613
    %615 = vrot.lane.b32.xlu0 %v380, 17
    %v616 = vpop.permute.xlu0 %615
    %617 = vrot.lane.b32.xlu0 %v381, 17
    %v618 = vpop.permute.xlu0 %617
    %619 = vrot.lane.b32.xlu0 %v382, 17
    %v620 = vpop.permute.xlu0 %619
    %621 = vrot.lane.b32.xlu0 %v383, 17
    %v622 = vpop.permute.xlu0 %621
    %623 = vrot.lane.b32.xlu0 %v384, 17
    %v624 = vpop.permute.xlu0 %623
    %625 = vrot.lane.b32.xlu0 %v385, 17
    %v626 = vpop.permute.xlu0 %625
    %627 = vrot.lane.b32.xlu0 %v386, 17
    %v628 = vpop.permute.xlu0 %627
    %629 = vrot.lane.b32.xlu0 %v387, 17
    %v630 = vpop.permute.xlu0 %629
    %631 = vrot.lane.b32.xlu0 %v388, 17
    %v632 = vpop.permute.xlu0 %631
    %633 = vrot.lane.b32.xlu0 %v389, 17
    %v634 = vpop.permute.xlu0 %633
    %635 = vrot.lane.b32.xlu0 %v390, 17
    %v636 = vpop.permute.xlu0 %635
    %637 = vrot.lane.b32.xlu0 %v391, 17
    %v638 = vpop.permute.xlu0 %637
    %639 = vrot.lane.b32.xlu0 %v392, 17
    %v640 = vpop.permute.xlu0 %639
    %641 = vrot.lane.b32.xlu0 %v393, 17
    %v642 = vpop.permute.xlu0 %641
    %643 = vrot.lane.b32.xlu0 %v394, 17
    %v644 = vpop.permute.xlu0 %643
    %645 = vrot.lane.b32.xlu0 %v395, 17
    %v646 = vpop.permute.xlu0 %645
    %647 = vrot.lane.b32.xlu0 %v396, 17
    %v648 = vpop.permute.xlu0 %647
    %649 = vrot.lane.b32.xlu0 %v501, 17
    %v650 = vpop.permute.xlu0 %649
    %651 = vrot.lane.b32.xlu0 %v502, 17
    %v652 = vpop.permute.xlu0 %651
    %653 = vrot.lane.b32.xlu0 %v503, 17
    %v654 = vpop.permute.xlu0 %653
    %655 = vrot.lane.b32.xlu0 %v504, 17
    %v656 = vpop.permute.xlu0 %655
    %657 = vrot.lane.b32.xlu0 %v505, 17
    %v658 = vpop.permute.xlu0 %657
    %659 = vrot.lane.b32.xlu0 %v475, 17
    %v660 = vpop.permute.xlu0 %659
    %661 = vrot.lane.b32.xlu0 %v506, 17
    %v662 = vpop.permute.xlu0 %661
    %663 = vrot.lane.b32.xlu0 %v507, 17
    %v664 = vpop.permute.xlu0 %663
    %665 = vrot.lane.b32.xlu0 %v508, 17
    %v666 = vpop.permute.xlu0 %665
    %667 = vrot.lane.b32.xlu0 %v509, 17
    %v668 = vpop.permute.xlu0 %667
    %669 = vrot.lane.b32.xlu0 %v510, 17
    %v670 = vpop.permute.xlu0 %669
    %671 = vrot.lane.b32.xlu0 %v487, 17
    %v672 = vpop.permute.xlu0 %671
    %673 = vrot.lane.b32.xlu0 %v511, 17
    %v674 = vpop.permute.xlu0 %673
    %675 = vrot.lane.b32.xlu0 %v512, 17
    %v676 = vpop.permute.xlu0 %675
    %677 = vrot.lane.b32.xlu0 %v513, 17
    %v678 = vpop.permute.xlu0 %677
    %679 = vrot.lane.b32.xlu0 %v514, 17
    %v680 = vpop.permute.xlu0 %679
    %681 = vrot.lane.b32.xlu0 %v515, 17
    %v682 = vpop.permute.xlu0 %681
    %683 = vrot.lane.b32.xlu0 %v499, 17
    %v684 = vpop.permute.xlu0 %683
    %685 = vrot.lane.b32.xlu0 %v571, 17
    %v686 = vpop.permute.xlu0 %685
    %687 = vrot.lane.b32.xlu0 %v572, 17
    %v688 = vpop.permute.xlu0 %687
    %689 = vrot.lane.b32.xlu0 %v573, 17
    %v690 = vpop.permute.xlu0 %689
    %691 = vrot.lane.b32.xlu0 %v574, 17
    %v692 = vpop.permute.xlu0 %691
    %693 = vrot.lane.b32.xlu0 %v575, 17
    %v694 = vpop.permute.xlu0 %693
    %695 = vrot.lane.b32.xlu0 %v545, 17
    %v696 = vpop.permute.xlu0 %695
    %697 = vrot.lane.b32.xlu0 %v576, 17
    %v698 = vpop.permute.xlu0 %697
    %699 = vrot.lane.b32.xlu0 %v577, 17
    %v700 = vpop.permute.xlu0 %699
    %701 = vrot.lane.b32.xlu0 %v578, 17
    %v702 = vpop.permute.xlu0 %701
    %703 = vrot.lane.b32.xlu0 %v579, 17
    %v704 = vpop.permute.xlu0 %703
    %705 = vrot.lane.b32.xlu0 %v580, 17
    %v706 = vpop.permute.xlu0 %705
    %707 = vrot.lane.b32.xlu0 %v557, 17
    %v708 = vpop.permute.xlu0 %707
    %709 = vrot.lane.b32.xlu0 %v581, 17
    %v710 = vpop.permute.xlu0 %709
    %711 = vrot.lane.b32.xlu0 %v582, 17
    %v712 = vpop.permute.xlu0 %711
    %713 = vrot.lane.b32.xlu0 %v583, 17
    %v714 = vpop.permute.xlu0 %713
    %715 = vrot.lane.b32.xlu0 %v584, 17
    %v716 = vpop.permute.xlu0 %715
    %717 = vrot.lane.b32.xlu0 %v585, 17
    %v718 = vpop.permute.xlu0 %717
    %719 = vrot.lane.b32.xlu0 %v569, 17
    %v720 = vpop.permute.xlu0 %719
    %vm721 = vcmask 138240
    %v722 = vsel %vm721, %v614, %v616
    %v723 = vsel %vm721, %v616, %v618
    %v724 = vsel %vm721, %v618, %v620
    %v725 = vsel %vm721, %v620, %v622
    %v726 = vsel %vm721, %v622, %v624
    %v727 = vsel %vm721, %v626, %v628
    %v728 = vsel %vm721, %v628, %v630
    %v729 = vsel %vm721, %v630, %v632
    %v730 = vsel %vm721, %v632, %v634
    %v731 = vsel %vm721, %v634, %v636
    %v732 = vsel %vm721, %v638, %v640
    %v733 = vsel %vm721, %v640, %v642
    %v734 = vsel %vm721, %v642, %v644
    %v735 = vsel %vm721, %v644, %v646
    %v736 = vsel %vm721, %v646, %v648
    %v737 = vsel %vm721, %v650, %v652
    %v738 = vsel %vm721, %v652, %v654
    %v739 = vsel %vm721, %v654, %v656
    %v740 = vsel %vm721, %v656, %v658
    %v741 = vsel %vm721, %v658, %v660
    %v742 = vsel %vm721, %v662, %v664
    %v743 = vsel %vm721, %v664, %v666
    %v744 = vsel %vm721, %v666, %v668
    %v745 = vsel %vm721, %v668, %v670
    %v746 = vsel %vm721, %v670, %v672
    %v747 = vsel %vm721, %v674, %v676
    %v748 = vsel %vm721, %v676, %v678
    %v749 = vsel %vm721, %v678, %v680
    %v750 = vsel %vm721, %v680, %v682
    %v751 = vsel %vm721, %v682, %v684
    %v752 = vsel %vm721, %v686, %v688
    %v753 = vsel %vm721, %v688, %v690
    %v754 = vsel %vm721, %v690, %v692
    %v755 = vsel %vm721, %v692, %v694
    %v756 = vsel %vm721, %v694, %v696
    %v757 = vsel %vm721, %v698, %v700
    %v758 = vsel %vm721, %v700, %v702
    %v759 = vsel %vm721, %v702, %v704
    %v760 = vsel %vm721, %v704, %v706
    %v761 = vsel %vm721, %v706, %v708
    %v762 = vsel %vm721, %v710, %v712
    %v763 = vsel %vm721, %v712, %v714
    %v764 = vsel %vm721, %v714, %v716
    %v765 = vsel %vm721, %v716, %v718
    %v766 = vsel %vm721, %v718, %v720
    %vm812 = vcmask 130048
    %v814 = vsel %vm812, %v593, 0
    %816 = vmatprep.subr.bf16.mxu0 %v723
    %817 = vmatpush1.bf16.msra.mxu0 %v722
    %818 = vmatprep.subr.bf16.mxu0 %v728
    %819 = vmatpush1.bf16.msra.mxu0 %v727
    %820 = vmatprep.subr.bf16.mxu0 %v733
    %821 = vmatpush1.bf16.msra.mxu0 %v732
    %822 = vmatprep.subr.bf16.mxu0 %v738
    %823 = vmatpush1.bf16.msra.mxu0 %v737
    %824 = vmatprep.subr.bf16.mxu0 %v743
    %825 = vmatpush1.bf16.msra.mxu0 %v742
    %826 = vmatprep.subr.bf16.mxu0 %v748
    %827 = vmatpush1.bf16.msra.mxu0 %v747
    %828 = vmatprep.subr.bf16.mxu0 %v753
    %829 = vmatpush1.bf16.msra.mxu0 %v752
    %830 = vmatprep.subr.bf16.mxu0 %v758
    %831 = vmatpush1.bf16.msra.mxu0 %v757
    %832 = vmatprep.subr.bf16.mxu0 %v763
    %833 = vmatpush1.bf16.msra.mxu0 %v762
    %834 = vmatprep.subr.bf16.mxu0 0
    %835 = vmatpush1.bf16.msra.mxu0 0
    %836 = vmatprep.subr.bf16.mxu0 0
    %837 = vmatpush1.bf16.msra.mxu0 0
    %838 = vmatprep.subr.bf16.mxu0 0
    %839 = vmatpush1.bf16.msra.mxu0 0
    %840 = vmatprep.subr.bf16.mxu0 0
    %841 = vmatpush1.bf16.msra.mxu0 0
    %842 = vmatprep.subr.bf16.mxu0 0
    %843 = vmatpush1.bf16.msra.mxu0 0
    %844 = vmatprep.subr.bf16.mxu0 0
    %845 = vmatpush1.bf16.msra.mxu0 0
    %846 = vmatprep.subr.bf16.mxu0 0
    %847 = vmatpush1.bf16.msra.mxu0 0
    %848 = vmatprep.mubr.bf16.mxu0 %v814
    %849 = vmatmul.mubr.bf16.gmra.mrb[0].mxu0 %v592
    %v850 = vpop.f32.mrb[0].mxu0
    %v851 = vadd.f32 0.0, %v850
    %v852 = vpop.f32.mrb[0].mxu0
    %v853 = vadd.f32 0.0, %v852
    %v854 = vpop.f32.mrb[0].mxu0
    %v855 = vadd.f32 0.0, %v854
    %v856 = vpop.f32.mrb[0].mxu0
    %v857 = vadd.f32 0.0, %v856
    %858 = vdwg.mxu0
    %859 = vmatprep.subr.bf16.mxu0 %v725
    %860 = vmatpush1.bf16.msra.mxu0 %v724
    %861 = vmatprep.subr.bf16.mxu0 %v730
    %862 = vmatpush1.bf16.msra.mxu0 %v729
    %863 = vmatprep.subr.bf16.mxu0 %v735
    %864 = vmatpush1.bf16.msra.mxu0 %v734
    %865 = vmatprep.subr.bf16.mxu0 %v740
    %866 = vmatpush1.bf16.msra.mxu0 %v739
    %867 = vmatprep.subr.bf16.mxu0 %v745
    %868 = vmatpush1.bf16.msra.mxu0 %v744
    %869 = vmatprep.subr.bf16.mxu0 %v750
    %870 = vmatpush1.bf16.msra.mxu0 %v749
    %871 = vmatprep.subr.bf16.mxu0 %v755
    %872 = vmatpush1.bf16.msra.mxu0 %v754
    %873 = vmatprep.subr.bf16.mxu0 %v760
    %874 = vmatpush1.bf16.msra.mxu0 %v759
    %875 = vmatprep.subr.bf16.mxu0 %v765
    %876 = vmatpush1.bf16.msra.mxu0 %v764
    %877 = vmatprep.subr.bf16.mxu0 0
    %878 = vmatpush1.bf16.msra.mxu0 0
    %879 = vmatprep.subr.bf16.mxu0 0
    %880 = vmatpush1.bf16.msra.mxu0 0
    %881 = vmatprep.subr.bf16.mxu0 0
    %882 = vmatpush1.bf16.msra.mxu0 0
    %883 = vmatprep.subr.bf16.mxu0 0
    %884 = vmatpush1.bf16.msra.mxu0 0
    %885 = vmatprep.subr.bf16.mxu0 0
    %886 = vmatpush1.bf16.msra.mxu0 0
    %887 = vmatprep.subr.bf16.mxu0 0
    %888 = vmatpush1.bf16.msra.mxu0 0
    %889 = vmatprep.subr.bf16.mxu0 0
    %890 = vmatpush1.bf16.msra.mxu0 0
    %891 = vmatprep.mubr.bf16.mxu0 %v814
    %892 = vmatmul.mubr.bf16.gmra.mrb[0].mxu0 %v592
    %v893 = vpop.f32.mrb[0].mxu0
    %v894 = vpop.f32.mrb[0].mxu0
    %v895 = vadd.f32 0.0, %v894
    %v896 = vpop.f32.mrb[0].mxu0
    %v897 = vpop.f32.mrb[0].mxu0
    %v898 = vadd.f32 0.0, %v897
    %899 = vdwg.mxu0
    %900 = vmatprep.subr.bf16.mxu0 0
    %901 = vmatpush1.bf16.msra.mxu0 %v726
    %902 = vmatprep.subr.bf16.mxu0 0
    %903 = vmatpush1.bf16.msra.mxu0 %v731
    %904 = vmatprep.subr.bf16.mxu0 0
    %905 = vmatpush1.bf16.msra.mxu0 %v736
    %906 = vmatprep.subr.bf16.mxu0 0
    %907 = vmatpush1.bf16.msra.mxu0 %v741
    %908 = vmatprep.subr.bf16.mxu0 0
    %909 = vmatpush1.bf16.msra.mxu0 %v746
    %910 = vmatprep.subr.bf16.mxu0 0
    %911 = vmatpush1.bf16.msra.mxu0 %v751
    %912 = vmatprep.subr.bf16.mxu0 0
    %913 = vmatpush1.bf16.msra.mxu0 %v756
    %914 = vmatprep.subr.bf16.mxu0 0
    %915 = vmatpush1.bf16.msra.mxu0 %v761
    %916 = vmatprep.subr.bf16.mxu0 0
    %917 = vmatpush1.bf16.msra.mxu0 %v766
    %918 = vmatprep.subr.bf16.mxu0 0
    %919 = vmatpush1.bf16.msra.mxu0 0
    %920 = vmatprep.subr.bf16.mxu0 0
    %921 = vmatpush1.bf16.msra.mxu0 0
    %922 = vmatprep.subr.bf16.mxu0 0
    %923 = vmatpush1.bf16.msra.mxu0 0
    %924 = vmatprep.subr.bf16.mxu0 0
    %925 = vmatpush1.bf16.msra.mxu0 0
    %926 = vmatprep.subr.bf16.mxu0 0
    %927 = vmatpush1.bf16.msra.mxu0 0
    %928 = vmatprep.subr.bf16.mxu0 0
    %929 = vmatpush1.bf16.msra.mxu0 0
    %930 = vmatprep.subr.bf16.mxu0 0
    %931 = vmatpush1.bf16.msra.mxu0 0
    %932 = vmatprep.mubr.bf16.mxu0 %v814
    %933 = vmatmul.mubr.bf16.gmra.mrb[0].mxu0 %v592
    %v934 = vpop.f32.mrb[0].mxu0
    %v935 = vadd.f32 0.0, %v934
    %v936 = vpop.f32.mrb[0].mxu0
    %v937 = vpop.f32.mrb[0].mxu0
    %v938 = vadd.f32 0.0, %v937
    %v939 = vpop.f32.mrb[0].mxu0
    %940 = vdwg.mxu0
    %941 = vst [vmem:[#allocation3] sm:$0xff] 0
    %942 = vst [vmem:[#allocation3 + $0x8] sm:$0xff] 0
    %943 = vst [vmem:[#allocation3 + $0x10] sm:$0xff] 0
    %944 = vst [vmem:[#allocation3 + $0x18] sm:$0xff] 0
    %945 = vst [vmem:[#allocation3 + $0x20] sm:$0xff] 0
    %946 = vst [vmem:[#allocation3 + $0x28] sm:$0xff] 0
    %947 = vst [vmem:[#allocation3 + $0x30] sm:$0xff] 0
    %v948 = vadd.f32 %v851, %v853
    %949 = vadd.xlane.f32.xlu0 %v948
    %v950 = vpop.xlane.xlu0 %949
    %v951 = vadd.f32 %v855, %v857
    %952 = vadd.xlane.f32.xlu0 %v951
    %v953 = vpop.xlane.xlu0 %952
    %v954 = vrcp.pop 256.0
    %v955 = vmul.f32 %v950, %v954
    %v956 = vmul.f32 %v953, %v954
    %v957 = vsub.f32 %v851, %v955
    %v958 = vsub.f32 %v853, %v955
    %v959 = vsub.f32 %v855, %v956
    %v960 = vsub.f32 %v857, %v956
    %v961 = vmul.f32 %v957, %v957
    %v962 = vmul.f32 %v958, %v958
    %v963 = vmul.f32 %v959, %v959
    %v964 = vmul.f32 %v960, %v960
    %v965 = vadd.f32 %v961, %v962
    %966 = vadd.xlane.f32.xlu0 %v965
    %v967 = vpop.xlane.xlu0 %966
    %v968 = vadd.f32 %v963, %v964
    %969 = vadd.xlane.f32.xlu0 %v968
    %v970 = vpop.xlane.xlu0 %969
    %v971 = vmul.f32 %v967, %v954
    %v972 = vmul.f32 %v970, %v954
    %v973 = vadd.f32 %v971, 1e-05
    %v974 = vadd.f32 %v972, 1e-05
    %v975 = vrsqrt.pop %v973
    %v976 = vrsqrt.pop %v974
    %v977 = vmul.f32 %v957, %v975
    %v978 = vmul.f32 %v958, %v975
    %v979 = vmul.f32 %v959, %v976
    %v980 = vmul.f32 %v960, %v976
    %v981 = vmul.f32 %v977, 0.01
    %v982 = vmul.f32 %v978, 0.01
    %v983 = vmul.f32 %v979, 0.01
    %v984 = vmul.f32 %v980, 0.01
    %v985 = vmax.f32 %v977, %v981
    %v986 = vmax.f32 %v978, %v982
    %v987 = vmax.f32 %v979, %v983
    %v988 = vmax.f32 %v980, %v984
    %v989 = vpack.c.bf16 %v987, %v985
    %v990 = vpack.c.bf16 %v988, %v986
    %991 = vst [vmem:[#allocation3 + $0x8] sm:$0xff] %v989
    %992 = vst [vmem:[#allocation3 + $0x10] sm:$0xff] %v990
    %v993 = vadd.f32 %v895, %v935
    %994 = vadd.xlane.f32.xlu0 %v993
    %v995 = vpop.xlane.xlu0 %994
    %v996 = vadd.f32 %v898, %v938
    %997 = vadd.xlane.f32.xlu0 %v996
    %v998 = vpop.xlane.xlu0 %997
    %v999 = vmul.f32 %v995, %v954
    %v1000 = vmul.f32 %v998, %v954
    %v1001 = vsub.f32 %v895, %v999
    %v1002 = vsub.f32 %v935, %v999
    %v1003 = vsub.f32 %v898, %v1000
    %v1004 = vsub.f32 %v938, %v1000
    %v1005 = vmul.f32 %v1001, %v1001
    %v1006 = vmul.f32 %v1002, %v1002
    %v1007 = vmul.f32 %v1003, %v1003
    %v1008 = vmul.f32 %v1004, %v1004
    %v1009 = vadd.f32 %v1005, %v1006
    %1010 = vadd.xlane.f32.xlu0 %v1009
    %v1011 = vpop.xlane.xlu0 %1010
    %v1012 = vadd.f32 %v1007, %v1008
    %1013 = vadd.xlane.f32.xlu0 %v1012
    %v1014 = vpop.xlane.xlu0 %1013
    %v1015 = vmul.f32 %v1011, %v954
    %v1016 = vmul.f32 %v1014, %v954
    %v1017 = vadd.f32 %v1015, 1e-05
    %v1018 = vadd.f32 %v1016, 1e-05
    %v1019 = vrsqrt.pop %v1017
    %v1020 = vrsqrt.pop %v1018
    %v1021 = vmul.f32 %v1001, %v1019
    %v1022 = vmul.f32 %v1002, %v1019
    %v1023 = vmul.f32 %v1003, %v1020
    %v1024 = vmul.f32 %v1004, %v1020
    %v1025 = vmul.f32 %v1021, 0.01
    %v1026 = vmul.f32 %v1022, 0.01
    %v1027 = vmul.f32 %v1023, 0.01
    %v1028 = vmul.f32 %v1024, 0.01
    %v1029 = vmax.f32 %v1021, %v1025
    %v1030 = vmax.f32 %v1022, %v1026
    %v1031 = vmax.f32 %v1023, %v1027
    %v1032 = vmax.f32 %v1024, %v1028
    %v1033 = vpack.c.bf16 %v1031, %v1029
    %v1034 = vpack.c.bf16 %v1032, %v1030
    %1035 = vst [vmem:[#allocation3 + $0x20] sm:$0xff] %v1033
    %1036 = vst [vmem:[#allocation3 + $0x28] sm:$0xff] %v1034
    %v1037 = vld [vmem:[#allocation9] sm:$0xff]
    %v1038 = vld [vmem:[#allocation9 + $0x8] sm:$0xff]
    %v1039 = vld [vmem:[#allocation3] sm:$0xff]
    %v1040 = vld [vmem:[#allocation3 + $0x8] sm:$0xff]
    %v1041 = vld [vmem:[#allocation3 + $0x10] sm:$0xff]
    %v1042 = vld [vmem:[#allocation3 + $0x18] sm:$0xff]
    %v1043 = vld [vmem:[#allocation3 + $0x20] sm:$0xff]
    %v1044 = vld [vmem:[#allocation3 + $0x28] sm:$0xff]
    %v1045 = vld [vmem:[#allocation3 + $0x8] sm:$0xff]
    %v1046 = vld [vmem:[#allocation3 + $0x10] sm:$0xff]
    %v1047 = vld [vmem:[#allocation3 + $0x18] sm:$0xff]
    %v1048 = vld [vmem:[#allocation3 + $0x20] sm:$0xff]
    %v1049 = vld [vmem:[#allocation3 + $0x28] sm:$0xff]
    %v1050 = vld [vmem:[#allocation3 + $0x30] sm:$0xff]
    %1057 = vrot.lane.b32.xlu0 %v1039, 112
    %v1058 = vpop.permute.xlu0 %1057
    %1059 = vrot.lane.b32.xlu0 %v1040, 112
    %v1060 = vpop.permute.xlu0 %1059
    %1061 = vrot.lane.b32.xlu0 %v1041, 112
    %v1062 = vpop.permute.xlu0 %1061
    %1063 = vrot.lane.b32.xlu0 %v1042, 112
    %v1064 = vpop.permute.xlu0 %1063
    %1065 = vrot.lane.b32.xlu0 %v1043, 112
    %v1066 = vpop.permute.xlu0 %1065
    %1067 = vrot.lane.b32.xlu0 %v1044, 112
    %v1068 = vpop.permute.xlu0 %1067
    %v1069 = vsel %vm311, %v1058, %v1060
    %v1070 = vsel %vm311, %v1060, %v1062
    %v1071 = vsel %vm311, %v1062, %v1064
    %v1072 = vsel %vm311, %v1064, %v1066
    %v1073 = vsel %vm311, %v1066, %v1068
    %1086 = vrot.lane.b32.xlu0 %v1045, 96
    %v1087 = vpop.permute.xlu0 %1086
    %1088 = vrot.lane.b32.xlu0 %v1046, 96
    %v1089 = vpop.permute.xlu0 %1088
    %1090 = vrot.lane.b32.xlu0 %v1047, 96
    %v1091 = vpop.permute.xlu0 %1090
    %1092 = vrot.lane.b32.xlu0 %v1048, 96
    %v1093 = vpop.permute.xlu0 %1092
    %1094 = vrot.lane.b32.xlu0 %v1049, 96
    %v1095 = vpop.permute.xlu0 %1094
    %1096 = vrot.lane.b32.xlu0 %v1050, 96
    %v1097 = vpop.permute.xlu0 %1096
    %v1098 = vsel %vm341, %v1087, %v1089
    %v1099 = vsel %vm341, %v1089, %v1091
    %v1100 = vsel %vm341, %v1091, %v1093
    %v1101 = vsel %vm341, %v1093, %v1095
    %v1102 = vsel %vm341, %v1095, %v1097
    %v1109 = vmul.bf16 %v1039, %v359
    %v1110 = vmul.bf16 %v1040, %v369
    %v1111 = vmul.bf16 %v1041, %v370
    %v1112 = vmul.bf16 %v1042, %v371
    %v1113 = vmul.bf16 %v1043, %v372
    %v1114 = vmul.bf16 %v1044, %v367
    %v1115 = vmul.bf16 %v1069, %v359
    %v1116 = vmul.bf16 %v1070, %v369
    %v1117 = vmul.bf16 %v1071, %v370
    %v1118 = vmul.bf16 %v1072, %v371
    %v1119 = vmul.bf16 %v1073, %v372
    %v1120 = vmul.bf16 %v1068, %v367
    %v1121 = vmul.bf16 %v1087, %v359
    %v1122 = vmul.bf16 %v1098, %v369
    %v1123 = vmul.bf16 %v1099, %v370
    %v1124 = vmul.bf16 %v1100, %v371
    %v1125 = vmul.bf16 %v1101, %v372
    %v1126 = vmul.bf16 %v1102, %v367
    %1127 = vrot.lane.b32.xlu0 %v1045, 112
    %v1128 = vpop.permute.xlu0 %1127
    %1129 = vrot.lane.b32.xlu0 %v1046, 112
    %v1130 = vpop.permute.xlu0 %1129
    %1131 = vrot.lane.b32.xlu0 %v1047, 112
    %v1132 = vpop.permute.xlu0 %1131
    %1133 = vrot.lane.b32.xlu0 %v1048, 112
    %v1134 = vpop.permute.xlu0 %1133
    %1135 = vrot.lane.b32.xlu0 %v1049, 112
    %v1136 = vpop.permute.xlu0 %1135
    %1137 = vrot.lane.b32.xlu0 %v1050, 112
    %v1138 = vpop.permute.xlu0 %1137
    %v1139 = vsel %vm311, %v1128, %v1130
    %v1140 = vsel %vm311, %v1130, %v1132
    %v1141 = vsel %vm311, %v1132, %v1134
    %v1142 = vsel %vm311, %v1134, %v1136
    %v1143 = vsel %vm311, %v1136, %v1138
    %v1150 = vmul.bf16 %v1039, %v426
    %v1151 = vmul.bf16 %v1040, %v436
    %v1152 = vmul.bf16 %v1041, %v437
    %v1153 = vmul.bf16 %v1042, %v438
    %v1154 = vmul.bf16 %v1043, %v439
    %v1155 = vmul.bf16 %v1044, %v434
    %v1156 = vmul.bf16 %v1128, %v426
    %v1157 = vmul.bf16 %v1139, %v436
    %v1158 = vmul.bf16 %v1140, %v437
    %v1159 = vmul.bf16 %v1141, %v438
    %v1160 = vmul.bf16 %v1142, %v439
    %v1161 = vmul.bf16 %v1143, %v434
    %v1162 = vmul.bf16 %v1087, %v426
    %v1163 = vmul.bf16 %v1098, %v436
    %v1164 = vmul.bf16 %v1099, %v437
    %v1165 = vmul.bf16 %v1100, %v438
    %v1166 = vmul.bf16 %v1101, %v439
    %v1167 = vmul.bf16 %v1102, %v434
    %1168 = vrot.lane.b32.xlu0 %v1039, 127
    %v1169 = vpop.permute.xlu0 %1168
    %1170 = vrot.lane.b32.xlu0 %v1040, 127
    %v1171 = vpop.permute.xlu0 %1170
    %1172 = vrot.lane.b32.xlu0 %v1041, 127
    %v1173 = vpop.permute.xlu0 %1172
    %1174 = vrot.lane.b32.xlu0 %v1042, 127
    %v1175 = vpop.permute.xlu0 %1174
    %1176 = vrot.lane.b32.xlu0 %v1043, 127
    %v1177 = vpop.permute.xlu0 %1176
    %1178 = vrot.lane.b32.xlu0 %v1044, 127
    %v1179 = vpop.permute.xlu0 %1178
    %1180 = vrot.lane.b32.xlu0 %v1060, 127
    %v1181 = vpop.permute.xlu0 %1180
    %1182 = vrot.lane.b32.xlu0 %v1070, 127
    %v1183 = vpop.permute.xlu0 %1182
    %1184 = vrot.lane.b32.xlu0 %v1071, 127
    %v1185 = vpop.permute.xlu0 %1184
    %1186 = vrot.lane.b32.xlu0 %v1072, 127
    %v1187 = vpop.permute.xlu0 %1186
    %1188 = vrot.lane.b32.xlu0 %v1073, 127
    %v1189 = vpop.permute.xlu0 %1188
    %1190 = vrot.lane.b32.xlu0 %v1068, 127
    %v1191 = vpop.permute.xlu0 %1190
    %1192 = vrot.lane.b32.xlu0 %v1087, 127
    %v1193 = vpop.permute.xlu0 %1192
    %1194 = vrot.lane.b32.xlu0 %v1098, 127
    %v1195 = vpop.permute.xlu0 %1194
    %1196 = vrot.lane.b32.xlu0 %v1099, 127
    %v1197 = vpop.permute.xlu0 %1196
    %1198 = vrot.lane.b32.xlu0 %v1100, 127
    %v1199 = vpop.permute.xlu0 %1198
    %1200 = vrot.lane.b32.xlu0 %v1101, 127
    %v1201 = vpop.permute.xlu0 %1200
    %1202 = vrot.lane.b32.xlu0 %v1102, 127
    %v1203 = vpop.permute.xlu0 %1202
    %v1204 = vsel %vm500, %v1169, %v1171
    %v1205 = vsel %vm500, %v1171, %v1173
    %v1206 = vsel %vm500, %v1173, %v1175
    %v1207 = vsel %vm500, %v1175, %v1177
    %v1208 = vsel %vm500, %v1177, %v1179
    %v1209 = vsel %vm500, %v1181, %v1183
    %v1210 = vsel %vm500, %v1183, %v1185
    %v1211 = vsel %vm500, %v1185, %v1187
    %v1212 = vsel %vm500, %v1187, %v1189
    %v1213 = vsel %vm500, %v1189, %v1191
    %v1214 = vsel %vm500, %v1193, %v1195
    %v1215 = vsel %vm500, %v1195, %v1197
    %v1216 = vsel %vm500, %v1197, %v1199
    %v1217 = vsel %vm500, %v1199, %v1201
    %v1218 = vsel %vm500, %v1201, %v1203
    %1237 = vrot.lane.b32.xlu0 %v1150, 126
    %v1238 = vpop.permute.xlu0 %1237
    %1239 = vrot.lane.b32.xlu0 %v1151, 126
    %v1240 = vpop.permute.xlu0 %1239
    %1241 = vrot.lane.b32.xlu0 %v1152, 126
    %v1242 = vpop.permute.xlu0 %1241
    %1243 = vrot.lane.b32.xlu0 %v1153, 126
    %v1244 = vpop.permute.xlu0 %1243
    %1245 = vrot.lane.b32.xlu0 %v1154, 126
    %v1246 = vpop.permute.xlu0 %1245
    %1247 = vrot.lane.b32.xlu0 %v1155, 126
    %v1248 = vpop.permute.xlu0 %1247
    %1249 = vrot.lane.b32.xlu0 %v1156, 126
    %v1250 = vpop.permute.xlu0 %1249
    %1251 = vrot.lane.b32.xlu0 %v1157, 126
    %v1252 = vpop.permute.xlu0 %1251
    %1253 = vrot.lane.b32.xlu0 %v1158, 126
    %v1254 = vpop.permute.xlu0 %1253
    %1255 = vrot.lane.b32.xlu0 %v1159, 126
    %v1256 = vpop.permute.xlu0 %1255
    %1257 = vrot.lane.b32.xlu0 %v1160, 126
    %v1258 = vpop.permute.xlu0 %1257
    %1259 = vrot.lane.b32.xlu0 %v1161, 126
    %v1260 = vpop.permute.xlu0 %1259
    %1261 = vrot.lane.b32.xlu0 %v1162, 126
    %v1262 = vpop.permute.xlu0 %1261
    %1263 = vrot.lane.b32.xlu0 %v1163, 126
    %v1264 = vpop.permute.xlu0 %1263
    %1265 = vrot.lane.b32.xlu0 %v1164, 126
    %v1266 = vpop.permute.xlu0 %1265
    %1267 = vrot.lane.b32.xlu0 %v1165, 126
    %v1268 = vpop.permute.xlu0 %1267
    %1269 = vrot.lane.b32.xlu0 %v1166, 126
    %v1270 = vpop.permute.xlu0 %1269
    %1271 = vrot.lane.b32.xlu0 %v1167, 126
    %v1272 = vpop.permute.xlu0 %1271
    %v1273 = vsel %vm570, %v1238, %v1240
    %v1274 = vsel %vm570, %v1240, %v1242
    %v1275 = vsel %vm570, %v1242, %v1244
    %v1276 = vsel %vm570, %v1244, %v1246
    %v1277 = vsel %vm570, %v1246, %v1248
    %v1278 = vsel %vm570, %v1250, %v1252
    %v1279 = vsel %vm570, %v1252, %v1254
    %v1280 = vsel %vm570, %v1254, %v1256
    %v1281 = vsel %vm570, %v1256, %v1258
    %v1282 = vsel %vm570, %v1258, %v1260
    %v1283 = vsel %vm570, %v1262, %v1264
    %v1284 = vsel %vm570, %v1264, %v1266
    %v1285 = vsel %vm570, %v1266, %v1268
    %v1286 = vsel %vm570, %v1268, %v1270
    %v1287 = vsel %vm570, %v1270, %v1272
    %v1290 = vunpack.c.l.b16 %v1037
    %v1291 = vunpack.c.h.b16 %v1037
    %v1292 = vunpack.c.l.b16 %v1038
    %v1293 = vunpack.c.h.b16 %v1038
    %v1294 = vpack.c.b16 %v1292, %v1290
    %v1295 = vpack.c.b16 %v1293, %v1291
    %1315 = vrot.lane.b32.xlu0 %v1109, 17
    %v1316 = vpop.permute.xlu0 %1315
    %1317 = vrot.lane.b32.xlu0 %v1110, 17
    %v1318 = vpop.permute.xlu0 %1317
    %1319 = vrot.lane.b32.xlu0 %v1111, 17
    %v1320 = vpop.permute.xlu0 %1319
    %1321 = vrot.lane.b32.xlu0 %v1112, 17
    %v1322 = vpop.permute.xlu0 %1321
    %1323 = vrot.lane.b32.xlu0 %v1113, 17
    %v1324 = vpop.permute.xlu0 %1323
    %1325 = vrot.lane.b32.xlu0 %v1114, 17
    %v1326 = vpop.permute.xlu0 %1325
    %1327 = vrot.lane.b32.xlu0 %v1115, 17
    %v1328 = vpop.permute.xlu0 %1327
    %1329 = vrot.lane.b32.xlu0 %v1116, 17
    %v1330 = vpop.permute.xlu0 %1329
    %1331 = vrot.lane.b32.xlu0 %v1117, 17
    %v1332 = vpop.permute.xlu0 %1331
    %1333 = vrot.lane.b32.xlu0 %v1118, 17
    %v1334 = vpop.permute.xlu0 %1333
    %1335 = vrot.lane.b32.xlu0 %v1119, 17
    %v1336 = vpop.permute.xlu0 %1335
    %1337 = vrot.lane.b32.xlu0 %v1120, 17
    %v1338 = vpop.permute.xlu0 %1337
    %1339 = vrot.lane.b32.xlu0 %v1121, 17
    %v1340 = vpop.permute.xlu0 %1339
    %1341 = vrot.lane.b32.xlu0 %v1122, 17
    %v1342 = vpop.permute.xlu0 %1341
    %1343 = vrot.lane.b32.xlu0 %v1123, 17
    %v1344 = vpop.permute.xlu0 %1343
    %1345 = vrot.lane.b32.xlu0 %v1124, 17
    %v1346 = vpop.permute.xlu0 %1345
    %1347 = vrot.lane.b32.xlu0 %v1125, 17
    %v1348 = vpop.permute.xlu0 %1347
    %1349 = vrot.lane.b32.xlu0 %v1126, 17
    %v1350 = vpop.permute.xlu0 %1349
    %1351 = vrot.lane.b32.xlu0 %v1204, 17
    %v1352 = vpop.permute.xlu0 %1351
    %1353 = vrot.lane.b32.xlu0 %v1205, 17
    %v1354 = vpop.permute.xlu0 %1353
    %1355 = vrot.lane.b32.xlu0 %v1206, 17
    %v1356 = vpop.permute.xlu0 %1355
    %1357 = vrot.lane.b32.xlu0 %v1207, 17
    %v1358 = vpop.permute.xlu0 %1357
    %1359 = vrot.lane.b32.xlu0 %v1208, 17
    %v1360 = vpop.permute.xlu0 %1359
    %1361 = vrot.lane.b32.xlu0 %v1179, 17
    %v1362 = vpop.permute.xlu0 %1361
    %1363 = vrot.lane.b32.xlu0 %v1209, 17
    %v1364 = vpop.permute.xlu0 %1363
    %1365 = vrot.lane.b32.xlu0 %v1210, 17
    %v1366 = vpop.permute.xlu0 %1365
    %1367 = vrot.lane.b32.xlu0 %v1211, 17
    %v1368 = vpop.permute.xlu0 %1367
    %1369 = vrot.lane.b32.xlu0 %v1212, 17
    %v1370 = vpop.permute.xlu0 %1369
    %1371 = vrot.lane.b32.xlu0 %v1213, 17
    %v1372 = vpop.permute.xlu0 %1371
    %1373 = vrot.lane.b32.xlu0 %v1191, 17
    %v1374 = vpop.permute.xlu0 %1373
    %1375 = vrot.lane.b32.xlu0 %v1214, 17
    %v1376 = vpop.permute.xlu0 %1375
    %1377 = vrot.lane.b32.xlu0 %v1215, 17
    %v1378 = vpop.permute.xlu0 %1377
    %1379 = vrot.lane.b32.xlu0 %v1216, 17
    %v1380 = vpop.permute.xlu0 %1379
    %1381 = vrot.lane.b32.xlu0 %v1217, 17
    %v1382 = vpop.permute.xlu0 %1381
    %1383 = vrot.lane.b32.xlu0 %v1218, 17
    %v1384 = vpop.permute.xlu0 %1383
    %1385 = vrot.lane.b32.xlu0 %v1203, 17
    %v1386 = vpop.permute.xlu0 %1385
    %1387 = vrot.lane.b32.xlu0 %v1273, 17
    %v1388 = vpop.permute.xlu0 %1387
    %1389 = vrot.lane.b32.xlu0 %v1274, 17
    %v1390 = vpop.permute.xlu0 %1389
    %1391 = vrot.lane.b32.xlu0 %v1275, 17
    %v1392 = vpop.permute.xlu0 %1391
    %1393 = vrot.lane.b32.xlu0 %v1276, 17
    %v1394 = vpop.permute.xlu0 %1393
    %1395 = vrot.lane.b32.xlu0 %v1277, 17
    %v1396 = vpop.permute.xlu0 %1395
    %1397 = vrot.lane.b32.xlu0 %v1248, 17
    %v1398 = vpop.permute.xlu0 %1397
    %1399 = vrot.lane.b32.xlu0 %v1278, 17
    %v1400 = vpop.permute.xlu0 %1399
    %1401 = vrot.lane.b32.xlu0 %v1279, 17
    %v1402 = vpop.permute.xlu0 %1401
    %1403 = vrot.lane.b32.xlu0 %v1280, 17
    %v1404 = vpop.permute.xlu0 %1403
    %1405 = vrot.lane.b32.xlu0 %v1281, 17
    %v1406 = vpop.permute.xlu0 %1405
    %1407 = vrot.lane.b32.xlu0 %v1282, 17
    %v1408 = vpop.permute.xlu0 %1407
    %1409 = vrot.lane.b32.xlu0 %v1260, 17
    %v1410 = vpop.permute.xlu0 %1409
    %1411 = vrot.lane.b32.xlu0 %v1283, 17
    %v1412 = vpop.permute.xlu0 %1411
    %1413 = vrot.lane.b32.xlu0 %v1284, 17
    %v1414 = vpop.permute.xlu0 %1413
    %1415 = vrot.lane.b32.xlu0 %v1285, 17
    %v1416 = vpop.permute.xlu0 %1415
    %1417 = vrot.lane.b32.xlu0 %v1286, 17
    %v1418 = vpop.permute.xlu0 %1417
    %1419 = vrot.lane.b32.xlu0 %v1287, 17
    %v1420 = vpop.permute.xlu0 %1419
    %1421 = vrot.lane.b32.xlu0 %v1272, 17
    %v1422 = vpop.permute.xlu0 %1421
    %v1423 = vsel %vm721, %v1316, %v1318
    %v1424 = vsel %vm721, %v1318, %v1320
    %v1425 = vsel %vm721, %v1320, %v1322
    %v1426 = vsel %vm721, %v1322, %v1324
    %v1427 = vsel %vm721, %v1324, %v1326
    %v1428 = vsel %vm721, %v1328, %v1330
    %v1429 = vsel %vm721, %v1330, %v1332
    %v1430 = vsel %vm721, %v1332, %v1334
    %v1431 = vsel %vm721, %v1334, %v1336
    %v1432 = vsel %vm721, %v1336, %v1338
    %v1433 = vsel %vm721, %v1340, %v1342
    %v1434 = vsel %vm721, %v1342, %v1344
    %v1435 = vsel %vm721, %v1344, %v1346
    %v1436 = vsel %vm721, %v1346, %v1348
    %v1437 = vsel %vm721, %v1348, %v1350
    %v1438 = vsel %vm721, %v1352, %v1354
    %v1439 = vsel %vm721, %v1354, %v1356
    %v1440 = vsel %vm721, %v1356, %v1358
    %v1441 = vsel %vm721, %v1358, %v1360
    %v1442 = vsel %vm721, %v1360, %v1362
    %v1443 = vsel %vm721, %v1364, %v1366
    %v1444 = vsel %vm721, %v1366, %v1368
    %v1445 = vsel %vm721, %v1368, %v1370
    %v1446 = vsel %vm721, %v1370, %v1372
    %v1447 = vsel %vm721, %v1372, %v1374
    %v1448 = vsel %vm721, %v1376, %v1378
    %v1449 = vsel %vm721, %v1378, %v1380
    %v1450 = vsel %vm721, %v1380, %v1382
    %v1451 = vsel %vm721, %v1382, %v1384
    %v1452 = vsel %vm721, %v1384, %v1386
    %v1453 = vsel %vm721, %v1388, %v1390
    %v1454 = vsel %vm721, %v1390, %v1392
    %v1455 = vsel %vm721, %v1392, %v1394
    %v1456 = vsel %vm721, %v1394, %v1396
    %v1457 = vsel %vm721, %v1396, %v1398
    %v1458 = vsel %vm721, %v1400, %v1402
    %v1459 = vsel %vm721, %v1402, %v1404
    %v1460 = vsel %vm721, %v1404, %v1406
    %v1461 = vsel %vm721, %v1406, %v1408
    %v1462 = vsel %vm721, %v1408, %v1410
    %v1463 = vsel %vm721, %v1412, %v1414
    %v1464 = vsel %vm721, %v1414, %v1416
    %v1465 = vsel %vm721, %v1416, %v1418
    %v1466 = vsel %vm721, %v1418, %v1420
    %v1467 = vsel %vm721, %v1420, %v1422
    %v1514 = vsel %vm812, %v1295, 0
    %1516 = vmatprep.subr.bf16.mxu0 %v1424
    %1517 = vmatpush1.bf16.msra.mxu0 %v1423
    %1518 = vmatprep.subr.bf16.mxu0 %v1429
    %1519 = vmatpush1.bf16.msra.mxu0 %v1428
    %1520 = vmatprep.subr.bf16.mxu0 %v1434
    %1521 = vmatpush1.bf16.msra.mxu0 %v1433
    %1522 = vmatprep.subr.bf16.mxu0 %v1439
    %1523 = vmatpush1.bf16.msra.mxu0 %v1438
    %1524 = vmatprep.subr.bf16.mxu0 %v1444
    %1525 = vmatpush1.bf16.msra.mxu0 %v1443
    %1526 = vmatprep.subr.bf16.mxu0 %v1449
    %1527 = vmatpush1.bf16.msra.mxu0 %v1448
    %1528 = vmatprep.subr.bf16.mxu0 %v1454
    %1529 = vmatpush1.bf16.msra.mxu0 %v1453
    %1530 = vmatprep.subr.bf16.mxu0 %v1459
    %1531 = vmatpush1.bf16.msra.mxu0 %v1458
    %1532 = vmatprep.subr.bf16.mxu0 %v1464
    %1533 = vmatpush1.bf16.msra.mxu0 %v1463
    %1534 = vmatprep.subr.bf16.mxu0 0
    %1535 = vmatpush1.bf16.msra.mxu0 0
    %1536 = vmatprep.subr.bf16.mxu0 0
    %1537 = vmatpush1.bf16.msra.mxu0 0
    %1538 = vmatprep.subr.bf16.mxu0 0
    %1539 = vmatpush1.bf16.msra.mxu0 0
    %1540 = vmatprep.subr.bf16.mxu0 0
    %1541 = vmatpush1.bf16.msra.mxu0 0
    %1542 = vmatprep.subr.bf16.mxu0 0
    %1543 = vmatpush1.bf16.msra.mxu0 0
    %1544 = vmatprep.subr.bf16.mxu0 0
    %1545 = vmatpush1.bf16.msra.mxu0 0
    %1546 = vmatprep.subr.bf16.mxu0 0
    %1547 = vmatpush1.bf16.msra.mxu0 0
    %1548 = vmatprep.mubr.bf16.mxu0 %v1514
    %1549 = vmatmul.mubr.bf16.gmra.mrb[0].mxu0 %v1294
    %v1550 = vpop.f32.mrb[0].mxu0
    %v1551 = vadd.f32 0.0, %v1550
    %v1552 = vpop.f32.mrb[0].mxu0
    %v1553 = vadd.f32 0.0, %v1552
    %v1554 = vpop.f32.mrb[0].mxu0
    %v1555 = vadd.f32 0.0, %v1554
    %v1556 = vpop.f32.mrb[0].mxu0
    %v1557 = vadd.f32 0.0, %v1556
    %1558 = vdwg.mxu0
    %1559 = vmatprep.subr.bf16.mxu0 %v1426
    %1560 = vmatpush1.bf16.msra.mxu0 %v1425
    %1561 = vmatprep.subr.bf16.mxu0 %v1431
    %1562 = vmatpush1.bf16.msra.mxu0 %v1430
    %1563 = vmatprep.subr.bf16.mxu0 %v1436
    %1564 = vmatpush1.bf16.msra.mxu0 %v1435
    %1565 = vmatprep.subr.bf16.mxu0 %v1441
    %1566 = vmatpush1.bf16.msra.mxu0 %v1440
    %1567 = vmatprep.subr.bf16.mxu0 %v1446
    %1568 = vmatpush1.bf16.msra.mxu0 %v1445
    %1569 = vmatprep.subr.bf16.mxu0 %v1451
    %1570 = vmatpush1.bf16.msra.mxu0 %v1450
    %1571 = vmatprep.subr.bf16.mxu0 %v1456
    %1572 = vmatpush1.bf16.msra.mxu0 %v1455
    %1573 = vmatprep.subr.bf16.mxu0 %v1461
    %1574 = vmatpush1.bf16.msra.mxu0 %v1460
    %1575 = vmatprep.subr.bf16.mxu0 %v1466
    %1576 = vmatpush1.bf16.msra.mxu0 %v1465
    %1577 = vmatprep.subr.bf16.mxu0 0
    %1578 = vmatpush1.bf16.msra.mxu0 0
    %1579 = vmatprep.subr.bf16.mxu0 0
    %1580 = vmatpush1.bf16.msra.mxu0 0
    %1581 = vmatprep.subr.bf16.mxu0 0
    %1582 = vmatpush1.bf16.msra.mxu0 0
    %1583 = vmatprep.subr.bf16.mxu0 0
    %1584 = vmatpush1.bf16.msra.mxu0 0
    %1585 = vmatprep.subr.bf16.mxu0 0
    %1586 = vmatpush1.bf16.msra.mxu0 0
    %1587 = vmatprep.subr.bf16.mxu0 0
    %1588 = vmatpush1.bf16.msra.mxu0 0
    %1589 = vmatprep.subr.bf16.mxu0 0
    %1590 = vmatpush1.bf16.msra.mxu0 0
    %1591 = vmatprep.mubr.bf16.mxu0 %v1514
    %1592 = vmatmul.mubr.bf16.gmra.mrb[0].mxu0 %v1294
    %v1593 = vpop.f32.mrb[0].mxu0
    %v1594 = vpop.f32.mrb[0].mxu0
    %v1595 = vadd.f32 0.0, %v1594
    %v1596 = vpop.f32.mrb[0].mxu0
    %v1597 = vpop.f32.mrb[0].mxu0
    %v1598 = vadd.f32 0.0, %v1597
    %1599 = vdwg.mxu0
    %1600 = vmatprep.subr.bf16.mxu0 0
    %1601 = vmatpush1.bf16.msra.mxu0 %v1427
    %1602 = vmatprep.subr.bf16.mxu0 0
    %1603 = vmatpush1.bf16.msra.mxu0 %v1432
    %1604 = vmatprep.subr.bf16.mxu0 0
    %1605 = vmatpush1.bf16.msra.mxu0 %v1437
    %1606 = vmatprep.subr.bf16.mxu0 0
    %1607 = vmatpush1.bf16.msra.mxu0 %v1442
    %1608 = vmatprep.subr.bf16.mxu0 0
    %1609 = vmatpush1.bf16.msra.mxu0 %v1447
    %1610 = vmatprep.subr.bf16.mxu0 0
    %1611 = vmatpush1.bf16.msra.mxu0 %v1452
    %1612 = vmatprep.subr.bf16.mxu0 0
    %1613 = vmatpush1.bf16.msra.mxu0 %v1457
    %1614 = vmatprep.subr.bf16.mxu0 0
    %1615 = vmatpush1.bf16.msra.mxu0 %v1462
    %1616 = vmatprep.subr.bf16.mxu0 0
    %1617 = vmatpush1.bf16.msra.mxu0 %v1467
    %1618 = vmatprep.subr.bf16.mxu0 0
    %1619 = vmatpush1.bf16.msra.mxu0 0
    %1620 = vmatprep.subr.bf16.mxu0 0
    %1621 = vmatpush1.bf16.msra.mxu0 0
    %1622 = vmatprep.subr.bf16.mxu0 0
    %1623 = vmatpush1.bf16.msra.mxu0 0
    %1624 = vmatprep.subr.bf16.mxu0 0
    %1625 = vmatpush1.bf16.msra.mxu0 0
    %1626 = vmatprep.subr.bf16.mxu0 0
    %1627 = vmatpush1.bf16.msra.mxu0 0
    %1628 = vmatprep.subr.bf16.mxu0 0
    %1629 = vmatpush1.bf16.msra.mxu0 0
    %1630 = vmatprep.subr.bf16.mxu0 0
    %1631 = vmatpush1.bf16.msra.mxu0 0
    %1632 = vmatprep.mubr.bf16.mxu0 %v1514
    %1633 = vmatmul.mubr.bf16.gmra.mrb[0].mxu0 %v1294
    %v1634 = vpop.f32.mrb[0].mxu0
    %v1635 = vadd.f32 0.0, %v1634
    %v1636 = vpop.f32.mrb[0].mxu0
    %v1637 = vpop.f32.mrb[0].mxu0
    %v1638 = vadd.f32 0.0, %v1637
    %v1639 = vpop.f32.mrb[0].mxu0
    %1640 = vdwg.mxu0
    %v1641 = vadd.f32 %v1551, %v1553
    %1642 = vadd.xlane.f32.xlu0 %v1641
    %v1643 = vpop.xlane.xlu0 %1642
    %v1644 = vadd.f32 %v1555, %v1557
    %1645 = vadd.xlane.f32.xlu0 %v1644
    %v1646 = vpop.xlane.xlu0 %1645
    %v1647 = vmul.f32 %v1643, %v954
    %v1648 = vmul.f32 %v1646, %v954
    %v1649 = vsub.f32 %v1551, %v1647
    %v1650 = vsub.f32 %v1553, %v1647
    %v1651 = vsub.f32 %v1555, %v1648
    %v1652 = vsub.f32 %v1557, %v1648
    %v1653 = vmul.f32 %v1649, %v1649
    %v1654 = vmul.f32 %v1650, %v1650
    %v1655 = vmul.f32 %v1651, %v1651
    %v1656 = vmul.f32 %v1652, %v1652
    %v1657 = vadd.f32 %v1653, %v1654
    %1658 = vadd.xlane.f32.xlu0 %v1657
    %v1659 = vpop.xlane.xlu0 %1658
    %v1660 = vadd.f32 %v1655, %v1656
    %1661 = vadd.xlane.f32.xlu0 %v1660
    %v1662 = vpop.xlane.xlu0 %1661
    %v1663 = vmul.f32 %v1659, %v954
    %v1664 = vmul.f32 %v1662, %v954
    %v1665 = vadd.f32 %v1663, 1e-05
    %v1666 = vadd.f32 %v1664, 1e-05
    %v1667 = vrsqrt.pop %v1665
    %v1668 = vrsqrt.pop %v1666
    %v1669 = vmul.f32 %v1649, %v1667
    %v1670 = vmul.f32 %v1650, %v1667
    %v1671 = vmul.f32 %v1651, %v1668
    %v1672 = vmul.f32 %v1652, %v1668
    %v1673 = vmul.f32 %v1669, 0.01
    %v1674 = vmul.f32 %v1670, 0.01
    %v1675 = vmul.f32 %v1671, 0.01
    %v1676 = vmul.f32 %v1672, 0.01
    %v1677 = vmax.f32 %v1669, %v1673
    %v1678 = vmax.f32 %v1670, %v1674
    %v1679 = vmax.f32 %v1671, %v1675
    %v1680 = vmax.f32 %v1672, %v1676
    %1681 = vst [vmem:[#allocation10] sm:$0xff] %v1677
    %1682 = vst [vmem:[#allocation10 + $0x8] sm:$0xff] %v1678
    %1683 = vst [vmem:[#allocation10 + $0x10] sm:$0xff] %v1679
    %1684 = vst [vmem:[#allocation10 + $0x18] sm:$0xff] %v1680
    %v1685 = vadd.f32 %v1595, %v1635
    %1686 = vadd.xlane.f32.xlu0 %v1685
    %v1687 = vpop.xlane.xlu0 %1686
    %v1688 = vadd.f32 %v1598, %v1638
    %1689 = vadd.xlane.f32.xlu0 %v1688
    %v1690 = vpop.xlane.xlu0 %1689
    %v1691 = vmul.f32 %v1687, %v954
    %v1692 = vmul.f32 %v1690, %v954
    %v1693 = vsub.f32 %v1595, %v1691
    %v1694 = vsub.f32 %v1635, %v1691
    %v1695 = vsub.f32 %v1598, %v1692
    %v1696 = vsub.f32 %v1638, %v1692
    %v1697 = vmul.f32 %v1693, %v1693
    %v1698 = vmul.f32 %v1694, %v1694
    %v1699 = vmul.f32 %v1695, %v1695
    %v1700 = vmul.f32 %v1696, %v1696
    %v1701 = vadd.f32 %v1697, %v1698
    %1702 = vadd.xlane.f32.xlu0 %v1701
    %v1703 = vpop.xlane.xlu0 %1702
    %v1704 = vadd.f32 %v1699, %v1700
    %1705 = vadd.xlane.f32.xlu0 %v1704
    %v1706 = vpop.xlane.xlu0 %1705
    %v1707 = vmul.f32 %v1703, %v954
    %v1708 = vmul.f32 %v1706, %v954
    %v1709 = vadd.f32 %v1707, 1e-05
    %v1710 = vadd.f32 %v1708, 1e-05
    %v1711 = vrsqrt.pop %v1709
    %v1712 = vrsqrt.pop %v1710
    %v1713 = vmul.f32 %v1693, %v1711
    %v1714 = vmul.f32 %v1694, %v1711
    %v1715 = vmul.f32 %v1695, %v1712
    %v1716 = vmul.f32 %v1696, %v1712
    %v1717 = vmul.f32 %v1713, 0.01
    %v1718 = vmul.f32 %v1714, 0.01
    %v1719 = vmul.f32 %v1715, 0.01
    %v1720 = vmul.f32 %v1716, 0.01
    %v1721 = vmax.f32 %v1713, %v1717
    %v1722 = vmax.f32 %v1714, %v1718
    %v1723 = vmax.f32 %v1715, %v1719
    %v1724 = vmax.f32 %v1716, %v1720
    %s1725 = scalar_lea.vmem [#allocation10], 32
    %1726 = vst [vmem:[%s1725] sm:$0xff] %v1721
    %1727 = vst [vmem:[%s1725 + $0x8] sm:$0xff] %v1722
    %1728 = vst [vmem:[%s1725 + $0x10] sm:$0xff] %v1723
    %1729 = vst [vmem:[%s1725 + $0x18] sm:$0xff] %v1724
    // Predicated region
    $region26: #{tpu_custom_call.1} parent=1 // pred_check
      _
    $region27: #{tpu_custom_call.1} parent=1 // pred_check_branch
      %1731 = sbr.rel (0) target = $region29
    $region28: #{tpu_custom_call.1} parent=1 // pred_region
      %s1733 = ssub.s32 1024, 1024
      %1734 = vsyncadd [#allocation6], %s1733
      %s1735 = sshll.u32 [#allocation10], 4
      %s1736 = int_to_ptr.vmem [resolvable:$true] %s1735
      %1741 = dma.vmem_to_hbm [thread:$0]  %s1736, 1024, %s3, [#allocation6], 256, 256, 16
    $region29: #{tpu_custom_call.1} parent=1 // pred_fallthru
      _
    // Predicated region
    $region30: #{tpu_custom_call.1} parent=1 // pred_check
      _
    $region31: #{tpu_custom_call.1} parent=1 // pred_check_branch
      %1743 = sbr.rel (0) target = $region33
    $region32: #{tpu_custom_call.1} parent=1 // pred_region
      %1744 = dma.done [#allocation6], 1024
    $region33: #{tpu_custom_call.1} parent=1 // pred_fallthru
      _
    %1745 = vsyncpa [#allocation5], 1
    %1746 = vsyncpa [#allocation8], 1
    %1747 = vsyncpa [#allocation6], 1

// kernel: tpu_custom_call.1
$region0: #{tpu_custom_call.1}
  #allocation0 [shape = 'u32[]', space=smem, size = 0x4, offset = 0x4, fixed_abs, tag = 'smem constant byte address 0x4 - core index']
  #allocation1 [shape = 'u32[144,128]{1,0:T(1,128)}', space=vmem, size = 0x12000, scoped, tag = 'internal scratch']
  #allocation2 [shape = 'bf16[16,896]{1,0:T(16,128)(2,1)}', space=vmem, size = 0x7000, scoped, tag = 'scratch operand']
  #allocation3 [shape = 'bf16[16,896]{1,0:T(16,128)(2,1)}', space=vmem, size = 0x7000, scoped, tag = 'scratch operand']
  %s0 = inlined_call_operand.hbm [shape: bf16[2,4,256], index: 0, kind: input, shape index: {}]
  %s1 = inlined_call_operand.hbm [shape: bf16[16,144], index: 1, kind: input, shape index: {}]
  %s2 = inlined_call_operand.hbm [shape: bf16[16,144], index: 2, kind: input, shape index: {}]
  %s3 = inlined_call_operand.hbm [shape: f32[2,16,256], index: 3, kind: output, shape index: {}]
  %s4 = sld [smem:[#allocation0]]
  $region34: #{tpu_custom_call.1} parent=0
    _
  %s6 = ssub.s32 1, %s4
  %s7 = scalar_select 0, %s6, %s4
  $region1: #{tpu_custom_call.1} parent=0
    #allocation4 [shape = 'u8[4096]{0}', space=vmem, size = 0x1000, scoped, tag = 'input window, operand 0, single buffered']
    #allocation5 [shape = 's32[1]{0}', space=sflag, size = 0x4, scoped, tag = 'scoped memory for tpu_custom_call.1']
    #allocation6 [shape = 's32[1]{0}', space=sflag, size = 0x4, scoped, tag = 'scoped memory for tpu_custom_call.1']
    #allocation7 [shape = 'u8[8192]{0}', space=vmem, size = 0x2000, scoped, tag = 'input window, operand 1, single buffered']
    #allocation8 [shape = 's32[1]{0}', space=sflag, size = 0x4, scoped, tag = 'scoped memory for tpu_custom_call.1']
    #allocation9 [shape = 'u8[8192]{0}', space=vmem, size = 0x2000, scoped, tag = 'input window, operand 2, single buffered']
    #allocation10 [shape = 'u8[32768]{0}', space=vmem, size = 0x8000, scoped, tag = 'output window, operand 0, single buffered']
    %8 = vsyncpa [#allocation5], 0
    %9 = vsyncpa [#allocation8], 0
    %10 = vsyncpa [#allocation6], 0
    // Predicated region
    $region2: #{tpu_custom_call.1} parent=1 // pred_check
      _
    $region3: #{tpu_custom_call.1} parent=1 // pred_check_branch
      %12 = sbr.rel (0) target = $region5
    $region4: #{tpu_custom_call.1} parent=1 // pred_region
      %s14 = ssub.s32 128, 128
      %15 = vsyncadd [#allocation5], %s14
      %s16 = sshll.u32 [#allocation4], 4
      %s17 = int_to_ptr.vmem [resolvable:$true] %s16
      %22 = dma.hbm_to_vmem [thread:$0]  %s0, 128, %s17, [#allocation5], 64, 64, 4
    $region5: #{tpu_custom_call.1} parent=1 // pred_fallthru
      _
    // Predicated region
    $region6: #{tpu_custom_call.1} parent=1 // pred_check
      _
    $region7: #{tpu_custom_call.1} parent=1 // pred_check_branch
      %24 = sbr.rel (0) target = $region9
    $region8: #{tpu_custom_call.1} parent=1 // pred_region
      %s26 = ssub.s32 256, 256
      %27 = vsyncadd [#allocation8], %s26
      %s28 = sshll.u32 [#allocation7], 4
      %s29 = int_to_ptr.vmem [resolvable:$true] %s28
      %34 = dma.hbm_to_vmem [thread:$0]  %s1, 256, %s29, [#allocation8], 128, 128, 8
    $region9: #{tpu_custom_call.1} parent=1 // pred_fallthru
      _
    // Predicated region
    $region10: #{tpu_custom_call.1} parent=1 // pred_check
      _
    $region11: #{tpu_custom_call.1} parent=1 // pred_check_branch
      %36 = sbr.rel (0) target = $region13
    $region12: #{tpu_custom_call.1} parent=1 // pred_region
      %s38 = ssub.s32 256, 256
      %39 = vsyncadd [#allocation8], %s38
      %s40 = sshll.u32 [#allocation9], 4
      %s41 = int_to_ptr.vmem [resolvable:$true] %s40
      %46 = dma.hbm_to_vmem [thread:$0]  %s2, 256, %s41, [#allocation8], 128, 128, 8
    $region13: #{tpu_custom_call.1} parent=1 // pred_fallthru
      _
    // Predicated region
    $region14: #{tpu_custom_call.1} parent=1 // pred_check
      _
    $region15: #{tpu_custom_call.1} parent=1 // pred_check_branch
      %48 = sbr.rel (0) target = $region17
    $region16: #{tpu_custom_call.1} parent=1 // pred_region
      %49 = dma.done [#allocation5], 128
    $region17: #{tpu_custom_call.1} parent=1 // pred_fallthru
      _
    // Predicated region
    $region18: #{tpu_custom_call.1} parent=1 // pred_check
      _
    $region19: #{tpu_custom_call.1} parent=1 // pred_check_branch
      %51 = sbr.rel (0) target = $region21
    $region20: #{tpu_custom_call.1} parent=1 // pred_region
      %52 = dma.done [#allocation8], 256
    $region21: #{tpu_custom_call.1} parent=1 // pred_fallthru
      _
    // Predicated region
    $region22: #{tpu_custom_call.1} parent=1 // pred_check
      _
    $region23: #{tpu_custom_call.1} parent=1 // pred_check_branch
      %54 = sbr.rel (0) target = $region25
    $region24: #{tpu_custom_call.1} parent=1 // pred_region
      %55 = dma.done [#allocation8], 256
    $region25: #{tpu_custom_call.1} parent=1 // pred_fallthru
      _
    %v57 = vlaneseq
    %v58 = vand.u32 %v57, 127
    %v59 = vadd.s32 %v58, 128
    %v60 = vadd.s32 %v58, 256
    %v61 = vadd.s32 %v58, 384
    %v62 = vadd.s32 %v58, 512
    %vm63 = vcmp.lt.s32.totalorder %v58, 0
    %v64 = vsub.s32 0, %v58
    %v65 = vsel %vm63, %v64, %v58
    %v66 = vmul.u32.u64.compose %v65, 2863311531
    %v67 = vextract.low.u32 %v66
    %v68 = vextract.high.u32 %v66
    %v69 = vshrl.u32 %v68, 8
    %v70 = vmul.u32 %v69, 384
    %v71 = vsub.s32 %v65, %v70
    %v72 = vsub.s32 0, %v71
    %v73 = vsel %vm63, %v72, %v71
    %vm74 = vcmp.lt.s32.totalorder %v59, 0
    %v75 = vsub.s32 0, %v59
    %v76 = vsel %vm74, %v75, %v59
    %v77 = vmul.u32.u64.compose %v76, 2863311531
    %v78 = vextract.low.u32 %v77
    %v79 = vextract.high.u32 %v77
    %v80 = vshrl.u32 %v79, 8
    %v81 = vmul.u32 %v80, 384
    %v82 = vsub.s32 %v76, %v81
    %v83 = vsub.s32 0, %v82
    %v84 = vsel %vm74, %v83, %v82
    %vm85 = vcmp.lt.s32.totalorder %v60, 0
    %v86 = vsub.s32 0, %v60
    %v87 = vsel %vm85, %v86, %v60
    %v88 = vmul.u32.u64.compose %v87, 2863311531
    %v89 = vextract.low.u32 %v88
    %v90 = vextract.high.u32 %v88
    %v91 = vshrl.u32 %v90, 8
    %v92 = vmul.u32 %v91, 384
    %v93 = vsub.s32 %v87, %v92
    %v94 = vsub.s32 0, %v93
    %v95 = vsel %vm85, %v94, %v93
    %vm96 = vcmp.lt.s32.totalorder %v61, 0
    %v97 = vsub.s32 0, %v61
    %v98 = vsel %vm96, %v97, %v61
    %v99 = vmul.u32.u64.compose %v98, 2863311531
    %v100 = vextract.low.u32 %v99
    %v101 = vextract.high.u32 %v99
    %v102 = vshrl.u32 %v101, 8
    %v103 = vmul.u32 %v102, 384
    %v104 = vsub.s32 %v98, %v103
    %v105 = vsub.s32 0, %v104
    %v106 = vsel %vm96, %v105, %v104
    %vm107 = vcmp.lt.s32.totalorder %v62, 0
    %v108 = vsub.s32 0, %v62
    %v109 = vsel %vm107, %v108, %v62
    %v110 = vmul.u32.u64.compose %v109, 2863311531
    %v111 = vextract.low.u32 %v110
    %v112 = vextract.high.u32 %v110
    %v113 = vshrl.u32 %v112, 8
    %v114 = vmul.u32 %v113, 384
    %v115 = vsub.s32 %v109, %v114
    %v116 = vsub.s32 0, %v115
    %v117 = vsel %vm107, %v116, %v115
    %vm118 = vcmp.ne.s32.totalorder %v73, 0
    %vm119 = vcmp.ne.s32.totalorder %v84, 0
    %vm120 = vcmp.ne.s32.totalorder %v95, 0
    %vm121 = vcmp.ne.s32.totalorder %v106, 0
    %vm122 = vcmp.ne.s32.totalorder %v117, 0
    %vm123 = vcmp.lt.s32.totalorder %v73, 0
    %vm124 = vcmp.lt.s32.totalorder %v84, 0
    %vm125 = vcmp.lt.s32.totalorder %v95, 0
    %vm126 = vcmp.lt.s32.totalorder %v106, 0
    %vm127 = vcmp.lt.s32.totalorder %v117, 0
    %vm128 = vmand %vm123, %vm118
    %vm129 = vmand %vm124, %vm119
    %vm130 = vmand %vm125, %vm120
    %vm131 = vmand %vm126, %vm121
    %vm132 = vmand %vm127, %vm122
    %v133 = vadd.s32 %v73, 384
    %v134 = vadd.s32 %v84, 384
    %v135 = vadd.s32 %v95, 384
    %v136 = vadd.s32 %v106, 384
    %v137 = vadd.s32 %v117, 384
    %v138 = vsel %vm128, %v133, %v73
    %v139 = vsel %vm129, %v134, %v84
    %v140 = vsel %vm130, %v135, %v95
    %v141 = vsel %vm131, %v136, %v106
    %v142 = vsel %vm132, %v137, %v117
    %vm143 = vcmp.lt.s32.totalorder %v138, 0
    %v144 = vsub.s32 0, %v138
    %v145 = vsel %vm143, %v144, %v138
    %v146 = vshrl.u32 %v145, 4
    %v147 = vand.u32 %v145, 15
    %v148 = vsub.s32 0, %v147
    %v149 = vsel %vm143, %v148, %v147
    %vm150 = vcmp.lt.s32.totalorder %v139, 0
    %v151 = vsub.s32 0, %v139
    %v152 = vsel %vm150, %v151, %v139
    %v153 = vshrl.u32 %v152, 4
    %v154 = vand.u32 %v152, 15
    %v155 = vsub.s32 0, %v154
    %v156 = vsel %vm150, %v155, %v154
    %vm157 = vcmp.lt.s32.totalorder %v140, 0
    %v158 = vsub.s32 0, %v140
    %v159 = vsel %vm157, %v158, %v140
    %v160 = vshrl.u32 %v159, 4
    %v161 = vand.u32 %v159, 15
    %v162 = vsub.s32 0, %v161
    %v163 = vsel %vm157, %v162, %v161
    %vm164 = vcmp.lt.s32.totalorder %v141, 0
    %v165 = vsub.s32 0, %v141
    %v166 = vsel %vm164, %v165, %v141
    %v167 = vshrl.u32 %v166, 4
    %v168 = vand.u32 %v166, 15
    %v169 = vsub.s32 0, %v168
    %v170 = vsel %vm164, %v169, %v168
    %vm171 = vcmp.lt.s32.totalorder %v142, 0
    %v172 = vsub.s32 0, %v142
    %v173 = vsel %vm171, %v172, %v142
    %v174 = vshrl.u32 %v173, 4
    %v175 = vand.u32 %v173, 15
    %v176 = vsub.s32 0, %v175
    %v177 = vsel %vm171, %v176, %v175
    %vm178 = vcmp.ne.s32.totalorder %v149, 0
    %vm179 = vcmp.ne.s32.totalorder %v156, 0
    %vm180 = vcmp.ne.s32.totalorder %v163, 0
    %vm181 = vcmp.ne.s32.totalorder %v170, 0
    %vm182 = vcmp.ne.s32.totalorder %v177, 0
    %vm183 = vcmp.lt.s32.totalorder %v149, 0
    %vm184 = vcmp.lt.s32.totalorder %v156, 0
    %vm185 = vcmp.lt.s32.totalorder %v163, 0
    %vm186 = vcmp.lt.s32.totalorder %v170, 0
    %vm187 = vcmp.lt.s32.totalorder %v177, 0
    %vm188 = vmand %vm183, %vm178
    %vm189 = vmand %vm184, %vm179
    %vm190 = vmand %vm185, %vm180
    %vm191 = vmand %vm186, %vm181
    %vm192 = vmand %vm187, %vm182
    %v193 = vadd.s32 %v149, 16
    %v194 = vadd.s32 %v156, 16
    %v195 = vadd.s32 %v163, 16
    %v196 = vadd.s32 %v170, 16
    %v197 = vadd.s32 %v177, 16
    %v198 = vsel %vm188, %v193, %v149
    %v199 = vsel %vm189, %v194, %v156
    %v200 = vsel %vm190, %v195, %v163
    %v201 = vsel %vm191, %v196, %v170
    %v202 = vsel %vm192, %v197, %v177
    %vm203 = vcmp.gt.s32.totalorder %v198, 0
    %vm204 = vcmp.gt.s32.totalorder %v199, 0
    %vm205 = vcmp.gt.s32.totalorder %v200, 0
    %vm206 = vcmp.gt.s32.totalorder %v201, 0
    %vm207 = vcmp.gt.s32.totalorder %v202, 0
    %v208 = vsel %vm203, 1, 0
    %v209 = vsel %vm204, 1, 0
    %v210 = vsel %vm205, 1, 0
    %v211 = vsel %vm206, 1, 0
    %v212 = vsel %vm207, 1, 0
    %v213 = vcvt.s32.f32 %v208
    %v214 = vcvt.s32.f32 %v209
    %v215 = vcvt.s32.f32 %v210
    %v216 = vcvt.s32.f32 %v211
    %v217 = vcvt.s32.f32 %v212
    %v218 = vpack.c.bf16 %v213, %v213
    %v219 = vpack.c.bf16 %v214, %v214
    %v220 = vpack.c.bf16 %v215, %v215
    %v221 = vpack.c.bf16 %v216, %v216
    %v222 = vpack.c.bf16 %v217, %v217
    %vm223 = vcmp.lt.s32.totalorder %v198, 15
    %vm224 = vcmp.lt.s32.totalorder %v199, 15
    %vm225 = vcmp.lt.s32.totalorder %v200, 15
    %vm226 = vcmp.lt.s32.totalorder %v201, 15
    %vm227 = vcmp.lt.s32.totalorder %v202, 15
    %v228 = vsel %vm223, 1, 0
    %v229 = vsel %vm224, 1, 0
    %v230 = vsel %vm225, 1, 0
    %v231 = vsel %vm226, 1, 0
    %v232 = vsel %vm227, 1, 0
    %v233 = vcvt.s32.f32 %v228
    %v234 = vcvt.s32.f32 %v229
    %v235 = vcvt.s32.f32 %v230
    %v236 = vcvt.s32.f32 %v231
    %v237 = vcvt.s32.f32 %v232
    %v238 = vpack.c.bf16 %v233, %v233
    %v239 = vpack.c.bf16 %v234, %v234
    %v240 = vpack.c.bf16 %v235, %v235
    %v241 = vpack.c.bf16 %v236, %v236
    %v242 = vpack.c.bf16 %v237, %v237
    %243 = vst [vmem:[#allocation2] sm:$0xff] 0
    %244 = vst [vmem:[#allocation2 + $0x8] sm:$0xff] 0
    %245 = vst [vmem:[#allocation2 + $0x10] sm:$0xff] 0
    %246 = vst [vmem:[#allocation2 + $0x18] sm:$0xff] 0
    %247 = vst [vmem:[#allocation2 + $0x20] sm:$0xff] 0
    %248 = vst [vmem:[#allocation2 + $0x28] sm:$0xff] 0
    %249 = vst [vmem:[#allocation2 + $0x30] sm:$0xff] 0
    %v250 = vld [vmem:[#allocation4] sm:$0xf]
    %v253 = vunpack.c.l.s4 1983009808
    %v254 = vunpack.c.0.s8 %v253
    %v255 = vlaneseq
    %v256 = vshrl.u32 %v255, 7
    %v257 = vsub.s32 %v254, %v256
    %v258 = vrot.slane %v250, %v257
    %v259 = vcombine.high %v258, %v258
    %262 = vst [vmem:[#allocation2 + $0x8] sm:$0x3] %v258
    %263 = vst [vmem:[#allocation2 + $0x10] sm:$0x3] %v259
    %s264 = scalar_lea.vmem [#allocation4], 4
    %v265 = vld [vmem:[%s264] sm:$0xf]
    %v268 = vunpack.c.l.s4 1983009808
    %v269 = vunpack.c.0.s8 %v268
    %v270 = vlaneseq
    %v271 = vshrl.u32 %v270, 7
    %v272 = vsub.s32 %v269, %v271
    %v273 = vrot.slane %v265, %v272
    %v274 = vcombine.high %v273, %v273
    %277 = vst [vmem:[#allocation2 + $0x20] sm:$0x3] %v273
    %278 = vst [vmem:[#allocation2 + $0x28] sm:$0x3] %v274
    %v279 = vld [vmem:[#allocation7] sm:$0xff]
    %v280 = vld [vmem:[#allocation7 + $0x8] sm:$0xff]
    %v281 = vld [vmem:[#allocation2] sm:$0xff]
    %v282 = vld [vmem:[#allocation2 + $0x8] sm:$0xff]
    %v283 = vld [vmem:[#allocation2 + $0x10] sm:$0xff]
    %v284 = vld [vmem:[#allocation2 + $0x18] sm:$0xff]
    %v285 = vld [vmem:[#allocation2 + $0x20] sm:$0xff]
    %v286 = vld [vmem:[#allocation2 + $0x28] sm:$0xff]
    %v287 = vld [vmem:[#allocation2 + $0x8] sm:$0xff]
    %v288 = vld [vmem:[#allocation2 + $0x10] sm:$0xff]
    %v289 = vld [vmem:[#allocation2 + $0x18] sm:$0xff]
    %v290 = vld [vmem:[#allocation2 + $0x20] sm:$0xff]
    %v291 = vld [vmem:[#allocation2 + $0x28] sm:$0xff]
    %v292 = vld [vmem:[#allocation2 + $0x30] sm:$0xff]
    %299 = vrot.lane.b32.xlu0 %v281, 112
    %v300 = vpop.permute.xlu0 %299
    %301 = vrot.lane.b32.xlu0 %v282, 112
    %v302 = vpop.permute.xlu0 %301
    %303 = vrot.lane.b32.xlu0 %v283, 112
    %v304 = vpop.permute.xlu0 %303
    %305 = vrot.lane.b32.xlu0 %v284, 112
    %v306 = vpop.permute.xlu0 %305
    %307 = vrot.lane.b32.xlu0 %v285, 112
    %v308 = vpop.permute.xlu0 %307
    %309 = vrot.lane.b32.xlu0 %v286, 112
    %v310 = vpop.permute.xlu0 %309
    %vm311 = vcmask 916480
    %v312 = vsel %vm311, %v300, %v302
    %v313 = vsel %vm311, %v302, %v304
    %v314 = vsel %vm311, %v304, %v306
    %v315 = vsel %vm311, %v306, %v308
    %v316 = vsel %vm311, %v308, %v310
    %329 = vrot.lane.b32.xlu0 %v287, 96
    %v330 = vpop.permute.xlu0 %329
    %331 = vrot.lane.b32.xlu0 %v288, 96
    %v332 = vpop.permute.xlu0 %331
    %333 = vrot.lane.b32.xlu0 %v289, 96
    %v334 = vpop.permute.xlu0 %333
    %335 = vrot.lane.b32.xlu0 %v290, 96
    %v336 = vpop.permute.xlu0 %335
    %337 = vrot.lane.b32.xlu0 %v291, 96
    %v338 = vpop.permute.xlu0 %337
    %339 = vrot.lane.b32.xlu0 %v292, 96
    %v340 = vpop.permute.xlu0 %339
    %vm341 = vcmask 785408
    %v342 = vsel %vm341, %v330, %v332
    %v343 = vsel %vm341, %v332, %v334
    %v344 = vsel %vm341, %v334, %v336
    %v345 = vsel %vm341, %v336, %v338
    %v346 = vsel %vm341, %v338, %v340
    %358 = vrot.lane.b32.xlu0 %v218, 111
    %v359 = vpop.permute.xlu0 %358
    %360 = vrot.lane.b32.xlu0 %v219, 111
    %v361 = vpop.permute.xlu0 %360
    %362 = vrot.lane.b32.xlu0 %v220, 111
    %v363 = vpop.permute.xlu0 %362
    %364 = vrot.lane.b32.xlu0 %v221, 111
    %v365 = vpop.permute.xlu0 %364
    %366 = vrot.lane.b32.xlu0 %v222, 111
    %v367 = vpop.permute.xlu0 %366
    %vm368 = vcmask 908288
    %v369 = vsel %vm368, %v359, %v361
    %v370 = vsel %vm368, %v361, %v363
    %v371 = vsel %vm368, %v363, %v365
    %v372 = vsel %vm368, %v365, %v367
    %v379 = vmul.bf16 %v281, %v359
    %v380 = vmul.bf16 %v282, %v369
    %v381 = vmul.bf16 %v283, %v370
    %v382 = vmul.bf16 %v284, %v371
    %v383 = vmul.bf16 %v285, %v372
    %v384 = vmul.bf16 %v286, %v367
    %v385 = vmul.bf16 %v312, %v359
    %v386 = vmul.bf16 %v313, %v369
    %v387 = vmul.bf16 %v314, %v370
    %v388 = vmul.bf16 %v315, %v371
    %v389 = vmul.bf16 %v316, %v372
    %v390 = vmul.bf16 %v310, %v367
    %v391 = vmul.bf16 %v330, %v359
    %v392 = vmul.bf16 %v342, %v369
    %v393 = vmul.bf16 %v343, %v370
    %v394 = vmul.bf16 %v344, %v371
    %v395 = vmul.bf16 %v345, %v372
    %v396 = vmul.bf16 %v346, %v367
    %397 = vrot.lane.b32.xlu0 %v287, 112
    %v398 = vpop.permute.xlu0 %397
    %399 = vrot.lane.b32.xlu0 %v288, 112
    %v400 = vpop.permute.xlu0 %399
    %401 = vrot.lane.b32.xlu0 %v289, 112
    %v402 = vpop.permute.xlu0 %401
    %403 = vrot.lane.b32.xlu0 %v290, 112
    %v404 = vpop.permute.xlu0 %403
    %405 = vrot.lane.b32.xlu0 %v291, 112
    %v406 = vpop.permute.xlu0 %405
    %407 = vrot.lane.b32.xlu0 %v292, 112
    %v408 = vpop.permute.xlu0 %407
    %v409 = vsel %vm311, %v398, %v400
    %v410 = vsel %vm311, %v400, %v402
    %v411 = vsel %vm311, %v402, %v404
    %v412 = vsel %vm311, %v404, %v406
    %v413 = vsel %vm311, %v406, %v408
    %425 = vrot.lane.b32.xlu0 %v238, 113
    %v426 = vpop.permute.xlu0 %425
    %427 = vrot.lane.b32.xlu0 %v239, 113
    %v428 = vpop.permute.xlu0 %427
    %429 = vrot.lane.b32.xlu0 %v240, 113
    %v430 = vpop.permute.xlu0 %429
    %431 = vrot.lane.b32.xlu0 %v241, 113
    %v432 = vpop.permute.xlu0 %431
    %433 = vrot.lane.b32.xlu0 %v242, 113
    %v434 = vpop.permute.xlu0 %433
    %vm435 = vcmask 924672
    %v436 = vsel %vm435, %v426, %v428
    %v437 = vsel %vm435, %v428, %v430
    %v438 = vsel %vm435, %v430, %v432
    %v439 = vsel %vm435, %v432, %v434
    %v446 = vmul.bf16 %v281, %v426
    %v447 = vmul.bf16 %v282, %v436
    %v448 = vmul.bf16 %v283, %v437
    %v449 = vmul.bf16 %v284, %v438
    %v450 = vmul.bf16 %v285, %v439
    %v451 = vmul.bf16 %v286, %v434
    %v452 = vmul.bf16 %v398, %v426
    %v453 = vmul.bf16 %v409, %v436
    %v454 = vmul.bf16 %v410, %v437
    %v455 = vmul.bf16 %v411, %v438
    %v456 = vmul.bf16 %v412, %v439
    %v457 = vmul.bf16 %v413, %v434
    %v458 = vmul.bf16 %v330, %v426
    %v459 = vmul.bf16 %v342, %v436
    %v460 = vmul.bf16 %v343, %v437
    %v461 = vmul.bf16 %v344, %v438
    %v462 = vmul.bf16 %v345, %v439
    %v463 = vmul.bf16 %v346, %v434
    %464 = vrot.lane.b32.xlu0 %v281, 127
    %v465 = vpop.permute.xlu0 %464
    %466 = vrot.lane.b32.xlu0 %v282, 127
    %v467 = vpop.permute.xlu0 %466
    %468 = vrot.lane.b32.xlu0 %v283, 127
    %v469 = vpop.permute.xlu0 %468
    %470 = vrot.lane.b32.xlu0 %v284, 127
    %v471 = vpop.permute.xlu0 %470
    %472 = vrot.lane.b32.xlu0 %v285, 127
    %v473 = vpop.permute.xlu0 %472
    %474 = vrot.lane.b32.xlu0 %v286, 127
    %v475 = vpop.permute.xlu0 %474
    %476 = vrot.lane.b32.xlu0 %v302, 127
    %v477 = vpop.permute.xlu0 %476
    %478 = vrot.lane.b32.xlu0 %v313, 127
    %v479 = vpop.permute.xlu0 %478
    %480 = vrot.lane.b32.xlu0 %v314, 127
    %v481 = vpop.permute.xlu0 %480
    %482 = vrot.lane.b32.xlu0 %v315, 127
    %v483 = vpop.permute.xlu0 %482
    %484 = vrot.lane.b32.xlu0 %v316, 127
    %v485 = vpop.permute.xlu0 %484
    %486 = vrot.lane.b32.xlu0 %v310, 127
    %v487 = vpop.permute.xlu0 %486
    %488 = vrot.lane.b32.xlu0 %v330, 127
    %v489 = vpop.permute.xlu0 %488
    %490 = vrot.lane.b32.xlu0 %v342, 127
    %v491 = vpop.permute.xlu0 %490
    %492 = vrot.lane.b32.xlu0 %v343, 127
    %v493 = vpop.permute.xlu0 %492
    %494 = vrot.lane.b32.xlu0 %v344, 127
    %v495 = vpop.permute.xlu0 %494
    %496 = vrot.lane.b32.xlu0 %v345, 127
    %v497 = vpop.permute.xlu0 %496
    %498 = vrot.lane.b32.xlu0 %v346, 127
    %v499 = vpop.permute.xlu0 %498
    %vm500 = vcmask 1039360
    %v501 = vsel %vm500, %v465, %v467
    %v502 = vsel %vm500, %v467, %v469
    %v503 = vsel %vm500, %v469, %v471
    %v504 = vsel %vm500, %v471, %v473
    %v505 = vsel %vm500, %v473, %v475
    %v506 = vsel %vm500, %v477, %v479
    %v507 = vsel %vm500, %v479, %v481
    %v508 = vsel %vm500, %v481, %v483
    %v509 = vsel %vm500, %v483, %v485
    %v510 = vsel %vm500, %v485, %v487
    %v511 = vsel %vm500, %v489, %v491
    %v512 = vsel %vm500, %v491, %v493
    %v513 = vsel %vm500, %v493, %v495
    %v514 = vsel %vm500, %v495, %v497
    %v515 = vsel %vm500, %v497, %v499
    %534 = vrot.lane.b32.xlu0 %v446, 126
    %v535 = vpop.permute.xlu0 %534
    %536 = vrot.lane.b32.xlu0 %v447, 126
    %v537 = vpop.permute.xlu0 %536
    %538 = vrot.lane.b32.xlu0 %v448, 126
    %v539 = vpop.permute.xlu0 %538
    %540 = vrot.lane.b32.xlu0 %v449, 126
    %v541 = vpop.permute.xlu0 %540
    %542 = vrot.lane.b32.xlu0 %v450, 126
    %v543 = vpop.permute.xlu0 %542
    %544 = vrot.lane.b32.xlu0 %v451, 126
    %v545 = vpop.permute.xlu0 %544
    %546 = vrot.lane.b32.xlu0 %v452, 126
    %v547 = vpop.permute.xlu0 %546
    %548 = vrot.lane.b32.xlu0 %v453, 126
    %v549 = vpop.permute.xlu0 %548
    %550 = vrot.lane.b32.xlu0 %v454, 126
    %v551 = vpop.permute.xlu0 %550
    %552 = vrot.lane.b32.xlu0 %v455, 126
    %v553 = vpop.permute.xlu0 %552
    %554 = vrot.lane.b32.xlu0 %v456, 126
    %v555 = vpop.permute.xlu0 %554
    %556 = vrot.lane.b32.xlu0 %v457, 126
    %v557 = vpop.permute.xlu0 %556
    %558 = vrot.lane.b32.xlu0 %v458, 126
    %v559 = vpop.permute.xlu0 %558
    %560 = vrot.lane.b32.xlu0 %v459, 126
    %v561 = vpop.permute.xlu0 %560
    %562 = vrot.lane.b32.xlu0 %v460, 126
    %v563 = vpop.permute.xlu0 %562
    %564 = vrot.lane.b32.xlu0 %v461, 126
    %v565 = vpop.permute.xlu0 %564
    %566 = vrot.lane.b32.xlu0 %v462, 126
    %v567 = vpop.permute.xlu0 %566
    %568 = vrot.lane.b32.xlu0 %v463, 126
    %v569 = vpop.permute.xlu0 %568
    %vm570 = vcmask 1031168
    %v571 = vsel %vm570, %v535, %v537
    %v572 = vsel %vm570, %v537, %v539
    %v573 = vsel %vm570, %v539, %v541
    %v574 = vsel %vm570, %v541, %v543
    %v575 = vsel %vm570, %v543, %v545
    %v576 = vsel %vm570, %v547, %v549
    %v577 = vsel %vm570, %v549, %v551
    %v578 = vsel %vm570, %v551, %v553
    %v579 = vsel %vm570, %v553, %v555
    %v580 = vsel %vm570, %v555, %v557
    %v581 = vsel %vm570, %v559, %v561
    %v582 = vsel %vm570, %v561, %v563
    %v583 = vsel %vm570, %v563, %v565
    %v584 = vsel %vm570, %v565, %v567
    %v585 = vsel %vm570, %v567, %v569
    %v588 = vunpack.c.l.b16 %v279
    %v589 = vunpack.c.h.b16 %v279
    %v590 = vunpack.c.l.b16 %v280
    %v591 = vunpack.c.h.b16 %v280
    %v592 = vpack.c.b16 %v590, %v588
    %v593 = vpack.c.b16 %v591, %v589
    %613 = vrot.lane.b32.xlu0 %v379, 17
    %v614 = vpop.permute.xlu0 %613
    %615 = vrot.lane.b32.xlu0 %v380, 17
    %v616 = vpop.permute.xlu0 %615
    %617 = vrot.lane.b32.xlu0 %v381, 17
    %v618 = vpop.permute.xlu0 %617
    %619 = vrot.lane.b32.xlu0 %v382, 17
    %v620 = vpop.permute.xlu0 %619
    %621 = vrot.lane.b32.xlu0 %v383, 17
    %v622 = vpop.permute.xlu0 %621
    %623 = vrot.lane.b32.xlu0 %v384, 17
    %v624 = vpop.permute.xlu0 %623
    %625 = vrot.lane.b32.xlu0 %v385, 17
    %v626 = vpop.permute.xlu0 %625
    %627 = vrot.lane.b32.xlu0 %v386, 17
    %v628 = vpop.permute.xlu0 %627
    %629 = vrot.lane.b32.xlu0 %v387, 17
    %v630 = vpop.permute.xlu0 %629
    %631 = vrot.lane.b32.xlu0 %v388, 17
    %v632 = vpop.permute.xlu0 %631
    %633 = vrot.lane.b32.xlu0 %v389, 17
    %v634 = vpop.permute.xlu0 %633
    %635 = vrot.lane.b32.xlu0 %v390, 17
    %v636 = vpop.permute.xlu0 %635
    %637 = vrot.lane.b32.xlu0 %v391, 17
    %v638 = vpop.permute.xlu0 %637
    %639 = vrot.lane.b32.xlu0 %v392, 17
    %v640 = vpop.permute.xlu0 %639
    %641 = vrot.lane.b32.xlu0 %v393, 17
    %v642 = vpop.permute.xlu0 %641
    %643 = vrot.lane.b32.xlu0 %v394, 17
    %v644 = vpop.permute.xlu0 %643
    %645 = vrot.lane.b32.xlu0 %v395, 17
    %v646 = vpop.permute.xlu0 %645
    %647 = vrot.lane.b32.xlu0 %v396, 17
    %v648 = vpop.permute.xlu0 %647
    %649 = vrot.lane.b32.xlu0 %v501, 17
    %v650 = vpop.permute.xlu0 %649
    %651 = vrot.lane.b32.xlu0 %v502, 17
    %v652 = vpop.permute.xlu0 %651
    %653 = vrot.lane.b32.xlu0 %v503, 17
    %v654 = vpop.permute.xlu0 %653
    %655 = vrot.lane.b32.xlu0 %v504, 17
    %v656 = vpop.permute.xlu0 %655
    %657 = vrot.lane.b32.xlu0 %v505, 17
    %v658 = vpop.permute.xlu0 %657
    %659 = vrot.lane.b32.xlu0 %v475, 17
    %v660 = vpop.permute.xlu0 %659
    %661 = vrot.lane.b32.xlu0 %v506, 17
    %v662 = vpop.permute.xlu0 %661
    %663 = vrot.lane.b32.xlu0 %v507, 17
    %v664 = vpop.permute.xlu0 %663
    %665 = vrot.lane.b32.xlu0 %v508, 17
    %v666 = vpop.permute.xlu0 %665
    %667 = vrot.lane.b32.xlu0 %v509, 17
    %v668 = vpop.permute.xlu0 %667
    %669 = vrot.lane.b32.xlu0 %v510, 17
    %v670 = vpop.permute.xlu0 %669
    %671 = vrot.lane.b32.xlu0 %v487, 17
    %v672 = vpop.permute.xlu0 %671
    %673 = vrot.lane.b32.xlu0 %v511, 17
    %v674 = vpop.permute.xlu0 %673
    %675 = vrot.lane.b32.xlu0 %v512, 17
    %v676 = vpop.permute.xlu0 %675
    %677 = vrot.lane.b32.xlu0 %v513, 17
    %v678 = vpop.permute.xlu0 %677
    %679 = vrot.lane.b32.xlu0 %v514, 17
    %v680 = vpop.permute.xlu0 %679
    %681 = vrot.lane.b32.xlu0 %v515, 17
    %v682 = vpop.permute.xlu0 %681
    %683 = vrot.lane.b32.xlu0 %v499, 17
    %v684 = vpop.permute.xlu0 %683
    %685 = vrot.lane.b32.xlu0 %v571, 17
    %v686 = vpop.permute.xlu0 %685
    %687 = vrot.lane.b32.xlu0 %v572, 17
    %v688 = vpop.permute.xlu0 %687
    %689 = vrot.lane.b32.xlu0 %v573, 17
    %v690 = vpop.permute.xlu0 %689
    %691 = vrot.lane.b32.xlu0 %v574, 17
    %v692 = vpop.permute.xlu0 %691
    %693 = vrot.lane.b32.xlu0 %v575, 17
    %v694 = vpop.permute.xlu0 %693
    %695 = vrot.lane.b32.xlu0 %v545, 17
    %v696 = vpop.permute.xlu0 %695
    %697 = vrot.lane.b32.xlu0 %v576, 17
    %v698 = vpop.permute.xlu0 %697
    %699 = vrot.lane.b32.xlu0 %v577, 17
    %v700 = vpop.permute.xlu0 %699
    %701 = vrot.lane.b32.xlu0 %v578, 17
    %v702 = vpop.permute.xlu0 %701
    %703 = vrot.lane.b32.xlu0 %v579, 17
    %v704 = vpop.permute.xlu0 %703
    %705 = vrot.lane.b32.xlu0 %v580, 17
    %v706 = vpop.permute.xlu0 %705
    %707 = vrot.lane.b32.xlu0 %v557, 17
    %v708 = vpop.permute.xlu0 %707
    %709 = vrot.lane.b32.xlu0 %v581, 17
    %v710 = vpop.permute.xlu0 %709
    %711 = vrot.lane.b32.xlu0 %v582, 17
    %v712 = vpop.permute.xlu0 %711
    %713 = vrot.lane.b32.xlu0 %v583, 17
    %v714 = vpop.permute.xlu0 %713
    %715 = vrot.lane.b32.xlu0 %v584, 17
    %v716 = vpop.permute.xlu0 %715
    %717 = vrot.lane.b32.xlu0 %v585, 17
    %v718 = vpop.permute.xlu0 %717
    %719 = vrot.lane.b32.xlu0 %v569, 17
    %v720 = vpop.permute.xlu0 %719
    %vm721 = vcmask 138240
    %v722 = vsel %vm721, %v614, %v616
    %v723 = vsel %vm721, %v616, %v618
    %v724 = vsel %vm721, %v618, %v620
    %v725 = vsel %vm721, %v620, %v622
    %v726 = vsel %vm721, %v622, %v624
    %v727 = vsel %vm721, %v626, %v628
    %v728 = vsel %vm721, %v628, %v630
    %v729 = vsel %vm721, %v630, %v632
    %v730 = vsel %vm721, %v632, %v634
    %v731 = vsel %vm721, %v634, %v636
    %v732 = vsel %vm721, %v638, %v640
    %v733 = vsel %vm721, %v640, %v642
    %v734 = vsel %vm721, %v642, %v644
    %v735 = vsel %vm721, %v644, %v646
    %v736 = vsel %vm721, %v646, %v648
    %v737 = vsel %vm721, %v650, %v652
    %v738 = vsel %vm721, %v652, %v654
    %v739 = vsel %vm721, %v654, %v656
    %v740 = vsel %vm721, %v656, %v658
    %v741 = vsel %vm721, %v658, %v660
    %v742 = vsel %vm721, %v662, %v664
    %v743 = vsel %vm721, %v664, %v666
    %v744 = vsel %vm721, %v666, %v668
    %v745 = vsel %vm721, %v668, %v670
    %v746 = vsel %vm721, %v670, %v672
    %v747 = vsel %vm721, %v674, %v676
    %v748 = vsel %vm721, %v676, %v678
    %v749 = vsel %vm721, %v678, %v680
    %v750 = vsel %vm721, %v680, %v682
    %v751 = vsel %vm721, %v682, %v684
    %v752 = vsel %vm721, %v686, %v688
    %v753 = vsel %vm721, %v688, %v690
    %v754 = vsel %vm721, %v690, %v692
    %v755 = vsel %vm721, %v692, %v694
    %v756 = vsel %vm721, %v694, %v696
    %v757 = vsel %vm721, %v698, %v700
    %v758 = vsel %vm721, %v700, %v702
    %v759 = vsel %vm721, %v702, %v704
    %v760 = vsel %vm721, %v704, %v706
    %v761 = vsel %vm721, %v706, %v708
    %v762 = vsel %vm721, %v710, %v712
    %v763 = vsel %vm721, %v712, %v714
    %v764 = vsel %vm721, %v714, %v716
    %v765 = vsel %vm721, %v716, %v718
    %v766 = vsel %vm721, %v718, %v720
    %vm812 = vcmask 130048
    %v814 = vsel %vm812, %v593, 0
    %816 = vmatprep.subr.bf16.mxu0 %v723
    %817 = vmatpush1.bf16.msra.mxu0 %v722
    %818 = vmatprep.subr.bf16.mxu0 %v728
    %819 = vmatpush1.bf16.msra.mxu0 %v727
    %820 = vmatprep.subr.bf16.mxu0 %v733
    %821 = vmatpush1.bf16.msra.mxu0 %v732
    %822 = vmatprep.subr.bf16.mxu0 %v738
    %823 = vmatpush1.bf16.msra.mxu0 %v737
    %824 = vmatprep.subr.bf16.mxu0 %v743
    %825 = vmatpush1.bf16.msra.mxu0 %v742
    %826 = vmatprep.subr.bf16.mxu0 %v748
    %827 = vmatpush1.bf16.msra.mxu0 %v747
    %828 = vmatprep.subr.bf16.mxu0 %v753
    %829 = vmatpush1.bf16.msra.mxu0 %v752
    %830 = vmatprep.subr.bf16.mxu0 %v758
    %831 = vmatpush1.bf16.msra.mxu0 %v757
    %832 = vmatprep.subr.bf16.mxu0 %v763
    %833 = vmatpush1.bf16.msra.mxu0 %v762
    %834 = vmatprep.subr.bf16.mxu0 0
    %835 = vmatpush1.bf16.msra.mxu0 0
    %836 = vmatprep.subr.bf16.mxu0 0
    %837 = vmatpush1.bf16.msra.mxu0 0
    %838 = vmatprep.subr.bf16.mxu0 0
    %839 = vmatpush1.bf16.msra.mxu0 0
    %840 = vmatprep.subr.bf16.mxu0 0
    %841 = vmatpush1.bf16.msra.mxu0 0
    %842 = vmatprep.subr.bf16.mxu0 0
    %843 = vmatpush1.bf16.msra.mxu0 0
    %844 = vmatprep.subr.bf16.mxu0 0
    %845 = vmatpush1.bf16.msra.mxu0 0
    %846 = vmatprep.subr.bf16.mxu0 0
    %847 = vmatpush1.bf16.msra.mxu0 0
    %848 = vmatprep.mubr.bf16.mxu0 %v814
    %849 = vmatmul.mubr.bf16.gmra.mrb[0].mxu0 %v592
    %v850 = vpop.f32.mrb[0].mxu0
    %v851 = vadd.f32 0.0, %v850
    %v852 = vpop.f32.mrb[0].mxu0
    %v853 = vadd.f32 0.0, %v852
    %v854 = vpop.f32.mrb[0].mxu0
    %v855 = vadd.f32 0.0, %v854
    %v856 = vpop.f32.mrb[0].mxu0
    %v857 = vadd.f32 0.0, %v856
    %858 = vdwg.mxu0
    %859 = vmatprep.subr.bf16.mxu0 %v725
    %860 = vmatpush1.bf16.msra.mxu0 %v724
    %861 = vmatprep.subr.bf16.mxu0 %v730
    %862 = vmatpush1.bf16.msra.mxu0 %v729
    %863 = vmatprep.subr.bf16.mxu0 %v735
    %864 = vmatpush1.bf16.msra.mxu0 %v734
    %865 = vmatprep.subr.bf16.mxu0 %v740
    %866 = vmatpush1.bf16.msra.mxu0 %v739
    %867 = vmatprep.subr.bf16.mxu0 %v745
    %868 = vmatpush1.bf16.msra.mxu0 %v744
    %869 = vmatprep.subr.bf16.mxu0 %v750
    %870 = vmatpush1.bf16.msra.mxu0 %v749
    %871 = vmatprep.subr.bf16.mxu0 %v755
    %872 = vmatpush1.bf16.msra.mxu0 %v754
    %873 = vmatprep.subr.bf16.mxu0 %v760
    %874 = vmatpush1.bf16.msra.mxu0 %v759
    %875 = vmatprep.subr.bf16.mxu0 %v765
    %876 = vmatpush1.bf16.msra.mxu0 %v764
    %877 = vmatprep.subr.bf16.mxu0 0
    %878 = vmatpush1.bf16.msra.mxu0 0
    %879 = vmatprep.subr.bf16.mxu0 0
    %880 = vmatpush1.bf16.msra.mxu0 0
    %881 = vmatprep.subr.bf16.mxu0 0
    %882 = vmatpush1.bf16.msra.mxu0 0
    %883 = vmatprep.subr.bf16.mxu0 0
    %884 = vmatpush1.bf16.msra.mxu0 0
    %885 = vmatprep.subr.bf16.mxu0 0
    %886 = vmatpush1.bf16.msra.mxu0 0
    %887 = vmatprep.subr.bf16.mxu0 0
    %888 = vmatpush1.bf16.msra.mxu0 0
    %889 = vmatprep.subr.bf16.mxu0 0
    %890 = vmatpush1.bf16.msra.mxu0 0
    %891 = vmatprep.mubr.bf16.mxu0 %v814
    %892 = vmatmul.mubr.bf16.gmra.mrb[0].mxu0 %v592
    %v893 = vpop.f32.mrb[0].mxu0
    %v894 = vpop.f32.mrb[0].mxu0
    %v895 = vadd.f32 0.0, %v894
    %v896 = vpop.f32.mrb[0].mxu0
    %v897 = vpop.f32.mrb[0].mxu0
    %v898 = vadd.f32 0.0, %v897
    %899 = vdwg.mxu0
    %900 = vmatprep.subr.bf16.mxu0 0
    %901 = vmatpush1.bf16.msra.mxu0 %v726
    %902 = vmatprep.subr.bf16.mxu0 0
    %903 = vmatpush1.bf16.msra.mxu0 %v731
    %904 = vmatprep.subr.bf16.mxu0 0
    %905 = vmatpush1.bf16.msra.mxu0 %v736
    %906 = vmatprep.subr.bf16.mxu0 0
    %907 = vmatpush1.bf16.msra.mxu0 %v741
    %908 = vmatprep.subr.bf16.mxu0 0
    %909 = vmatpush1.bf16.msra.mxu0 %v746
    %910 = vmatprep.subr.bf16.mxu0 0
    %911 = vmatpush1.bf16.msra.mxu0 %v751
    %912 = vmatprep.subr.bf16.mxu0 0
    %913 = vmatpush1.bf16.msra.mxu0 %v756
    %914 = vmatprep.subr.bf16.mxu0 0
    %915 = vmatpush1.bf16.msra.mxu0 %v761
    %916 = vmatprep.subr.bf16.mxu0 0
    %917 = vmatpush1.bf16.msra.mxu0 %v766
    %918 = vmatprep.subr.bf16.mxu0 0
    %919 = vmatpush1.bf16.msra.mxu0 0
    %920 = vmatprep.subr.bf16.mxu0 0
    %921 = vmatpush1.bf16.msra.mxu0 0
    %922 = vmatprep.subr.bf16.mxu0 0
    %923 = vmatpush1.bf16.msra.mxu0 0
    %924 = vmatprep.subr.bf16.mxu0 0
    %925 = vmatpush1.bf16.msra.mxu0 0
    %926 = vmatprep.subr.bf16.mxu0 0
    %927 = vmatpush1.bf16.msra.mxu0 0
    %928 = vmatprep.subr.bf16.mxu0 0
    %929 = vmatpush1.bf16.msra.mxu0 0
    %930 = vmatprep.subr.bf16.mxu0 0
    %931 = vmatpush1.bf16.msra.mxu0 0
    %932 = vmatprep.mubr.bf16.mxu0 %v814
    %933 = vmatmul.mubr.bf16.gmra.mrb[0].mxu0 %v592
    %v934 = vpop.f32.mrb[0].mxu0
    %v935 = vadd.f32 0.0, %v934
    %v936 = vpop.f32.mrb[0].mxu0
    %v937 = vpop.f32.mrb[0].mxu0
    %v938 = vadd.f32 0.0, %v937
    %v939 = vpop.f32.mrb[0].mxu0
    %940 = vdwg.mxu0
    %941 = vst [vmem:[#allocation3] sm:$0xff] 0
    %942 = vst [vmem:[#allocation3 + $0x8] sm:$0xff] 0
    %943 = vst [vmem:[#allocation3 + $0x10] sm:$0xff] 0
    %944 = vst [vmem:[#allocation3 + $0x18] sm:$0xff] 0
    %945 = vst [vmem:[#allocation3 + $0x20] sm:$0xff] 0
    %946 = vst [vmem:[#allocation3 + $0x28] sm:$0xff] 0
    %947 = vst [vmem:[#allocation3 + $0x30] sm:$0xff] 0
    %v948 = vadd.f32 %v851, %v853
    %949 = vadd.xlane.f32.xlu0 %v948
    %v950 = vpop.xlane.xlu0 %949
    %v951 = vadd.f32 %v855, %v857
    %952 = vadd.xlane.f32.xlu0 %v951
    %v953 = vpop.xlane.xlu0 %952
    %v954 = vrcp.pop 256.0
    %v955 = vmul.f32 %v950, %v954
    %v956 = vmul.f32 %v953, %v954
    %v957 = vsub.f32 %v851, %v955
    %v958 = vsub.f32 %v853, %v955
    %v959 = vsub.f32 %v855, %v956
    %v960 = vsub.f32 %v857, %v956
    %v961 = vmul.f32 %v957, %v957
    %v962 = vmul.f32 %v958, %v958
    %v963 = vmul.f32 %v959, %v959
    %v964 = vmul.f32 %v960, %v960
    %v965 = vadd.f32 %v961, %v962
    %966 = vadd.xlane.f32.xlu0 %v965
    %v967 = vpop.xlane.xlu0 %966
    %v968 = vadd.f32 %v963, %v964
    %969 = vadd.xlane.f32.xlu0 %v968
    %v970 = vpop.xlane.xlu0 %969
    %v971 = vmul.f32 %v967, %v954
    %v972 = vmul.f32 %v970, %v954
    %v973 = vadd.f32 %v971, 1e-05
    %v974 = vadd.f32 %v972, 1e-05
    %v975 = vrsqrt.pop %v973
    %v976 = vrsqrt.pop %v974
    %v977 = vmul.f32 %v957, %v975
    %v978 = vmul.f32 %v958, %v975
    %v979 = vmul.f32 %v959, %v976
    %v980 = vmul.f32 %v960, %v976
    %v981 = vmul.f32 %v977, 0.01
    %v982 = vmul.f32 %v978, 0.01
    %v983 = vmul.f32 %v979, 0.01
    %v984 = vmul.f32 %v980, 0.01
    %v985 = vmax.f32 %v977, %v981
    %v986 = vmax.f32 %v978, %v982
    %v987 = vmax.f32 %v979, %v983
    %v988 = vmax.f32 %v980, %v984
    %v989 = vpack.c.bf16 %v987, %v985
    %v990 = vpack.c.bf16 %v988, %v986
    %991 = vst [vmem:[#allocation3 + $0x8] sm:$0xff] %v989
    %992 = vst [vmem:[#allocation3 + $0x10] sm:$0xff] %v990
    %v993 = vadd.f32 %v895, %v935
    %994 = vadd.xlane.f32.xlu0 %v993
    %v995 = vpop.xlane.xlu0 %994
    %v996 = vadd.f32 %v898, %v938
    %997 = vadd.xlane.f32.xlu0 %v996
    %v998 = vpop.xlane.xlu0 %997
    %v999 = vmul.f32 %v995, %v954
    %v1000 = vmul.f32 %v998, %v954
    %v1001 = vsub.f32 %v895, %v999
    %v1002 = vsub.f32 %v935, %v999
    %v1003 = vsub.f32 %v898, %v1000
    %v1004 = vsub.f32 %v938, %v1000
    %v1005 = vmul.f32 %v1001, %v1001
    %v1006 = vmul.f32 %v1002, %v1002
    %v1007 = vmul.f32 %v1003, %v1003
    %v1008 = vmul.f32 %v1004, %v1004
    %v1009 = vadd.f32 %v1005, %v1006
    %1010 = vadd.xlane.f32.xlu0 %v1009
    %v1011 = vpop.xlane.xlu0 %1010
    %v1012 = vadd.f32 %v1007, %v1008
    %1013 = vadd.xlane.f32.xlu0 %v1012
    %v1014 = vpop.xlane.xlu0 %1013
    %v1015 = vmul.f32 %v1011, %v954
    %v1016 = vmul.f32 %v1014, %v954
    %v1017 = vadd.f32 %v1015, 1e-05
    %v1018 = vadd.f32 %v1016, 1e-05
    %v1019 = vrsqrt.pop %v1017
    %v1020 = vrsqrt.pop %v1018
    %v1021 = vmul.f32 %v1001, %v1019
    %v1022 = vmul.f32 %v1002, %v1019
    %v1023 = vmul.f32 %v1003, %v1020
    %v1024 = vmul.f32 %v1004, %v1020
    %v1025 = vmul.f32 %v1021, 0.01
    %v1026 = vmul.f32 %v1022, 0.01
    %v1027 = vmul.f32 %v1023, 0.01
    %v1028 = vmul.f32 %v1024, 0.01
    %v1029 = vmax.f32 %v1021, %v1025
    %v1030 = vmax.f32 %v1022, %v1026
    %v1031 = vmax.f32 %v1023, %v1027
    %v1032 = vmax.f32 %v1024, %v1028
    %v1033 = vpack.c.bf16 %v1031, %v1029
    %v1034 = vpack.c.bf16 %v1032, %v1030
    %1035 = vst [vmem:[#allocation3 + $0x20] sm:$0xff] %v1033
    %1036 = vst [vmem:[#allocation3 + $0x28] sm:$0xff] %v1034
    %v1037 = vld [vmem:[#allocation9] sm:$0xff]
    %v1038 = vld [vmem:[#allocation9 + $0x8] sm:$0xff]
    %v1039 = vld [vmem:[#allocation3] sm:$0xff]
    %v1040 = vld [vmem:[#allocation3 + $0x8] sm:$0xff]
    %v1041 = vld [vmem:[#allocation3 + $0x10] sm:$0xff]
    %v1042 = vld [vmem:[#allocation3 + $0x18] sm:$0xff]
    %v1043 = vld [vmem:[#allocation3 + $0x20] sm:$0xff]
    %v1044 = vld [vmem:[#allocation3 + $0x28] sm:$0xff]
    %v1045 = vld [vmem:[#allocation3 + $0x8] sm:$0xff]
    %v1046 = vld [vmem:[#allocation3 + $0x10] sm:$0xff]
    %v1047 = vld [vmem:[#allocation3 + $0x18] sm:$0xff]
    %v1048 = vld [vmem:[#allocation3 + $0x20] sm:$0xff]
    %v1049 = vld [vmem:[#allocation3 + $0x28] sm:$0xff]
    %v1050 = vld [vmem:[#allocation3 + $0x30] sm:$0xff]
    %1057 = vrot.lane.b32.xlu0 %v1039, 112
    %v1058 = vpop.permute.xlu0 %1057
    %1059 = vrot.lane.b32.xlu0 %v1040, 112
    %v1060 = vpop.permute.xlu0 %1059
    %1061 = vrot.lane.b32.xlu0 %v1041, 112
    %v1062 = vpop.permute.xlu0 %1061
    %1063 = vrot.lane.b32.xlu0 %v1042, 112
    %v1064 = vpop.permute.xlu0 %1063
    %1065 = vrot.lane.b32.xlu0 %v1043, 112
    %v1066 = vpop.permute.xlu0 %1065
    %1067 = vrot.lane.b32.xlu0 %v1044, 112
    %v1068 = vpop.permute.xlu0 %1067
    %v1069 = vsel %vm311, %v1058, %v1060
    %v1070 = vsel %vm311, %v1060, %v1062
    %v1071 = vsel %vm311, %v1062, %v1064
    %v1072 = vsel %vm311, %v1064, %v1066
    %v1073 = vsel %vm311, %v1066, %v1068
    %1086 = vrot.lane.b32.xlu0 %v1045, 96
    %v1087 = vpop.permute.xlu0 %1086
    %1088 = vrot.lane.b32.xlu0 %v1046, 96
    %v1089 = vpop.permute.xlu0 %1088
    %1090 = vrot.lane.b32.xlu0 %v1047, 96
    %v1091 = vpop.permute.xlu0 %1090
    %1092 = vrot.lane.b32.xlu0 %v1048, 96
    %v1093 = vpop.permute.xlu0 %1092
    %1094 = vrot.lane.b32.xlu0 %v1049, 96
    %v1095 = vpop.permute.xlu0 %1094
    %1096 = vrot.lane.b32.xlu0 %v1050, 96
    %v1097 = vpop.permute.xlu0 %1096
    %v1098 = vsel %vm341, %v1087, %v1089
    %v1099 = vsel %vm341, %v1089, %v1091
    %v1100 = vsel %vm341, %v1091, %v1093
    %v1101 = vsel %vm341, %v1093, %v1095
    %v1102 = vsel %vm341, %v1095, %v1097
    %v1109 = vmul.bf16 %v1039, %v359
    %v1110 = vmul.bf16 %v1040, %v369
    %v1111 = vmul.bf16 %v1041, %v370
    %v1112 = vmul.bf16 %v1042, %v371
    %v1113 = vmul.bf16 %v1043, %v372
    %v1114 = vmul.bf16 %v1044, %v367
    %v1115 = vmul.bf16 %v1069, %v359
    %v1116 = vmul.bf16 %v1070, %v369
    %v1117 = vmul.bf16 %v1071, %v370
    %v1118 = vmul.bf16 %v1072, %v371
    %v1119 = vmul.bf16 %v1073, %v372
    %v1120 = vmul.bf16 %v1068, %v367
    %v1121 = vmul.bf16 %v1087, %v359
    %v1122 = vmul.bf16 %v1098, %v369
    %v1123 = vmul.bf16 %v1099, %v370
    %v1124 = vmul.bf16 %v1100, %v371
    %v1125 = vmul.bf16 %v1101, %v372
    %v1126 = vmul.bf16 %v1102, %v367
    %1127 = vrot.lane.b32.xlu0 %v1045, 112
    %v1128 = vpop.permute.xlu0 %1127
    %1129 = vrot.lane.b32.xlu0 %v1046, 112
    %v1130 = vpop.permute.xlu0 %1129
    %1131 = vrot.lane.b32.xlu0 %v1047, 112
    %v1132 = vpop.permute.xlu0 %1131
    %1133 = vrot.lane.b32.xlu0 %v1048, 112
    %v1134 = vpop.permute.xlu0 %1133
    %1135 = vrot.lane.b32.xlu0 %v1049, 112
    %v1136 = vpop.permute.xlu0 %1135
    %1137 = vrot.lane.b32.xlu0 %v1050, 112
    %v1138 = vpop.permute.xlu0 %1137
    %v1139 = vsel %vm311, %v1128, %v1130
    %v1140 = vsel %vm311, %v1130, %v1132
    %v1141 = vsel %vm311, %v1132, %v1134
    %v1142 = vsel %vm311, %v1134, %v1136
    %v1143 = vsel %vm311, %v1136, %v1138
    %v1150 = vmul.bf16 %v1039, %v426
    %v1151 = vmul.bf16 %v1040, %v436
    %v1152 = vmul.bf16 %v1041, %v437
    %v1153 = vmul.bf16 %v1042, %v438
    %v1154 = vmul.bf16 %v1043, %v439
    %v1155 = vmul.bf16 %v1044, %v434
    %v1156 = vmul.bf16 %v1128, %v426
    %v1157 = vmul.bf16 %v1139, %v436
    %v1158 = vmul.bf16 %v1140, %v437
    %v1159 = vmul.bf16 %v1141, %v438
    %v1160 = vmul.bf16 %v1142, %v439
    %v1161 = vmul.bf16 %v1143, %v434
    %v1162 = vmul.bf16 %v1087, %v426
    %v1163 = vmul.bf16 %v1098, %v436
    %v1164 = vmul.bf16 %v1099, %v437
    %v1165 = vmul.bf16 %v1100, %v438
    %v1166 = vmul.bf16 %v1101, %v439
    %v1167 = vmul.bf16 %v1102, %v434
    %1168 = vrot.lane.b32.xlu0 %v1039, 127
    %v1169 = vpop.permute.xlu0 %1168
    %1170 = vrot.lane.b32.xlu0 %v1040, 127
    %v1171 = vpop.permute.xlu0 %1170
    %1172 = vrot.lane.b32.xlu0 %v1041, 127
    %v1173 = vpop.permute.xlu0 %1172
    %1174 = vrot.lane.b32.xlu0 %v1042, 127
    %v1175 = vpop.permute.xlu0 %1174
    %1176 = vrot.lane.b32.xlu0 %v1043, 127
    %v1177 = vpop.permute.xlu0 %1176
    %1178 = vrot.lane.b32.xlu0 %v1044, 127
    %v1179 = vpop.permute.xlu0 %1178
    %1180 = vrot.lane.b32.xlu0 %v1060, 127
    %v1181 = vpop.permute.xlu0 %1180
    %1182 = vrot.lane.b32.xlu0 %v1070, 127
    %v1183 = vpop.permute.xlu0 %1182
    %1184 = vrot.lane.b32.xlu0 %v1071, 127
    %v1185 = vpop.permute.xlu0 %1184
    %1186 = vrot.lane.b32.xlu0 %v1072, 127
    %v1187 = vpop.permute.xlu0 %1186
    %1188 = vrot.lane.b32.xlu0 %v1073, 127
    %v1189 = vpop.permute.xlu0 %1188
    %1190 = vrot.lane.b32.xlu0 %v1068, 127
    %v1191 = vpop.permute.xlu0 %1190
    %1192 = vrot.lane.b32.xlu0 %v1087, 127
    %v1193 = vpop.permute.xlu0 %1192
    %1194 = vrot.lane.b32.xlu0 %v1098, 127
    %v1195 = vpop.permute.xlu0 %1194
    %1196 = vrot.lane.b32.xlu0 %v1099, 127
    %v1197 = vpop.permute.xlu0 %1196
    %1198 = vrot.lane.b32.xlu0 %v1100, 127
    %v1199 = vpop.permute.xlu0 %1198
    %1200 = vrot.lane.b32.xlu0 %v1101, 127
    %v1201 = vpop.permute.xlu0 %1200
    %1202 = vrot.lane.b32.xlu0 %v1102, 127
    %v1203 = vpop.permute.xlu0 %1202
    %v1204 = vsel %vm500, %v1169, %v1171
    %v1205 = vsel %vm500, %v1171, %v1173
    %v1206 = vsel %vm500, %v1173, %v1175
    %v1207 = vsel %vm500, %v1175, %v1177
    %v1208 = vsel %vm500, %v1177, %v1179
    %v1209 = vsel %vm500, %v1181, %v1183
    %v1210 = vsel %vm500, %v1183, %v1185
    %v1211 = vsel %vm500, %v1185, %v1187
    %v1212 = vsel %vm500, %v1187, %v1189
    %v1213 = vsel %vm500, %v1189, %v1191
    %v1214 = vsel %vm500, %v1193, %v1195
    %v1215 = vsel %vm500, %v1195, %v1197
    %v1216 = vsel %vm500, %v1197, %v1199
    %v1217 = vsel %vm500, %v1199, %v1201
    %v1218 = vsel %vm500, %v1201, %v1203
    %1237 = vrot.lane.b32.xlu0 %v1150, 126
    %v1238 = vpop.permute.xlu0 %1237
    %1239 = vrot.lane.b32.xlu0 %v1151, 126
    %v1240 = vpop.permute.xlu0 %1239
    %1241 = vrot.lane.b32.xlu0 %v1152, 126
    %v1242 = vpop.permute.xlu0 %1241
    %1243 = vrot.lane.b32.xlu0 %v1153, 126
    %v1244 = vpop.permute.xlu0 %1243
    %1245 = vrot.lane.b32.xlu0 %v1154, 126
    %v1246 = vpop.permute.xlu0 %1245
    %1247 = vrot.lane.b32.xlu0 %v1155, 126
    %v1248 = vpop.permute.xlu0 %1247
    %1249 = vrot.lane.b32.xlu0 %v1156, 126
    %v1250 = vpop.permute.xlu0 %1249
    %1251 = vrot.lane.b32.xlu0 %v1157, 126
    %v1252 = vpop.permute.xlu0 %1251
    %1253 = vrot.lane.b32.xlu0 %v1158, 126
    %v1254 = vpop.permute.xlu0 %1253
    %1255 = vrot.lane.b32.xlu0 %v1159, 126
    %v1256 = vpop.permute.xlu0 %1255
    %1257 = vrot.lane.b32.xlu0 %v1160, 126
    %v1258 = vpop.permute.xlu0 %1257
    %1259 = vrot.lane.b32.xlu0 %v1161, 126
    %v1260 = vpop.permute.xlu0 %1259
    %1261 = vrot.lane.b32.xlu0 %v1162, 126
    %v1262 = vpop.permute.xlu0 %1261
    %1263 = vrot.lane.b32.xlu0 %v1163, 126
    %v1264 = vpop.permute.xlu0 %1263
    %1265 = vrot.lane.b32.xlu0 %v1164, 126
    %v1266 = vpop.permute.xlu0 %1265
    %1267 = vrot.lane.b32.xlu0 %v1165, 126
    %v1268 = vpop.permute.xlu0 %1267
    %1269 = vrot.lane.b32.xlu0 %v1166, 126
    %v1270 = vpop.permute.xlu0 %1269
    %1271 = vrot.lane.b32.xlu0 %v1167, 126
    %v1272 = vpop.permute.xlu0 %1271
    %v1273 = vsel %vm570, %v1238, %v1240
    %v1274 = vsel %vm570, %v1240, %v1242
    %v1275 = vsel %vm570, %v1242, %v1244
    %v1276 = vsel %vm570, %v1244, %v1246
    %v1277 = vsel %vm570, %v1246, %v1248
    %v1278 = vsel %vm570, %v1250, %v1252
    %v1279 = vsel %vm570, %v1252, %v1254
    %v1280 = vsel %vm570, %v1254, %v1256
    %v1281 = vsel %vm570, %v1256, %v1258
    %v1282 = vsel %vm570, %v1258, %v1260
    %v1283 = vsel %vm570, %v1262, %v1264
    %v1284 = vsel %vm570, %v1264, %v1266
    %v1285 = vsel %vm570, %v1266, %v1268
    %v1286 = vsel %vm570, %v1268, %v1270
    %v1287 = vsel %vm570, %v1270, %v1272
    %v1290 = vunpack.c.l.b16 %v1037
    %v1291 = vunpack.c.h.b16 %v1037
    %v1292 = vunpack.c.l.b16 %v1038
    %v1293 = vunpack.c.h.b16 %v1038
    %v1294 = vpack.c.b16 %v1292, %v1290
    %v1295 = vpack.c.b16 %v1293, %v1291
    %1315 = vrot.lane.b32.xlu0 %v1109, 17
    %v1316 = vpop.permute.xlu0 %1315
    %1317 = vrot.lane.b32.xlu0 %v1110, 17
    %v1318 = vpop.permute.xlu0 %1317
    %1319 = vrot.lane.b32.xlu0 %v1111, 17
    %v1320 = vpop.permute.xlu0 %1319
    %1321 = vrot.lane.b32.xlu0 %v1112, 17
    %v1322 = vpop.permute.xlu0 %1321
    %1323 = vrot.lane.b32.xlu0 %v1113, 17
    %v1324 = vpop.permute.xlu0 %1323
    %1325 = vrot.lane.b32.xlu0 %v1114, 17
    %v1326 = vpop.permute.xlu0 %1325
    %1327 = vrot.lane.b32.xlu0 %v1115, 17
    %v1328 = vpop.permute.xlu0 %1327
    %1329 = vrot.lane.b32.xlu0 %v1116, 17
    %v1330 = vpop.permute.xlu0 %1329
    %1331 = vrot.lane.b32.xlu0 %v1117, 17
    %v1332 = vpop.permute.xlu0 %1331
    %1333 = vrot.lane.b32.xlu0 %v1118, 17
    %v1334 = vpop.permute.xlu0 %1333
    %1335 = vrot.lane.b32.xlu0 %v1119, 17
    %v1336 = vpop.permute.xlu0 %1335
    %1337 = vrot.lane.b32.xlu0 %v1120, 17
    %v1338 = vpop.permute.xlu0 %1337
    %1339 = vrot.lane.b32.xlu0 %v1121, 17
    %v1340 = vpop.permute.xlu0 %1339
    %1341 = vrot.lane.b32.xlu0 %v1122, 17
    %v1342 = vpop.permute.xlu0 %1341
    %1343 = vrot.lane.b32.xlu0 %v1123, 17
    %v1344 = vpop.permute.xlu0 %1343
    %1345 = vrot.lane.b32.xlu0 %v1124, 17
    %v1346 = vpop.permute.xlu0 %1345
    %1347 = vrot.lane.b32.xlu0 %v1125, 17
    %v1348 = vpop.permute.xlu0 %1347
    %1349 = vrot.lane.b32.xlu0 %v1126, 17
    %v1350 = vpop.permute.xlu0 %1349
    %1351 = vrot.lane.b32.xlu0 %v1204, 17
    %v1352 = vpop.permute.xlu0 %1351
    %1353 = vrot.lane.b32.xlu0 %v1205, 17
    %v1354 = vpop.permute.xlu0 %1353
    %1355 = vrot.lane.b32.xlu0 %v1206, 17
    %v1356 = vpop.permute.xlu0 %1355
    %1357 = vrot.lane.b32.xlu0 %v1207, 17
    %v1358 = vpop.permute.xlu0 %1357
    %1359 = vrot.lane.b32.xlu0 %v1208, 17
    %v1360 = vpop.permute.xlu0 %1359
    %1361 = vrot.lane.b32.xlu0 %v1179, 17
    %v1362 = vpop.permute.xlu0 %1361
    %1363 = vrot.lane.b32.xlu0 %v1209, 17
    %v1364 = vpop.permute.xlu0 %1363
    %1365 = vrot.lane.b32.xlu0 %v1210, 17
    %v1366 = vpop.permute.xlu0 %1365
    %1367 = vrot.lane.b32.xlu0 %v1211, 17
    %v1368 = vpop.permute.xlu0 %1367
    %1369 = vrot.lane.b32.xlu0 %v1212, 17
    %v1370 = vpop.permute.xlu0 %1369
    %1371 = vrot.lane.b32.xlu0 %v1213, 17
    %v1372 = vpop.permute.xlu0 %1371
    %1373 = vrot.lane.b32.xlu0 %v1191, 17
    %v1374 = vpop.permute.xlu0 %1373
    %1375 = vrot.lane.b32.xlu0 %v1214, 17
    %v1376 = vpop.permute.xlu0 %1375
    %1377 = vrot.lane.b32.xlu0 %v1215, 17
    %v1378 = vpop.permute.xlu0 %1377
    %1379 = vrot.lane.b32.xlu0 %v1216, 17
    %v1380 = vpop.permute.xlu0 %1379
    %1381 = vrot.lane.b32.xlu0 %v1217, 17
    %v1382 = vpop.permute.xlu0 %1381
    %1383 = vrot.lane.b32.xlu0 %v1218, 17
    %v1384 = vpop.permute.xlu0 %1383
    %1385 = vrot.lane.b32.xlu0 %v1203, 17
    %v1386 = vpop.permute.xlu0 %1385
    %1387 = vrot.lane.b32.xlu0 %v1273, 17
    %v1388 = vpop.permute.xlu0 %1387
    %1389 = vrot.lane.b32.xlu0 %v1274, 17
    %v1390 = vpop.permute.xlu0 %1389
    %1391 = vrot.lane.b32.xlu0 %v1275, 17
    %v1392 = vpop.permute.xlu0 %1391
    %1393 = vrot.lane.b32.xlu0 %v1276, 17
    %v1394 = vpop.permute.xlu0 %1393
    %1395 = vrot.lane.b32.xlu0 %v1277, 17
    %v1396 = vpop.permute.xlu0 %1395
    %1397 = vrot.lane.b32.xlu0 %v1248, 17
    %v1398 = vpop.permute.xlu0 %1397
    %1399 = vrot.lane.b32.xlu0 %v1278, 17
    %v1400 = vpop.permute.xlu0 %1399
    %1401 = vrot.lane.b32.xlu0 %v1279, 17
    %v1402 = vpop.permute.xlu0 %1401
    %1403 = vrot.lane.b32.xlu0 %v1280, 17
    %v1404 = vpop.permute.xlu0 %1403
    %1405 = vrot.lane.b32.xlu0 %v1281, 17
    %v1406 = vpop.permute.xlu0 %1405
    %1407 = vrot.lane.b32.xlu0 %v1282, 17
    %v1408 = vpop.permute.xlu0 %1407
    %1409 = vrot.lane.b32.xlu0 %v1260, 17
    %v1410 = vpop.permute.xlu0 %1409
    %1411 = vrot.lane.b32.xlu0 %v1283, 17
    %v1412 = vpop.permute.xlu0 %1411
    %1413 = vrot.lane.b32.xlu0 %v1284, 17
    %v1414 = vpop.permute.xlu0 %1413
    %1415 = vrot.lane.b32.xlu0 %v1285, 17
    %v1416 = vpop.permute.xlu0 %1415
    %1417 = vrot.lane.b32.xlu0 %v1286, 17
    %v1418 = vpop.permute.xlu0 %1417
    %1419 = vrot.lane.b32.xlu0 %v1287, 17
    %v1420 = vpop.permute.xlu0 %1419
    %1421 = vrot.lane.b32.xlu0 %v1272, 17
    %v1422 = vpop.permute.xlu0 %1421
    %v1423 = vsel %vm721, %v1316, %v1318
    %v1424 = vsel %vm721, %v1318, %v1320
    %v1425 = vsel %vm721, %v1320, %v1322
    %v1426 = vsel %vm721, %v1322, %v1324
    %v1427 = vsel %vm721, %v1324, %v1326
    %v1428 = vsel %vm721, %v1328, %v1330
    %v1429 = vsel %vm721, %v1330, %v1332
    %v1430 = vsel %vm721, %v1332, %v1334
    %v1431 = vsel %vm721, %v1334, %v1336
    %v1432 = vsel %vm721, %v1336, %v1338
    %v1433 = vsel %vm721, %v1340, %v1342
    %v1434 = vsel %vm721, %v1342, %v1344
    %v1435 = vsel %vm721, %v1344, %v1346
    %v1436 = vsel %vm721, %v1346, %v1348
    %v1437 = vsel %vm721, %v1348, %v1350
    %v1438 = vsel %vm721, %v1352, %v1354
    %v1439 = vsel %vm721, %v1354, %v1356
    %v1440 = vsel %vm721, %v1356, %v1358
    %v1441 = vsel %vm721, %v1358, %v1360
    %v1442 = vsel %vm721, %v1360, %v1362
    %v1443 = vsel %vm721, %v1364, %v1366
    %v1444 = vsel %vm721, %v1366, %v1368
    %v1445 = vsel %vm721, %v1368, %v1370
    %v1446 = vsel %vm721, %v1370, %v1372
    %v1447 = vsel %vm721, %v1372, %v1374
    %v1448 = vsel %vm721, %v1376, %v1378
    %v1449 = vsel %vm721, %v1378, %v1380
    %v1450 = vsel %vm721, %v1380, %v1382
    %v1451 = vsel %vm721, %v1382, %v1384
    %v1452 = vsel %vm721, %v1384, %v1386
    %v1453 = vsel %vm721, %v1388, %v1390
    %v1454 = vsel %vm721, %v1390, %v1392
    %v1455 = vsel %vm721, %v1392, %v1394
    %v1456 = vsel %vm721, %v1394, %v1396
    %v1457 = vsel %vm721, %v1396, %v1398
    %v1458 = vsel %vm721, %v1400, %v1402
    %v1459 = vsel %vm721, %v1402, %v1404
    %v1460 = vsel %vm721, %v1404, %v1406
    %v1461 = vsel %vm721, %v1406, %v1408
    %v1462 = vsel %vm721, %v1408, %v1410
    %v1463 = vsel %vm721, %v1412, %v1414
    %v1464 = vsel %vm721, %v1414, %v1416
    %v1465 = vsel %vm721, %v1416, %v1418
    %v1466 = vsel %vm721, %v1418, %v1420
    %v1467 = vsel %vm721, %v1420, %v1422
    %v1514 = vsel %vm812, %v1295, 0
    %1516 = vmatprep.subr.bf16.mxu0 %v1424
    %1517 = vmatpush1.bf16.msra.mxu0 %v1423
    %1518 = vmatprep.subr.bf16.mxu0 %v1429
    %1519 = vmatpush1.bf16.msra.mxu0 %v1428
    %1520 = vmatprep.subr.bf16.mxu0 %v1434
    %1521 = vmatpush1.bf16.msra.mxu0 %v1433
    %1522 = vmatprep.subr.bf16.mxu0 %v1439
    %1523 = vmatpush1.bf16.msra.mxu0 %v1438
    %1524 = vmatprep.subr.bf16.mxu0 %v1444
    %1525 = vmatpush1.bf16.msra.mxu0 %v1443
    %1526 = vmatprep.subr.bf16.mxu0 %v1449
    %1527 = vmatpush1.bf16.msra.mxu0 %v1448
    %1528 = vmatprep.subr.bf16.mxu0 %v1454
    %1529 = vmatpush1.bf16.msra.mxu0 %v1453
    %1530 = vmatprep.subr.bf16.mxu0 %v1459
    %1531 = vmatpush1.bf16.msra.mxu0 %v1458
    %1532 = vmatprep.subr.bf16.mxu0 %v1464
    %1533 = vmatpush1.bf16.msra.mxu0 %v1463
    %1534 = vmatprep.subr.bf16.mxu0 0
    %1535 = vmatpush1.bf16.msra.mxu0 0
    %1536 = vmatprep.subr.bf16.mxu0 0
    %1537 = vmatpush1.bf16.msra.mxu0 0
    %1538 = vmatprep.subr.bf16.mxu0 0
    %1539 = vmatpush1.bf16.msra.mxu0 0
    %1540 = vmatprep.subr.bf16.mxu0 0
    %1541 = vmatpush1.bf16.msra.mxu0 0
    %1542 = vmatprep.subr.bf16.mxu0 0
    %1543 = vmatpush1.bf16.msra.mxu0 0
    %1544 = vmatprep.subr.bf16.mxu0 0
    %1545 = vmatpush1.bf16.msra.mxu0 0
    %1546 = vmatprep.subr.bf16.mxu0 0
    %1547 = vmatpush1.bf16.msra.mxu0 0
    %1548 = vmatprep.mubr.bf16.mxu0 %v1514
    %1549 = vmatmul.mubr.bf16.gmra.mrb[0].mxu0 %v1294
    %v1550 = vpop.f32.mrb[0].mxu0
    %v1551 = vadd.f32 0.0, %v1550
    %v1552 = vpop.f32.mrb[0].mxu0
    %v1553 = vadd.f32 0.0, %v1552
    %v1554 = vpop.f32.mrb[0].mxu0
    %v1555 = vadd.f32 0.0, %v1554
    %v1556 = vpop.f32.mrb[0].mxu0
    %v1557 = vadd.f32 0.0, %v1556
    %1558 = vdwg.mxu0
    %1559 = vmatprep.subr.bf16.mxu0 %v1426
    %1560 = vmatpush1.bf16.msra.mxu0 %v1425
    %1561 = vmatprep.subr.bf16.mxu0 %v1431
    %1562 = vmatpush1.bf16.msra.mxu0 %v1430
    %1563 = vmatprep.subr.bf16.mxu0 %v1436
    %1564 = vmatpush1.bf16.msra.mxu0 %v1435
    %1565 = vmatprep.subr.bf16.mxu0 %v1441
    %1566 = vmatpush1.bf16.msra.mxu0 %v1440
    %1567 = vmatprep.subr.bf16.mxu0 %v1446
    %1568 = vmatpush1.bf16.msra.mxu0 %v1445
    %1569 = vmatprep.subr.bf16.mxu0 %v1451
    %1570 = vmatpush1.bf16.msra.mxu0 %v1450
    %1571 = vmatprep.subr.bf16.mxu0 %v1456
    %1572 = vmatpush1.bf16.msra.mxu0 %v1455
    %1573 = vmatprep.subr.bf16.mxu0 %v1461
    %1574 = vmatpush1.bf16.msra.mxu0 %v1460
    %1575 = vmatprep.subr.bf16.mxu0 %v1466
    %1576 = vmatpush1.bf16.msra.mxu0 %v1465
    %1577 = vmatprep.subr.bf16.mxu0 0
    %1578 = vmatpush1.bf16.msra.mxu0 0
    %1579 = vmatprep.subr.bf16.mxu0 0
    %1580 = vmatpush1.bf16.msra.mxu0 0
    %1581 = vmatprep.subr.bf16.mxu0 0
    %1582 = vmatpush1.bf16.msra.mxu0 0
    %1583 = vmatprep.subr.bf16.mxu0 0
    %1584 = vmatpush1.bf16.msra.mxu0 0
    %1585 = vmatprep.subr.bf16.mxu0 0
    %1586 = vmatpush1.bf16.msra.mxu0 0
    %1587 = vmatprep.subr.bf16.mxu0 0
    %1588 = vmatpush1.bf16.msra.mxu0 0
    %1589 = vmatprep.subr.bf16.mxu0 0
    %1590 = vmatpush1.bf16.msra.mxu0 0
    %1591 = vmatprep.mubr.bf16.mxu0 %v1514
    %1592 = vmatmul.mubr.bf16.gmra.mrb[0].mxu0 %v1294
    %v1593 = vpop.f32.mrb[0].mxu0
    %v1594 = vpop.f32.mrb[0].mxu0
    %v1595 = vadd.f32 0.0, %v1594
    %v1596 = vpop.f32.mrb[0].mxu0
    %v1597 = vpop.f32.mrb[0].mxu0
    %v1598 = vadd.f32 0.0, %v1597
    %1599 = vdwg.mxu0
    %1600 = vmatprep.subr.bf16.mxu0 0
    %1601 = vmatpush1.bf16.msra.mxu0 %v1427
    %1602 = vmatprep.subr.bf16.mxu0 0
    %1603 = vmatpush1.bf16.msra.mxu0 %v1432
    %1604 = vmatprep.subr.bf16.mxu0 0
    %1605 = vmatpush1.bf16.msra.mxu0 %v1437
    %1606 = vmatprep.subr.bf16.mxu0 0
    %1607 = vmatpush1.bf16.msra.mxu0 %v1442
    %1608 = vmatprep.subr.bf16.mxu0 0
    %1609 = vmatpush1.bf16.msra.mxu0 %v1447
    %1610 = vmatprep.subr.bf16.mxu0 0
    %1611 = vmatpush1.bf16.msra.mxu0 %v1452
    %1612 = vmatprep.subr.bf16.mxu0 0
    %1613 = vmatpush1.bf16.msra.mxu0 %v1457
    %1614 = vmatprep.subr.bf16.mxu0 0
    %1615 = vmatpush1.bf16.msra.mxu0 %v1462
    %1616 = vmatprep.subr.bf16.mxu0 0
    %1617 = vmatpush1.bf16.msra.mxu0 %v1467
    %1618 = vmatprep.subr.bf16.mxu0 0
    %1619 = vmatpush1.bf16.msra.mxu0 0
    %1620 = vmatprep.subr.bf16.mxu0 0
    %1621 = vmatpush1.bf16.msra.mxu0 0
    %1622 = vmatprep.subr.bf16.mxu0 0
    %1623 = vmatpush1.bf16.msra.mxu0 0
    %1624 = vmatprep.subr.bf16.mxu0 0
    %1625 = vmatpush1.bf16.msra.mxu0 0
    %1626 = vmatprep.subr.bf16.mxu0 0
    %1627 = vmatpush1.bf16.msra.mxu0 0
    %1628 = vmatprep.subr.bf16.mxu0 0
    %1629 = vmatpush1.bf16.msra.mxu0 0
    %1630 = vmatprep.subr.bf16.mxu0 0
    %1631 = vmatpush1.bf16.msra.mxu0 0
    %1632 = vmatprep.mubr.bf16.mxu0 %v1514
    %1633 = vmatmul.mubr.bf16.gmra.mrb[0].mxu0 %v1294
    %v1634 = vpop.f32.mrb[0].mxu0
    %v1635 = vadd.f32 0.0, %v1634
    %v1636 = vpop.f32.mrb[0].mxu0
    %v1637 = vpop.f32.mrb[0].mxu0
    %v1638 = vadd.f32 0.0, %v1637
    %v1639 = vpop.f32.mrb[0].mxu0
    %1640 = vdwg.mxu0
    %v1641 = vadd.f32 %v1551, %v1553
    %1642 = vadd.xlane.f32.xlu0 %v1641
    %v1643 = vpop.xlane.xlu0 %1642
    %v1644 = vadd.f32 %v1555, %v1557
    %1645 = vadd.xlane.f32.xlu0 %v1644
    %v1646 = vpop.xlane.xlu0 %1645
    %v1647 = vmul.f32 %v1643, %v954
    %v1648 = vmul.f32 %v1646, %v954
    %v1649 = vsub.f32 %v1551, %v1647
    %v1650 = vsub.f32 %v1553, %v1647
    %v1651 = vsub.f32 %v1555, %v1648
    %v1652 = vsub.f32 %v1557, %v1648
    %v1653 = vmul.f32 %v1649, %v1649
    %v1654 = vmul.f32 %v1650, %v1650
    %v1655 = vmul.f32 %v1651, %v1651
    %v1656 = vmul.f32 %v1652, %v1652
    %v1657 = vadd.f32 %v1653, %v1654
    %1658 = vadd.xlane.f32.xlu0 %v1657
    %v1659 = vpop.xlane.xlu0 %1658
    %v1660 = vadd.f32 %v1655, %v1656
    %1661 = vadd.xlane.f32.xlu0 %v1660
    %v1662 = vpop.xlane.xlu0 %1661
    %v1663 = vmul.f32 %v1659, %v954
    %v1664 = vmul.f32 %v1662, %v954
    %v1665 = vadd.f32 %v1663, 1e-05
    %v1666 = vadd.f32 %v1664, 1e-05
    %v1667 = vrsqrt.pop %v1665
    %v1668 = vrsqrt.pop %v1666
    %v1669 = vmul.f32 %v1649, %v1667
    %v1670 = vmul.f32 %v1650, %v1667
    %v1671 = vmul.f32 %v1651, %v1668
    %v1672 = vmul.f32 %v1652, %v1668
    %v1673 = vmul.f32 %v1669, 0.01
    %v1674 = vmul.f32 %v1670, 0.01
    %v1675 = vmul.f32 %v1671, 0.01
    %v1676 = vmul.f32 %v1672, 0.01
    %v1677 = vmax.f32 %v1669, %v1673
    %v1678 = vmax.f32 %v1670, %v1674
    %v1679 = vmax.f32 %v1671, %v1675
    %v1680 = vmax.f32 %v1672, %v1676
    %1681 = vst [vmem:[#allocation10] sm:$0xff] %v1677
    %1682 = vst [vmem:[#allocation10 + $0x8] sm:$0xff] %v1678
    %1683 = vst [vmem:[#allocation10 + $0x10] sm:$0xff] %v1679
    %1684 = vst [vmem:[#allocation10 + $0x18] sm:$0xff] %v1680
    %v1685 = vadd.f32 %v1595, %v1635
    %1686 = vadd.xlane.f32.xlu0 %v1685
    %v1687 = vpop.xlane.xlu0 %1686
    %v1688 = vadd.f32 %v1598, %v1638
    %1689 = vadd.xlane.f32.xlu0 %v1688
    %v1690 = vpop.xlane.xlu0 %1689
    %v1691 = vmul.f32 %v1687, %v954
    %v1692 = vmul.f32 %v1690, %v954
    %v1693 = vsub.f32 %v1595, %v1691
    %v1694 = vsub.f32 %v1635, %v1691
    %v1695 = vsub.f32 %v1598, %v1692
    %v1696 = vsub.f32 %v1638, %v1692
    %v1697 = vmul.f32 %v1693, %v1693
    %v1698 = vmul.f32 %v1694, %v1694
    %v1699 = vmul.f32 %v1695, %v1695
    %v1700 = vmul.f32 %v1696, %v1696
    %v1701 = vadd.f32 %v1697, %v1698
    %1702 = vadd.xlane.f32.xlu0 %v1701
    %v1703 = vpop.xlane.xlu0 %1702
    %v1704 = vadd.f32 %v1699, %v1700
    %1705 = vadd.xlane.f32.xlu0 %v1704
    %v1706 = vpop.xlane.xlu0 %1705
    %v1707 = vmul.f32 %v1703, %v954
    %v1708 = vmul.f32 %v1706, %v954
    %v1709 = vadd.f32 %v1707, 1e-05
    %v1710 = vadd.f32 %v1708, 1e-05
    %v1711 = vrsqrt.pop %v1709
    %v1712 = vrsqrt.pop %v1710
    %v1713 = vmul.f32 %v1693, %v1711
    %v1714 = vmul.f32 %v1694, %v1711
    %v1715 = vmul.f32 %v1695, %v1712
    %v1716 = vmul.f32 %v1696, %v1712
    %v1717 = vmul.f32 %v1713, 0.01
    %v1718 = vmul.f32 %v1714, 0.01
    %v1719 = vmul.f32 %v1715, 0.01
    %v1720 = vmul.f32 %v1716, 0.01
    %v1721 = vmax.f32 %v1713, %v1717
    %v1722 = vmax.f32 %v1714, %v1718
    %v1723 = vmax.f32 %v1715, %v1719
    %v1724 = vmax.f32 %v1716, %v1720
    %s1725 = scalar_lea.vmem [#allocation10], 32
    %1726 = vst [vmem:[%s1725] sm:$0xff] %v1721
    %1727 = vst [vmem:[%s1725 + $0x8] sm:$0xff] %v1722
    %1728 = vst [vmem:[%s1725 + $0x10] sm:$0xff] %v1723
    %1729 = vst [vmem:[%s1725 + $0x18] sm:$0xff] %v1724
    // Predicated region
    $region26: #{tpu_custom_call.1} parent=1 // pred_check
      _
    $region27: #{tpu_custom_call.1} parent=1 // pred_check_branch
      %1731 = sbr.rel (0) target = $region29
    $region28: #{tpu_custom_call.1} parent=1 // pred_region
      %s1733 = ssub.s32 1024, 1024
      %1734 = vsyncadd [#allocation6], %s1733
      %s1735 = sshll.u32 [#allocation10], 4
      %s1736 = int_to_ptr.vmem [resolvable:$true] %s1735
      %1741 = dma.vmem_to_hbm [thread:$0]  %s1736, 1024, %s3, [#allocation6], 256, 256, 16
    $region29: #{tpu_custom_call.1} parent=1 // pred_fallthru
      _
    // Predicated region
    $region30: #{tpu_custom_call.1} parent=1 // pred_check
      _
    $region31: #{tpu_custom_call.1} parent=1 // pred_check_branch
      %1743 = sbr.rel (0) target = $region33
    $region32: #{tpu_custom_call.1} parent=1 // pred_region
      %1744 = dma.done [#allocation6], 1024
    $region33: #{tpu_custom_call.1} parent=1 // pred_fallthru
      _
    %1745 = vsyncpa [#allocation5], 1
    %1746 = vsyncpa [#allocation8], 1
    %1747 = vsyncpa [#allocation6], 1

</llo_original>
